<compile_context>
chip_gen: v7x
topology: tpu7x:2x2x1
jax: 0.10.0
libtpu: 0.0.40
codegen_flags: <defaults>
</compile_context>

<pallas_src>
import functools

import jax
import jax.numpy as jnp
from jax.experimental import pallas as pl
from jax.experimental.pallas import tpu as pltpu

IN_FEATURES = 10
OUT_FEATURES = 1

DEFAULT_PACK = 128          # logical rows packed into one lane-dense packed row
DEFAULT_TILE_BP = 512       # packed rows per grid step (512 * 1280 * 4B = 2.5 MiB x tile)
MIN_GRID_STEPS = 8          # keep enough steps for megacore sharding on v7x
SMALL_BATCH_FALLBACK = 16384  # below this, XLA's fused dot beats pallas_call overhead


def _round_up(n, m):
    return ((n + m - 1) // m) * m


def _build_select_weight(w_row, pack):
    """Block-diagonal 'select-and-weight' matrix S: S[c*IN + j, c] = w_row[j]."""
    eye = jnp.eye(pack, dtype=jnp.float32)                      # (pack, pack)
    s = eye[:, None, :] * w_row.reshape(1, IN_FEATURES, 1)      # (pack, IN, pack)
    return s.reshape(pack * IN_FEATURES, pack)                  # (pack*IN, pack)


def linear_kernel(x_ref, s_ref, b_ref, o_ref, *, precision):
    # x_ref: (TB_p, pack*IN) VMEM   s_ref: (pack*IN, pack) VMEM (replicated)
    # b_ref: (1,) SMEM scalar       o_ref: (TB_p, pack) VMEM (lane-dense)
    acc = jnp.dot(x_ref[...], s_ref[...],
                  preferred_element_type=jnp.float32,
                  precision=precision)                           # MXU mult + segmented sum
    o_ref[...] = (acc + b_ref[0]).astype(o_ref.dtype)


def simple_model_forward(x, w, b, *, pack=DEFAULT_PACK, tile_bp=DEFAULT_TILE_BP,
                         force_pallas=False,
                         precision=jax.lax.Precision.HIGHEST):
    """y = x @ w.T + b, equivalent of nn.Linear(10, 1).forward.

    x: [B, IN] float32;  w: [OUT, IN] float32 (PyTorch layout);  b: [OUT] float32.
    """
    B, in_features = x.shape
    out_features = w.shape[0]
    assert in_features == IN_FEATURES and out_features == OUT_FEATURES
    assert w.shape == (out_features, in_features)

    x = x.astype(jnp.float32)
    w = w.astype(jnp.float32)
    b = b.astype(jnp.float32)

    if B < SMALL_BATCH_FALLBACK and not force_pallas:
        # Tiny batches: pallas_call fixed overhead + packing dominates; XLA dot wins.
        return x @ w.T + b

    # Pad only the <= pack-1 row tail so the lane-packing reshape is legal.
    b_pad = _round_up(B, pack)
    if b_pad != B:
        x = jnp.pad(x, ((0, b_pad - B), (0, 0)))
    bp = b_pad // pack
    xp = x.reshape(bp, pack * in_features)      # metadata-only reshape (row-major)

    s = _build_select_weight(w.reshape(in_features), pack)   # (pack*IN, pack), built once
    b_smem = b.reshape(out_features)                          # scalar bias via SMEM

    # Tile the packed-row axis: multi-MiB tiles, but keep >= MIN_GRID_STEPS steps so
    # both v7x TensorCores get work; sublane-aligned (multiple of 8) unless bp itself
    # is tiny (then the block equals the full dim, which is also legal).
    if bp <= 8:
        tb = bp
    else:
        target = _round_up(pl.cdiv(bp, MIN_GRID_STEPS), 8)
        tb = max(8, min(tile_bp, target))
    grid = (pl.cdiv(bp, tb),)

    cost = pl.CostEstimate(
        flops=2 * bp * (pack * in_features) * pack,
        transcendentals=0,
        bytes_accessed=(bp * pack * in_features        # x read
                        + bp * pack                    # y write
                        + pack * in_features * pack    # S (fetched once)
                        + out_features) * 4,
    )

    kernel = functools.partial(linear_kernel, precision=precision)

    y_packed = pl.pallas_call(
        kernel,
        out_shape=jax.ShapeDtypeStruct((bp, pack), jnp.float32),
        grid=grid,
        in_specs=[
            pl.BlockSpec((tb, pack * in_features), lambda i: (i, 0)),   # lane-dense x tiles
            pl.BlockSpec((pack * in_features, pack), lambda i: (0, 0)), # S, replicated
            pl.BlockSpec(memory_space=pltpu.MemorySpace.SMEM),          # bias scalar
        ],
        out_specs=pl.BlockSpec((tb, pack), lambda i: (i, 0)),           # lane-dense output
        compiler_params=pltpu.CompilerParams(
            dimension_semantics=("parallel",),
            vmem_limit_bytes=32 * 1024 * 1024,
        ),
        cost_estimate=cost,
    )(xp, s, b_smem)

    # (bp, pack) row-major flattens back to logical row order: row = r*pack + c.
    return y_packed.reshape(b_pad, out_features)[:B]


if __name__ == "__main__":
    key = jax.random.PRNGKey(0)
    kx, kw, kb, kx2, kx3 = jax.random.split(key, 5)

    # Deterministic params (mimicking nn.Linear's uniform(-1/sqrt(in), 1/sqrt(in))).
    bound = 1.0 / (IN_FEATURES ** 0.5)
    w_pt = jax.random.uniform(
        kw, (OUT_FEATURES, IN_FEATURES), jnp.float32, -bound, bound)   # [OUT, IN]
    b_pt = jax.random.uniform(kb, (OUT_FEATURES,), jnp.float32, -bound, bound)

    # 1) Tiny batch (test-suite scale) exercises the small-batch fallback path.
    x_small = jax.random.normal(kx, (8, IN_FEATURES), jnp.float32)
    y_small = simple_model_forward(x_small, w_pt, b_pt)
    jax.block_until_ready(y_small)
    assert y_small.shape == (8, OUT_FEATURES)
    assert jnp.allclose(y_small, x_small @ w_pt.T + b_pt, atol=1e-5, rtol=1e-5)

    # 2) Non-multiple-of-128 batch, forced Pallas path: tail pad -> lane-pack ->
    #    block-diagonal MXU matmul -> slice.  Single grid step (bp=8).
    B1 = 1000
    x_big = jax.random.normal(kx2, (B1, IN_FEATURES), jnp.float32)
    y_big = simple_model_forward(x_big, w_pt, b_pt, force_pallas=True)
    jax.block_until_ready(y_big)
    y_ref = x_big @ w_pt.T + b_pt
    assert y_big.shape == (B1, OUT_FEATURES)
    assert jnp.allclose(y_big, y_ref, atol=2e-5, rtol=2e-5)

    # 3) Multi-step grid with a partial (masked) last block.
    B2 = 2500
    x_mid = jax.random.normal(kx3, (B2, IN_FEATURES), jnp.float32)
    y_mid = simple_model_forward(x_mid, w_pt, b_pt, force_pallas=True)
    jax.block_until_ready(y_mid)
    y_ref2 = x_mid @ w_pt.T + b_pt
    assert y_mid.shape == (B2, OUT_FEATURES)
    assert jnp.allclose(y_mid, y_ref2, atol=2e-5, rtol=2e-5)

    print("KERNEL_OK")
</pallas_src>

<mosaic_0001>
module attributes {stable_mosaic.version = 11 : i64} {
  func.func @linear_kernel(%arg0: i32, %arg1: memref<8x1280xf32, #tpu.memory_space<vmem>>, %arg2: memref<1280x128xf32, #tpu.memory_space<vmem>>, %arg3: memref<1xf32, #tpu.memory_space<smem>>, %arg4: memref<8x128xf32, #tpu.memory_space<vmem>>) attributes {dimension_semantics = [#tpu.dimension_semantics<parallel>], iteration_bounds = array<i64: 1>, scalar_prefetch = 0 : i64, scratch_operands = 0 : i64, tpu.core_type = #tpu.core_type<tc>, window_params = [{transform_indices = @transform_0, window_bounds = array<i64: 8, 1280>}, {pipeline_mode = #tpu.pipeline_mode<synchronous>, transform_indices = @transform_1, window_bounds = array<i64: 1280, 128>}, {transform_indices = @transform_2, window_bounds = array<i64: 1>}, {transform_indices = @transform_3, window_bounds = array<i64: 8, 128>}]} {
    %c0 = arith.constant 0 : index
    %c0_0 = arith.constant 0 : index
    %0 = vector.load %arg1[%c0, %c0_0] : memref<8x1280xf32, #tpu.memory_space<vmem>>, vector<8x1280xf32>
    %c0_1 = arith.constant 0 : index
    %c0_2 = arith.constant 0 : index
    %1 = vector.load %arg2[%c0_1, %c0_2] : memref<1280x128xf32, #tpu.memory_space<vmem>>, vector<1280x128xf32>
    %cst = arith.constant dense<0.000000e+00> : vector<8x128xf32>
    %2 = tpu.matmul %0, %1, %cst {dimension_numbers = #tpu.dot_dimension_numbers<[1], [0], [0], [1], [0, 0, 1, 1], [], []>, precision = #tpu.contract_precision<fp32>} : vector<8x1280xf32>, vector<1280x128xf32>, vector<8x128xf32> -> vector<8x128xf32>
    %c0_3 = arith.constant 0 : index
    %3 = memref.load %arg3[%c0_3] : memref<1xf32, #tpu.memory_space<smem>>
    %4 = vector.broadcast %3 : f32 to vector<8x128xf32>
    %5 = arith.addf %2, %4 : vector<8x128xf32>
    %c0_4 = arith.constant 0 : index
    %c0_5 = arith.constant 0 : index
    %6 = vector.load %arg4[%c0_4, %c0_5] : memref<8x128xf32, #tpu.memory_space<vmem>>, vector<8x128xf32>
    tpu.vector_store %arg4[%c0_4, %c0_5], %5 {strides = array<i32>} : memref<8x128xf32, #tpu.memory_space<vmem>>, vector<8x128xf32>,
    return
  }
  func.func @transform_0(%arg0: i32) -> (i32, i32) {
    %c0_i32 = arith.constant 0 : i32
    %c0_i32_0 = arith.constant 0 : i32
    return %arg0, %c0_i32 : i32, i32
  }
  func.func @transform_1(%arg0: i32) -> (i32, i32) {
    %c0_i32 = arith.constant 0 : i32
    %c0_i32_0 = arith.constant 0 : i32
    %c0_i32_1 = arith.constant 0 : i32
    return %c0_i32, %c0_i32_0 : i32, i32
  }
  func.func @transform_2(%arg0: i32) -> i32 {
    %c0_i32 = arith.constant 0 : i32
    %c0_i32_0 = arith.constant 0 : i32
    return %c0_i32 : i32
  }
  func.func @transform_3(%arg0: i32) -> (i32, i32) {
    %c0_i32 = arith.constant 0 : i32
    %c0_i32_0 = arith.constant 0 : i32
    return %arg0, %c0_i32 : i32, i32
  }
}

</mosaic_0001>

<llo_original>
// kernel: tpu_custom_call.1
$region0: #{tpu_custom_call.1}
  #allocation0 [shape = 'u32[]', space=smem, size = 0x4, offset = 0x4, fixed_abs, tag = 'smem constant byte address 0x4 - core index']
  #allocation1 [shape = 'u32[144,128]{1,0:T(1,128)}', space=vmem, size = 0x12000, scoped, tag = 'internal scratch']
  #allocation2 [shape = 'f32[1]{0:T(128)S(6)}', space=smem, size = 0x200, scoped, tag = 'scoped memory for tpu_custom_call.1']
  %s0 = inlined_call_operand.hbm [shape: f32[8,1280], index: 0, kind: input, shape index: {}]
  %s1 = inlined_call_operand.hbm [shape: f32[1280,128], index: 1, kind: input, shape index: {}]
  %s2 = inlined_call_operand.<no memory space> [shape: f32[1], index: 2, kind: input, shape index: {}]
  %s3 = inlined_call_operand.hbm [shape: f32[8,128], index: 3, kind: output, shape index: {}]
  %s4 = sld [smem:[#allocation0]]
  $region30: #{tpu_custom_call.1} parent=0
    _
  %s6 = ssub.s32 1, %s4
  %s7 = scalar_select 0, %s6, %s4
  %8 = sst [smem:[#allocation2]] %s2
  $region1: #{tpu_custom_call.1} parent=0
    #allocation3 [shape = 'u8[40960]{0}', space=vmem, size = 0xa000, scoped, tag = 'input window, operand 0, single buffered']
    #allocation4 [shape = 's32[1]{0}', space=sflag, size = 0x4, scoped, tag = 'scoped memory for tpu_custom_call.1']
    #allocation5 [shape = 's32[1]{0}', space=sflag, size = 0x4, scoped, tag = 'scoped memory for tpu_custom_call.1']
    #allocation6 [shape = 'u8[655360]{0}', space=vmem, size = 0xa0000, scoped, tag = 'input window, operand 1, single buffered']
    #allocation7 [shape = 's32[1]{0}', space=sflag, size = 0x4, scoped, tag = 'scoped memory for tpu_custom_call.1']
    #allocation8 [shape = 'u8[4096]{0}', space=vmem, size = 0x1000, scoped, tag = 'output window, operand 0, single buffered']
    %9 = vsyncpa [#allocation4], 0
    %10 = vsyncpa [#allocation7], 0
    %11 = vsyncpa [#allocation5], 0
    // Predicated region
    $region2: #{tpu_custom_call.1} parent=1 // pred_check
      _
    $region3: #{tpu_custom_call.1} parent=1 // pred_check_branch
      %13 = sbr.rel (0) target = $region5
    $region4: #{tpu_custom_call.1} parent=1 // pred_region
      %s15 = ssub.s32 1280, 1280
      %16 = vsyncadd [#allocation4], %s15
      %s18 = sshll.u32 [#allocation3], 4
      %s19 = int_to_ptr.vmem [resolvable:$true] %s18
      %21 = dma.hbm_to_vmem [thread:$0]  %s0, 1280, %s19, [#allocation4]
    $region5: #{tpu_custom_call.1} parent=1 // pred_fallthru
      _
    // Predicated region
    $region6: #{tpu_custom_call.1} parent=1 // pred_check
      _
    $region7: #{tpu_custom_call.1} parent=1 // pred_check_branch
      %23 = sbr.rel (0) target = $region9
    $region8: #{tpu_custom_call.1} parent=1 // pred_region
      %s25 = ssub.s32 20480, 20480
      %26 = vsyncadd [#allocation7], %s25
      %s27 = sshll.u32 [#allocation6], 4
      %s28 = int_to_ptr.vmem [resolvable:$true] %s27
      %33 = dma.hbm_to_vmem [thread:$0]  %s1, 20480, %s28, [#allocation7], 128, 128, 8
    $region9: #{tpu_custom_call.1} parent=1 // pred_fallthru
      _
    // Predicated region
    $region10: #{tpu_custom_call.1} parent=1 // pred_check
      _
    $region11: #{tpu_custom_call.1} parent=1 // pred_check_branch
      %35 = sbr.rel (0) target = $region13
    $region12: #{tpu_custom_call.1} parent=1 // pred_region
      _
    $region13: #{tpu_custom_call.1} parent=1 // pred_fallthru
      _
    // Predicated region
    $region14: #{tpu_custom_call.1} parent=1 // pred_check
      _
    $region15: #{tpu_custom_call.1} parent=1 // pred_check_branch
      %37 = sbr.rel (0) target = $region17
    $region16: #{tpu_custom_call.1} parent=1 // pred_region
      %38 = dma.done [#allocation4], 1280
    $region17: #{tpu_custom_call.1} parent=1 // pred_fallthru
      _
    // Predicated region
    $region18: #{tpu_custom_call.1} parent=1 // pred_check
      _
    $region19: #{tpu_custom_call.1} parent=1 // pred_check_branch
      %40 = sbr.rel (0) target = $region21
    $region20: #{tpu_custom_call.1} parent=1 // pred_region
      %41 = dma.done [#allocation7], 20480
    $region21: #{tpu_custom_call.1} parent=1 // pred_fallthru
      _
    %v42 = vld [vmem:[#allocation3] sm:$0xff]
    %v43 = vld [vmem:[#allocation3 + $0x8] sm:$0xff]
    %v44 = vld [vmem:[#allocation3 + $0x10] sm:$0xff]
    %v45 = vld [vmem:[#allocation3 + $0x18] sm:$0xff]
    %v46 = vld [vmem:[#allocation3 + $0x20] sm:$0xff]
    %v47 = vld [vmem:[#allocation3 + $0x28] sm:$0xff]
    %v48 = vld [vmem:[#allocation3 + $0x30] sm:$0xff]
    %v49 = vld [vmem:[#allocation3 + $0x38] sm:$0xff]
    %v50 = vld [vmem:[#allocation3 + $0x40] sm:$0xff]
    %v51 = vld [vmem:[#allocation3 + $0x48] sm:$0xff]
    %v52 = vld [vmem:[#allocation6] sm:$0xff]
    %v53 = vld [vmem:[#allocation6 + $0x8] sm:$0xff]
    %v54 = vld [vmem:[#allocation6 + $0x10] sm:$0xff]
    %v55 = vld [vmem:[#allocation6 + $0x18] sm:$0xff]
    %v56 = vld [vmem:[#allocation6 + $0x20] sm:$0xff]
    %v57 = vld [vmem:[#allocation6 + $0x28] sm:$0xff]
    %v58 = vld [vmem:[#allocation6 + $0x30] sm:$0xff]
    %v59 = vld [vmem:[#allocation6 + $0x38] sm:$0xff]
    %v60 = vld [vmem:[#allocation6 + $0x40] sm:$0xff]
    %v61 = vld [vmem:[#allocation6 + $0x48] sm:$0xff]
    %v62 = vld [vmem:[#allocation6 + $0x50] sm:$0xff]
    %v63 = vld [vmem:[#allocation6 + $0x58] sm:$0xff]
    %v64 = vld [vmem:[#allocation6 + $0x60] sm:$0xff]
    %v65 = vld [vmem:[#allocation6 + $0x68] sm:$0xff]
    %v66 = vld [vmem:[#allocation6 + $0x70] sm:$0xff]
    %v67 = vld [vmem:[#allocation6 + $0x78] sm:$0xff]
    %v68 = vld [vmem:[#allocation6 + $0x80] sm:$0xff]
    %v69 = vld [vmem:[#allocation6 + $0x88] sm:$0xff]
    %v70 = vld [vmem:[#allocation6 + $0x90] sm:$0xff]
    %v71 = vld [vmem:[#allocation6 + $0x98] sm:$0xff]
    %v72 = vld [vmem:[#allocation6 + $0xa0] sm:$0xff]
    %v73 = vld [vmem:[#allocation6 + $0xa8] sm:$0xff]
    %v74 = vld [vmem:[#allocation6 + $0xb0] sm:$0xff]
    %v75 = vld [vmem:[#allocation6 + $0xb8] sm:$0xff]
    %v76 = vld [vmem:[#allocation6 + $0xc0] sm:$0xff]
    %v77 = vld [vmem:[#allocation6 + $0xc8] sm:$0xff]
    %v78 = vld [vmem:[#allocation6 + $0xd0] sm:$0xff]
    %v79 = vld [vmem:[#allocation6 + $0xd8] sm:$0xff]
    %v80 = vld [vmem:[#allocation6 + $0xe0] sm:$0xff]
    %v81 = vld [vmem:[#allocation6 + $0xe8] sm:$0xff]
    %v82 = vld [vmem:[#allocation6 + $0xf0] sm:$0xff]
    %v83 = vld [vmem:[#allocation6 + $0xf8] sm:$0xff]
    %v84 = vld [vmem:[#allocation6 + $0x100] sm:$0xff]
    %v85 = vld [vmem:[#allocation6 + $0x108] sm:$0xff]
    %v86 = vld [vmem:[#allocation6 + $0x110] sm:$0xff]
    %v87 = vld [vmem:[#allocation6 + $0x118] sm:$0xff]
    %v88 = vld [vmem:[#allocation6 + $0x120] sm:$0xff]
    %v89 = vld [vmem:[#allocation6 + $0x128] sm:$0xff]
    %v90 = vld [vmem:[#allocation6 + $0x130] sm:$0xff]
    %v91 = vld [vmem:[#allocation6 + $0x138] sm:$0xff]
    %v92 = vld [vmem:[#allocation6 + $0x140] sm:$0xff]
    %v93 = vld [vmem:[#allocation6 + $0x148] sm:$0xff]
    %v94 = vld [vmem:[#allocation6 + $0x150] sm:$0xff]
    %v95 = vld [vmem:[#allocation6 + $0x158] sm:$0xff]
    %v96 = vld [vmem:[#allocation6 + $0x160] sm:$0xff]
    %v97 = vld [vmem:[#allocation6 + $0x168] sm:$0xff]
    %v98 = vld [vmem:[#allocation6 + $0x170] sm:$0xff]
    %v99 = vld [vmem:[#allocation6 + $0x178] sm:$0xff]
    %v100 = vld [vmem:[#allocation6 + $0x180] sm:$0xff]
    %v101 = vld [vmem:[#allocation6 + $0x188] sm:$0xff]
    %v102 = vld [vmem:[#allocation6 + $0x190] sm:$0xff]
    %v103 = vld [vmem:[#allocation6 + $0x198] sm:$0xff]
    %v104 = vld [vmem:[#allocation6 + $0x1a0] sm:$0xff]
    %v105 = vld [vmem:[#allocation6 + $0x1a8] sm:$0xff]
    %v106 = vld [vmem:[#allocation6 + $0x1b0] sm:$0xff]
    %v107 = vld [vmem:[#allocation6 + $0x1b8] sm:$0xff]
    %v108 = vld [vmem:[#allocation6 + $0x1c0] sm:$0xff]
    %v109 = vld [vmem:[#allocation6 + $0x1c8] sm:$0xff]
    %v110 = vld [vmem:[#allocation6 + $0x1d0] sm:$0xff]
    %v111 = vld [vmem:[#allocation6 + $0x1d8] sm:$0xff]
    %v112 = vld [vmem:[#allocation6 + $0x1e0] sm:$0xff]
    %v113 = vld [vmem:[#allocation6 + $0x1e8] sm:$0xff]
    %v114 = vld [vmem:[#allocation6 + $0x1f0] sm:$0xff]
    %v115 = vld [vmem:[#allocation6 + $0x1f8] sm:$0xff]
    %v116 = vld [vmem:[#allocation6 + $0x200] sm:$0xff]
    %v117 = vld [vmem:[#allocation6 + $0x208] sm:$0xff]
    %v118 = vld [vmem:[#allocation6 + $0x210] sm:$0xff]
    %v119 = vld [vmem:[#allocation6 + $0x218] sm:$0xff]
    %v120 = vld [vmem:[#allocation6 + $0x220] sm:$0xff]
    %v121 = vld [vmem:[#allocation6 + $0x228] sm:$0xff]
    %v122 = vld [vmem:[#allocation6 + $0x230] sm:$0xff]
    %v123 = vld [vmem:[#allocation6 + $0x238] sm:$0xff]
    %v124 = vld [vmem:[#allocation6 + $0x240] sm:$0xff]
    %v125 = vld [vmem:[#allocation6 + $0x248] sm:$0xff]
    %v126 = vld [vmem:[#allocation6 + $0x250] sm:$0xff]
    %v127 = vld [vmem:[#allocation6 + $0x258] sm:$0xff]
    %v128 = vld [vmem:[#allocation6 + $0x260] sm:$0xff]
    %v129 = vld [vmem:[#allocation6 + $0x268] sm:$0xff]
    %v130 = vld [vmem:[#allocation6 + $0x270] sm:$0xff]
    %v131 = vld [vmem:[#allocation6 + $0x278] sm:$0xff]
    %v132 = vld [vmem:[#allocation6 + $0x280] sm:$0xff]
    %v133 = vld [vmem:[#allocation6 + $0x288] sm:$0xff]
    %v134 = vld [vmem:[#allocation6 + $0x290] sm:$0xff]
    %v135 = vld [vmem:[#allocation6 + $0x298] sm:$0xff]
    %v136 = vld [vmem:[#allocation6 + $0x2a0] sm:$0xff]
    %v137 = vld [vmem:[#allocation6 + $0x2a8] sm:$0xff]
    %v138 = vld [vmem:[#allocation6 + $0x2b0] sm:$0xff]
    %v139 = vld [vmem:[#allocation6 + $0x2b8] sm:$0xff]
    %v140 = vld [vmem:[#allocation6 + $0x2c0] sm:$0xff]
    %v141 = vld [vmem:[#allocation6 + $0x2c8] sm:$0xff]
    %v142 = vld [vmem:[#allocation6 + $0x2d0] sm:$0xff]
    %v143 = vld [vmem:[#allocation6 + $0x2d8] sm:$0xff]
    %v144 = vld [vmem:[#allocation6 + $0x2e0] sm:$0xff]
    %v145 = vld [vmem:[#allocation6 + $0x2e8] sm:$0xff]
    %v146 = vld [vmem:[#allocation6 + $0x2f0] sm:$0xff]
    %v147 = vld [vmem:[#allocation6 + $0x2f8] sm:$0xff]
    %v148 = vld [vmem:[#allocation6 + $0x300] sm:$0xff]
    %v149 = vld [vmem:[#allocation6 + $0x308] sm:$0xff]
    %v150 = vld [vmem:[#allocation6 + $0x310] sm:$0xff]
    %v151 = vld [vmem:[#allocation6 + $0x318] sm:$0xff]
    %v152 = vld [vmem:[#allocation6 + $0x320] sm:$0xff]
    %v153 = vld [vmem:[#allocation6 + $0x328] sm:$0xff]
    %v154 = vld [vmem:[#allocation6 + $0x330] sm:$0xff]
    %v155 = vld [vmem:[#allocation6 + $0x338] sm:$0xff]
    %v156 = vld [vmem:[#allocation6 + $0x340] sm:$0xff]
    %v157 = vld [vmem:[#allocation6 + $0x348] sm:$0xff]
    %v158 = vld [vmem:[#allocation6 + $0x350] sm:$0xff]
    %v159 = vld [vmem:[#allocation6 + $0x358] sm:$0xff]
    %v160 = vld [vmem:[#allocation6 + $0x360] sm:$0xff]
    %v161 = vld [vmem:[#allocation6 + $0x368] sm:$0xff]
    %v162 = vld [vmem:[#allocation6 + $0x370] sm:$0xff]
    %v163 = vld [vmem:[#allocation6 + $0x378] sm:$0xff]
    %v164 = vld [vmem:[#allocation6 + $0x380] sm:$0xff]
    %v165 = vld [vmem:[#allocation6 + $0x388] sm:$0xff]
    %v166 = vld [vmem:[#allocation6 + $0x390] sm:$0xff]
    %v167 = vld [vmem:[#allocation6 + $0x398] sm:$0xff]
    %v168 = vld [vmem:[#allocation6 + $0x3a0] sm:$0xff]
    %v169 = vld [vmem:[#allocation6 + $0x3a8] sm:$0xff]
    %v170 = vld [vmem:[#allocation6 + $0x3b0] sm:$0xff]
    %v171 = vld [vmem:[#allocation6 + $0x3b8] sm:$0xff]
    %v172 = vld [vmem:[#allocation6 + $0x3c0] sm:$0xff]
    %v173 = vld [vmem:[#allocation6 + $0x3c8] sm:$0xff]
    %v174 = vld [vmem:[#allocation6 + $0x3d0] sm:$0xff]
    %v175 = vld [vmem:[#allocation6 + $0x3d8] sm:$0xff]
    %v176 = vld [vmem:[#allocation6 + $0x3e0] sm:$0xff]
    %v177 = vld [vmem:[#allocation6 + $0x3e8] sm:$0xff]
    %v178 = vld [vmem:[#allocation6 + $0x3f0] sm:$0xff]
    %v179 = vld [vmem:[#allocation6 + $0x3f8] sm:$0xff]
    %v180 = vld [vmem:[#allocation6 + $0x400] sm:$0xff]
    %v181 = vld [vmem:[#allocation6 + $0x408] sm:$0xff]
    %v182 = vld [vmem:[#allocation6 + $0x410] sm:$0xff]
    %v183 = vld [vmem:[#allocation6 + $0x418] sm:$0xff]
    %v184 = vld [vmem:[#allocation6 + $0x420] sm:$0xff]
    %v185 = vld [vmem:[#allocation6 + $0x428] sm:$0xff]
    %v186 = vld [vmem:[#allocation6 + $0x430] sm:$0xff]
    %v187 = vld [vmem:[#allocation6 + $0x438] sm:$0xff]
    %v188 = vld [vmem:[#allocation6 + $0x440] sm:$0xff]
    %v189 = vld [vmem:[#allocation6 + $0x448] sm:$0xff]
    %v190 = vld [vmem:[#allocation6 + $0x450] sm:$0xff]
    %v191 = vld [vmem:[#allocation6 + $0x458] sm:$0xff]
    %v192 = vld [vmem:[#allocation6 + $0x460] sm:$0xff]
    %v193 = vld [vmem:[#allocation6 + $0x468] sm:$0xff]
    %v194 = vld [vmem:[#allocation6 + $0x470] sm:$0xff]
    %v195 = vld [vmem:[#allocation6 + $0x478] sm:$0xff]
    %v196 = vld [vmem:[#allocation6 + $0x480] sm:$0xff]
    %v197 = vld [vmem:[#allocation6 + $0x488] sm:$0xff]
    %v198 = vld [vmem:[#allocation6 + $0x490] sm:$0xff]
    %v199 = vld [vmem:[#allocation6 + $0x498] sm:$0xff]
    %v200 = vld [vmem:[#allocation6 + $0x4a0] sm:$0xff]
    %v201 = vld [vmem:[#allocation6 + $0x4a8] sm:$0xff]
    %v202 = vld [vmem:[#allocation6 + $0x4b0] sm:$0xff]
    %v203 = vld [vmem:[#allocation6 + $0x4b8] sm:$0xff]
    %v204 = vld [vmem:[#allocation6 + $0x4c0] sm:$0xff]
    %v205 = vld [vmem:[#allocation6 + $0x4c8] sm:$0xff]
    %v206 = vld [vmem:[#allocation6 + $0x4d0] sm:$0xff]
    %v207 = vld [vmem:[#allocation6 + $0x4d8] sm:$0xff]
    %v208 = vld [vmem:[#allocation6 + $0x4e0] sm:$0xff]
    %v209 = vld [vmem:[#allocation6 + $0x4e8] sm:$0xff]
    %v210 = vld [vmem:[#allocation6 + $0x4f0] sm:$0xff]
    %v211 = vld [vmem:[#allocation6 + $0x4f8] sm:$0xff]
    %s212 = sld [smem:[#allocation2]]
    %v213 = vstv %s212
    %214 = vmatprep.subr.mxu0 0.0
    %v215 = vand.u32 %v52, 4294901760
    %216 = vmatpush1.msra.mxu0 %v215
    %217 = vmatprep.subr.mxu0 0.0
    %v218 = vand.u32 %v53, 4294901760
    %219 = vmatpush1.msra.mxu0 %v218
    %220 = vmatprep.subr.mxu0 0.0
    %v221 = vand.u32 %v54, 4294901760
    %222 = vmatpush1.msra.mxu0 %v221
    %223 = vmatprep.subr.mxu0 0.0
    %v224 = vand.u32 %v55, 4294901760
    %225 = vmatpush1.msra.mxu0 %v224
    %226 = vmatprep.subr.mxu0 0.0
    %v227 = vand.u32 %v56, 4294901760
    %228 = vmatpush1.msra.mxu0 %v227
    %229 = vmatprep.subr.mxu0 0.0
    %v230 = vand.u32 %v57, 4294901760
    %231 = vmatpush1.msra.mxu0 %v230
    %232 = vmatprep.subr.mxu0 0.0
    %v233 = vand.u32 %v58, 4294901760
    %234 = vmatpush1.msra.mxu0 %v233
    %235 = vmatprep.subr.mxu0 0.0
    %v236 = vand.u32 %v59, 4294901760
    %237 = vmatpush1.msra.mxu0 %v236
    %238 = vmatprep.subr.mxu0 0.0
    %v239 = vand.u32 %v60, 4294901760
    %240 = vmatpush1.msra.mxu0 %v239
    %241 = vmatprep.subr.mxu0 0.0
    %v242 = vand.u32 %v61, 4294901760
    %243 = vmatpush1.msra.mxu0 %v242
    %244 = vmatprep.subr.mxu0 0.0
    %v245 = vand.u32 %v62, 4294901760
    %246 = vmatpush1.msra.mxu0 %v245
    %247 = vmatprep.subr.mxu0 0.0
    %v248 = vand.u32 %v63, 4294901760
    %249 = vmatpush1.msra.mxu0 %v248
    %250 = vmatprep.subr.mxu0 0.0
    %v251 = vand.u32 %v64, 4294901760
    %252 = vmatpush1.msra.mxu0 %v251
    %253 = vmatprep.subr.mxu0 0.0
    %v254 = vand.u32 %v65, 4294901760
    %255 = vmatpush1.msra.mxu0 %v254
    %256 = vmatprep.subr.mxu0 0.0
    %v257 = vand.u32 %v66, 4294901760
    %258 = vmatpush1.msra.mxu0 %v257
    %259 = vmatprep.subr.mxu0 0.0
    %v260 = vand.u32 %v67, 4294901760
    %261 = vmatpush1.msra.mxu0 %v260
    %262 = vmatprep.subr.mxu0 0.0
    %v263 = vand.u32 %v68, 4294901760
    %264 = vmatpush1.msra.mxu0 %v263
    %265 = vmatprep.subr.mxu0 0.0
    %v266 = vand.u32 %v69, 4294901760
    %267 = vmatpush1.msra.mxu0 %v266
    %268 = vmatprep.subr.mxu0 0.0
    %v269 = vand.u32 %v70, 4294901760
    %270 = vmatpush1.msra.mxu0 %v269
    %271 = vmatprep.subr.mxu0 0.0
    %v272 = vand.u32 %v71, 4294901760
    %273 = vmatpush1.msra.mxu0 %v272
    %274 = vmatprep.subr.mxu0 0.0
    %v275 = vand.u32 %v72, 4294901760
    %276 = vmatpush1.msra.mxu0 %v275
    %277 = vmatprep.subr.mxu0 0.0
    %v278 = vand.u32 %v73, 4294901760
    %279 = vmatpush1.msra.mxu0 %v278
    %280 = vmatprep.subr.mxu0 0.0
    %v281 = vand.u32 %v74, 4294901760
    %282 = vmatpush1.msra.mxu0 %v281
    %283 = vmatprep.subr.mxu0 0.0
    %v284 = vand.u32 %v75, 4294901760
    %285 = vmatpush1.msra.mxu0 %v284
    %286 = vmatprep.subr.mxu0 0.0
    %v287 = vand.u32 %v76, 4294901760
    %288 = vmatpush1.msra.mxu0 %v287
    %289 = vmatprep.subr.mxu0 0.0
    %v290 = vand.u32 %v77, 4294901760
    %291 = vmatpush1.msra.mxu0 %v290
    %292 = vmatprep.subr.mxu0 0.0
    %v293 = vand.u32 %v78, 4294901760
    %294 = vmatpush1.msra.mxu0 %v293
    %295 = vmatprep.subr.mxu0 0.0
    %v296 = vand.u32 %v79, 4294901760
    %297 = vmatpush1.msra.mxu0 %v296
    %298 = vmatprep.subr.mxu0 0.0
    %v299 = vand.u32 %v80, 4294901760
    %300 = vmatpush1.msra.mxu0 %v299
    %301 = vmatprep.subr.mxu0 0.0
    %v302 = vand.u32 %v81, 4294901760
    %303 = vmatpush1.msra.mxu0 %v302
    %304 = vmatprep.subr.mxu0 0.0
    %v305 = vand.u32 %v82, 4294901760
    %306 = vmatpush1.msra.mxu0 %v305
    %307 = vmatprep.subr.mxu0 0.0
    %v308 = vand.u32 %v83, 4294901760
    %309 = vmatpush1.msra.mxu0 %v308
    %v310 = vand.u32 %v43, 4294901760
    %v311 = vsub.f32 %v43, %v310
    %v312 = vand.u32 %v311, 4294901760
    %v313 = vsub.f32 %v311, %v312
    %v314 = vand.u32 %v313, 4294901760
    %315 = vmatprep.mubr.f32.mxu0 %v314
    %v316 = vand.u32 %v42, 4294901760
    %v317 = vsub.f32 %v42, %v316
    %v318 = vand.u32 %v317, 4294901760
    %v319 = vsub.f32 %v317, %v318
    %v320 = vand.u32 %v319, 4294901760
    %321 = vmatmul.mubr.f32.gmra.mrb[0].mxu0 %v320
    %v322 = vpop.f32.mrb[0].mxu0
    %v323 = vadd.f32 %v213, %v322
    %v324 = vpop.f32.mrb[0].mxu0
    %325 = vdwg.mxu0
    %326 = vmatprep.subr.mxu0 0.0
    %v327 = vand.u32 %v52, 4294901760
    %v328 = vsub.f32 %v52, %v327
    %v329 = vand.u32 %v328, 4294901760
    %v330 = vsub.f32 %v328, %v329
    %v331 = vand.u32 %v330, 4294901760
    %332 = vmatpush1.msra.mxu0 %v331
    %333 = vmatprep.subr.mxu0 0.0
    %v334 = vand.u32 %v53, 4294901760
    %v335 = vsub.f32 %v53, %v334
    %v336 = vand.u32 %v335, 4294901760
    %v337 = vsub.f32 %v335, %v336
    %v338 = vand.u32 %v337, 4294901760
    %339 = vmatpush1.msra.mxu0 %v338
    %340 = vmatprep.subr.mxu0 0.0
    %v341 = vand.u32 %v54, 4294901760
    %v342 = vsub.f32 %v54, %v341
    %v343 = vand.u32 %v342, 4294901760
    %v344 = vsub.f32 %v342, %v343
    %v345 = vand.u32 %v344, 4294901760
    %346 = vmatpush1.msra.mxu0 %v345
    %347 = vmatprep.subr.mxu0 0.0
    %v348 = vand.u32 %v55, 4294901760
    %v349 = vsub.f32 %v55, %v348
    %v350 = vand.u32 %v349, 4294901760
    %v351 = vsub.f32 %v349, %v350
    %v352 = vand.u32 %v351, 4294901760
    %353 = vmatpush1.msra.mxu0 %v352
    %354 = vmatprep.subr.mxu0 0.0
    %v355 = vand.u32 %v56, 4294901760
    %v356 = vsub.f32 %v56, %v355
    %v357 = vand.u32 %v356, 4294901760
    %v358 = vsub.f32 %v356, %v357
    %v359 = vand.u32 %v358, 4294901760
    %360 = vmatpush1.msra.mxu0 %v359
    %361 = vmatprep.subr.mxu0 0.0
    %v362 = vand.u32 %v57, 4294901760
    %v363 = vsub.f32 %v57, %v362
    %v364 = vand.u32 %v363, 4294901760
    %v365 = vsub.f32 %v363, %v364
    %v366 = vand.u32 %v365, 4294901760
    %367 = vmatpush1.msra.mxu0 %v366
    %368 = vmatprep.subr.mxu0 0.0
    %v369 = vand.u32 %v58, 4294901760
    %v370 = vsub.f32 %v58, %v369
    %v371 = vand.u32 %v370, 4294901760
    %v372 = vsub.f32 %v370, %v371
    %v373 = vand.u32 %v372, 4294901760
    %374 = vmatpush1.msra.mxu0 %v373
    %375 = vmatprep.subr.mxu0 0.0
    %v376 = vand.u32 %v59, 4294901760
    %v377 = vsub.f32 %v59, %v376
    %v378 = vand.u32 %v377, 4294901760
    %v379 = vsub.f32 %v377, %v378
    %v380 = vand.u32 %v379, 4294901760
    %381 = vmatpush1.msra.mxu0 %v380
    %382 = vmatprep.subr.mxu0 0.0
    %v383 = vand.u32 %v60, 4294901760
    %v384 = vsub.f32 %v60, %v383
    %v385 = vand.u32 %v384, 4294901760
    %v386 = vsub.f32 %v384, %v385
    %v387 = vand.u32 %v386, 4294901760
    %388 = vmatpush1.msra.mxu0 %v387
    %389 = vmatprep.subr.mxu0 0.0
    %v390 = vand.u32 %v61, 4294901760
    %v391 = vsub.f32 %v61, %v390
    %v392 = vand.u32 %v391, 4294901760
    %v393 = vsub.f32 %v391, %v392
    %v394 = vand.u32 %v393, 4294901760
    %395 = vmatpush1.msra.mxu0 %v394
    %396 = vmatprep.subr.mxu0 0.0
    %v397 = vand.u32 %v62, 4294901760
    %v398 = vsub.f32 %v62, %v397
    %v399 = vand.u32 %v398, 4294901760
    %v400 = vsub.f32 %v398, %v399
    %v401 = vand.u32 %v400, 4294901760
    %402 = vmatpush1.msra.mxu0 %v401
    %403 = vmatprep.subr.mxu0 0.0
    %v404 = vand.u32 %v63, 4294901760
    %v405 = vsub.f32 %v63, %v404
    %v406 = vand.u32 %v405, 4294901760
    %v407 = vsub.f32 %v405, %v406
    %v408 = vand.u32 %v407, 4294901760
    %409 = vmatpush1.msra.mxu0 %v408
    %410 = vmatprep.subr.mxu0 0.0
    %v411 = vand.u32 %v64, 4294901760
    %v412 = vsub.f32 %v64, %v411
    %v413 = vand.u32 %v412, 4294901760
    %v414 = vsub.f32 %v412, %v413
    %v415 = vand.u32 %v414, 4294901760
    %416 = vmatpush1.msra.mxu0 %v415
    %417 = vmatprep.subr.mxu0 0.0
    %v418 = vand.u32 %v65, 4294901760
    %v419 = vsub.f32 %v65, %v418
    %v420 = vand.u32 %v419, 4294901760
    %v421 = vsub.f32 %v419, %v420
    %v422 = vand.u32 %v421, 4294901760
    %423 = vmatpush1.msra.mxu0 %v422
    %424 = vmatprep.subr.mxu0 0.0
    %v425 = vand.u32 %v66, 4294901760
    %v426 = vsub.f32 %v66, %v425
    %v427 = vand.u32 %v426, 4294901760
    %v428 = vsub.f32 %v426, %v427
    %v429 = vand.u32 %v428, 4294901760
    %430 = vmatpush1.msra.mxu0 %v429
    %431 = vmatprep.subr.mxu0 0.0
    %v432 = vand.u32 %v67, 4294901760
    %v433 = vsub.f32 %v67, %v432
    %v434 = vand.u32 %v433, 4294901760
    %v435 = vsub.f32 %v433, %v434
    %v436 = vand.u32 %v435, 4294901760
    %437 = vmatpush1.msra.mxu0 %v436
    %438 = vmatprep.subr.mxu0 0.0
    %v439 = vand.u32 %v68, 4294901760
    %v440 = vsub.f32 %v68, %v439
    %v441 = vand.u32 %v440, 4294901760
    %v442 = vsub.f32 %v440, %v441
    %v443 = vand.u32 %v442, 4294901760
    %444 = vmatpush1.msra.mxu0 %v443
    %445 = vmatprep.subr.mxu0 0.0
    %v446 = vand.u32 %v69, 4294901760
    %v447 = vsub.f32 %v69, %v446
    %v448 = vand.u32 %v447, 4294901760
    %v449 = vsub.f32 %v447, %v448
    %v450 = vand.u32 %v449, 4294901760
    %451 = vmatpush1.msra.mxu0 %v450
    %452 = vmatprep.subr.mxu0 0.0
    %v453 = vand.u32 %v70, 4294901760
    %v454 = vsub.f32 %v70, %v453
    %v455 = vand.u32 %v454, 4294901760
    %v456 = vsub.f32 %v454, %v455
    %v457 = vand.u32 %v456, 4294901760
    %458 = vmatpush1.msra.mxu0 %v457
    %459 = vmatprep.subr.mxu0 0.0
    %v460 = vand.u32 %v71, 4294901760
    %v461 = vsub.f32 %v71, %v460
    %v462 = vand.u32 %v461, 4294901760
    %v463 = vsub.f32 %v461, %v462
    %v464 = vand.u32 %v463, 4294901760
    %465 = vmatpush1.msra.mxu0 %v464
    %466 = vmatprep.subr.mxu0 0.0
    %v467 = vand.u32 %v72, 4294901760
    %v468 = vsub.f32 %v72, %v467
    %v469 = vand.u32 %v468, 4294901760
    %v470 = vsub.f32 %v468, %v469
    %v471 = vand.u32 %v470, 4294901760
    %472 = vmatpush1.msra.mxu0 %v471
    %473 = vmatprep.subr.mxu0 0.0
    %v474 = vand.u32 %v73, 4294901760
    %v475 = vsub.f32 %v73, %v474
    %v476 = vand.u32 %v475, 4294901760
    %v477 = vsub.f32 %v475, %v476
    %v478 = vand.u32 %v477, 4294901760
    %479 = vmatpush1.msra.mxu0 %v478
    %480 = vmatprep.subr.mxu0 0.0
    %v481 = vand.u32 %v74, 4294901760
    %v482 = vsub.f32 %v74, %v481
    %v483 = vand.u32 %v482, 4294901760
    %v484 = vsub.f32 %v482, %v483
    %v485 = vand.u32 %v484, 4294901760
    %486 = vmatpush1.msra.mxu0 %v485
    %487 = vmatprep.subr.mxu0 0.0
    %v488 = vand.u32 %v75, 4294901760
    %v489 = vsub.f32 %v75, %v488
    %v490 = vand.u32 %v489, 4294901760
    %v491 = vsub.f32 %v489, %v490
    %v492 = vand.u32 %v491, 4294901760
    %493 = vmatpush1.msra.mxu0 %v492
    %494 = vmatprep.subr.mxu0 0.0
    %v495 = vand.u32 %v76, 4294901760
    %v496 = vsub.f32 %v76, %v495
    %v497 = vand.u32 %v496, 4294901760
    %v498 = vsub.f32 %v496, %v497
    %v499 = vand.u32 %v498, 4294901760
    %500 = vmatpush1.msra.mxu0 %v499
    %501 = vmatprep.subr.mxu0 0.0
    %v502 = vand.u32 %v77, 4294901760
    %v503 = vsub.f32 %v77, %v502
    %v504 = vand.u32 %v503, 4294901760
    %v505 = vsub.f32 %v503, %v504
    %v506 = vand.u32 %v505, 4294901760
    %507 = vmatpush1.msra.mxu0 %v506
    %508 = vmatprep.subr.mxu0 0.0
    %v509 = vand.u32 %v78, 4294901760
    %v510 = vsub.f32 %v78, %v509
    %v511 = vand.u32 %v510, 4294901760
    %v512 = vsub.f32 %v510, %v511
    %v513 = vand.u32 %v512, 4294901760
    %514 = vmatpush1.msra.mxu0 %v513
    %515 = vmatprep.subr.mxu0 0.0
    %v516 = vand.u32 %v79, 4294901760
    %v517 = vsub.f32 %v79, %v516
    %v518 = vand.u32 %v517, 4294901760
    %v519 = vsub.f32 %v517, %v518
    %v520 = vand.u32 %v519, 4294901760
    %521 = vmatpush1.msra.mxu0 %v520
    %522 = vmatprep.subr.mxu0 0.0
    %v523 = vand.u32 %v80, 4294901760
    %v524 = vsub.f32 %v80, %v523
    %v525 = vand.u32 %v524, 4294901760
    %v526 = vsub.f32 %v524, %v525
    %v527 = vand.u32 %v526, 4294901760
    %528 = vmatpush1.msra.mxu0 %v527
    %529 = vmatprep.subr.mxu0 0.0
    %v530 = vand.u32 %v81, 4294901760
    %v531 = vsub.f32 %v81, %v530
    %v532 = vand.u32 %v531, 4294901760
    %v533 = vsub.f32 %v531, %v532
    %v534 = vand.u32 %v533, 4294901760
    %535 = vmatpush1.msra.mxu0 %v534
    %536 = vmatprep.subr.mxu0 0.0
    %v537 = vand.u32 %v82, 4294901760
    %v538 = vsub.f32 %v82, %v537
    %v539 = vand.u32 %v538, 4294901760
    %v540 = vsub.f32 %v538, %v539
    %v541 = vand.u32 %v540, 4294901760
    %542 = vmatpush1.msra.mxu0 %v541
    %543 = vmatprep.subr.mxu0 0.0
    %v544 = vand.u32 %v83, 4294901760
    %v545 = vsub.f32 %v83, %v544
    %v546 = vand.u32 %v545, 4294901760
    %v547 = vsub.f32 %v545, %v546
    %v548 = vand.u32 %v547, 4294901760
    %549 = vmatpush1.msra.mxu0 %v548
    %v550 = vand.u32 %v43, 4294901760
    %551 = vmatprep.mubr.f32.mxu0 %v550
    %v552 = vand.u32 %v42, 4294901760
    %553 = vmatmul.mubr.f32.gmra.mrb[0].mxu0 %v552
    %v554 = vpop.f32.mrb[0].mxu0
    %v555 = vadd.f32 %v323, %v554
    %v556 = vpop.f32.mrb[0].mxu0
    %557 = vdwg.mxu0
    %558 = vmatprep.subr.mxu0 0.0
    %v559 = vand.u32 %v52, 4294901760
    %v560 = vsub.f32 %v52, %v559
    %561 = vmatpush1.msra.mxu0 %v560
    %562 = vmatprep.subr.mxu0 0.0
    %v563 = vand.u32 %v53, 4294901760
    %v564 = vsub.f32 %v53, %v563
    %565 = vmatpush1.msra.mxu0 %v564
    %566 = vmatprep.subr.mxu0 0.0
    %v567 = vand.u32 %v54, 4294901760
    %v568 = vsub.f32 %v54, %v567
    %569 = vmatpush1.msra.mxu0 %v568
    %570 = vmatprep.subr.mxu0 0.0
    %v571 = vand.u32 %v55, 4294901760
    %v572 = vsub.f32 %v55, %v571
    %573 = vmatpush1.msra.mxu0 %v572
    %574 = vmatprep.subr.mxu0 0.0
    %v575 = vand.u32 %v56, 4294901760
    %v576 = vsub.f32 %v56, %v575
    %577 = vmatpush1.msra.mxu0 %v576
    %578 = vmatprep.subr.mxu0 0.0
    %v579 = vand.u32 %v57, 4294901760
    %v580 = vsub.f32 %v57, %v579
    %581 = vmatpush1.msra.mxu0 %v580
    %582 = vmatprep.subr.mxu0 0.0
    %v583 = vand.u32 %v58, 4294901760
    %v584 = vsub.f32 %v58, %v583
    %585 = vmatpush1.msra.mxu0 %v584
    %586 = vmatprep.subr.mxu0 0.0
    %v587 = vand.u32 %v59, 4294901760
    %v588 = vsub.f32 %v59, %v587
    %589 = vmatpush1.msra.mxu0 %v588
    %590 = vmatprep.subr.mxu0 0.0
    %v591 = vand.u32 %v60, 4294901760
    %v592 = vsub.f32 %v60, %v591
    %593 = vmatpush1.msra.mxu0 %v592
    %594 = vmatprep.subr.mxu0 0.0
    %v595 = vand.u32 %v61, 4294901760
    %v596 = vsub.f32 %v61, %v595
    %597 = vmatpush1.msra.mxu0 %v596
    %598 = vmatprep.subr.mxu0 0.0
    %v599 = vand.u32 %v62, 4294901760
    %v600 = vsub.f32 %v62, %v599
    %601 = vmatpush1.msra.mxu0 %v600
    %602 = vmatprep.subr.mxu0 0.0
    %v603 = vand.u32 %v63, 4294901760
    %v604 = vsub.f32 %v63, %v603
    %605 = vmatpush1.msra.mxu0 %v604
    %606 = vmatprep.subr.mxu0 0.0
    %v607 = vand.u32 %v64, 4294901760
    %v608 = vsub.f32 %v64, %v607
    %609 = vmatpush1.msra.mxu0 %v608
    %610 = vmatprep.subr.mxu0 0.0
    %v611 = vand.u32 %v65, 4294901760
    %v612 = vsub.f32 %v65, %v611
    %613 = vmatpush1.msra.mxu0 %v612
    %614 = vmatprep.subr.mxu0 0.0
    %v615 = vand.u32 %v66, 4294901760
    %v616 = vsub.f32 %v66, %v615
    %617 = vmatpush1.msra.mxu0 %v616
    %618 = vmatprep.subr.mxu0 0.0
    %v619 = vand.u32 %v67, 4294901760
    %v620 = vsub.f32 %v67, %v619
    %621 = vmatpush1.msra.mxu0 %v620
    %622 = vmatprep.subr.mxu0 0.0
    %v623 = vand.u32 %v68, 4294901760
    %v624 = vsub.f32 %v68, %v623
    %625 = vmatpush1.msra.mxu0 %v624
    %626 = vmatprep.subr.mxu0 0.0
    %v627 = vand.u32 %v69, 4294901760
    %v628 = vsub.f32 %v69, %v627
    %629 = vmatpush1.msra.mxu0 %v628
    %630 = vmatprep.subr.mxu0 0.0
    %v631 = vand.u32 %v70, 4294901760
    %v632 = vsub.f32 %v70, %v631
    %633 = vmatpush1.msra.mxu0 %v632
    %634 = vmatprep.subr.mxu0 0.0
    %v635 = vand.u32 %v71, 4294901760
    %v636 = vsub.f32 %v71, %v635
    %637 = vmatpush1.msra.mxu0 %v636
    %638 = vmatprep.subr.mxu0 0.0
    %v639 = vand.u32 %v72, 4294901760
    %v640 = vsub.f32 %v72, %v639
    %641 = vmatpush1.msra.mxu0 %v640
    %642 = vmatprep.subr.mxu0 0.0
    %v643 = vand.u32 %v73, 4294901760
    %v644 = vsub.f32 %v73, %v643
    %645 = vmatpush1.msra.mxu0 %v644
    %646 = vmatprep.subr.mxu0 0.0
    %v647 = vand.u32 %v74, 4294901760
    %v648 = vsub.f32 %v74, %v647
    %649 = vmatpush1.msra.mxu0 %v648
    %650 = vmatprep.subr.mxu0 0.0
    %v651 = vand.u32 %v75, 4294901760
    %v652 = vsub.f32 %v75, %v651
    %653 = vmatpush1.msra.mxu0 %v652
    %654 = vmatprep.subr.mxu0 0.0
    %v655 = vand.u32 %v76, 4294901760
    %v656 = vsub.f32 %v76, %v655
    %657 = vmatpush1.msra.mxu0 %v656
    %658 = vmatprep.subr.mxu0 0.0
    %v659 = vand.u32 %v77, 4294901760
    %v660 = vsub.f32 %v77, %v659
    %661 = vmatpush1.msra.mxu0 %v660
    %662 = vmatprep.subr.mxu0 0.0
    %v663 = vand.u32 %v78, 4294901760
    %v664 = vsub.f32 %v78, %v663
    %665 = vmatpush1.msra.mxu0 %v664
    %666 = vmatprep.subr.mxu0 0.0
    %v667 = vand.u32 %v79, 4294901760
    %v668 = vsub.f32 %v79, %v667
    %669 = vmatpush1.msra.mxu0 %v668
    %670 = vmatprep.subr.mxu0 0.0
    %v671 = vand.u32 %v80, 4294901760
    %v672 = vsub.f32 %v80, %v671
    %673 = vmatpush1.msra.mxu0 %v672
    %674 = vmatprep.subr.mxu0 0.0
    %v675 = vand.u32 %v81, 4294901760
    %v676 = vsub.f32 %v81, %v675
    %677 = vmatpush1.msra.mxu0 %v676
    %678 = vmatprep.subr.mxu0 0.0
    %v679 = vand.u32 %v82, 4294901760
    %v680 = vsub.f32 %v82, %v679
    %681 = vmatpush1.msra.mxu0 %v680
    %682 = vmatprep.subr.mxu0 0.0
    %v683 = vand.u32 %v83, 4294901760
    %v684 = vsub.f32 %v83, %v683
    %685 = vmatpush1.msra.mxu0 %v684
    %v686 = vand.u32 %v43, 4294901760
    %v687 = vsub.f32 %v43, %v686
    %688 = vmatprep.mubr.f32.mxu0 %v687
    %v689 = vand.u32 %v42, 4294901760
    %v690 = vsub.f32 %v42, %v689
    %691 = vmatmul.mubr.f32.gmra.mrb[0].mxu0 %v690
    %v692 = vpop.f32.mrb[0].mxu0
    %v693 = vadd.f32 %v555, %v692
    %v694 = vpop.f32.mrb[0].mxu0
    %695 = vdwg.mxu0
    %696 = vmatprep.subr.mxu0 0.0
    %v697 = vand.u32 %v52, 4294901760
    %698 = vmatpush1.msra.mxu0 %v697
    %699 = vmatprep.subr.mxu0 0.0
    %v700 = vand.u32 %v53, 4294901760
    %701 = vmatpush1.msra.mxu0 %v700
    %702 = vmatprep.subr.mxu0 0.0
    %v703 = vand.u32 %v54, 4294901760
    %704 = vmatpush1.msra.mxu0 %v703
    %705 = vmatprep.subr.mxu0 0.0
    %v706 = vand.u32 %v55, 4294901760
    %707 = vmatpush1.msra.mxu0 %v706
    %708 = vmatprep.subr.mxu0 0.0
    %v709 = vand.u32 %v56, 4294901760
    %710 = vmatpush1.msra.mxu0 %v709
    %711 = vmatprep.subr.mxu0 0.0
    %v712 = vand.u32 %v57, 4294901760
    %713 = vmatpush1.msra.mxu0 %v712
    %714 = vmatprep.subr.mxu0 0.0
    %v715 = vand.u32 %v58, 4294901760
    %716 = vmatpush1.msra.mxu0 %v715
    %717 = vmatprep.subr.mxu0 0.0
    %v718 = vand.u32 %v59, 4294901760
    %719 = vmatpush1.msra.mxu0 %v718
    %720 = vmatprep.subr.mxu0 0.0
    %v721 = vand.u32 %v60, 4294901760
    %722 = vmatpush1.msra.mxu0 %v721
    %723 = vmatprep.subr.mxu0 0.0
    %v724 = vand.u32 %v61, 4294901760
    %725 = vmatpush1.msra.mxu0 %v724
    %726 = vmatprep.subr.mxu0 0.0
    %v727 = vand.u32 %v62, 4294901760
    %728 = vmatpush1.msra.mxu0 %v727
    %729 = vmatprep.subr.mxu0 0.0
    %v730 = vand.u32 %v63, 4294901760
    %731 = vmatpush1.msra.mxu0 %v730
    %732 = vmatprep.subr.mxu0 0.0
    %v733 = vand.u32 %v64, 4294901760
    %734 = vmatpush1.msra.mxu0 %v733
    %735 = vmatprep.subr.mxu0 0.0
    %v736 = vand.u32 %v65, 4294901760
    %737 = vmatpush1.msra.mxu0 %v736
    %738 = vmatprep.subr.mxu0 0.0
    %v739 = vand.u32 %v66, 4294901760
    %740 = vmatpush1.msra.mxu0 %v739
    %741 = vmatprep.subr.mxu0 0.0
    %v742 = vand.u32 %v67, 4294901760
    %743 = vmatpush1.msra.mxu0 %v742
    %744 = vmatprep.subr.mxu0 0.0
    %v745 = vand.u32 %v68, 4294901760
    %746 = vmatpush1.msra.mxu0 %v745
    %747 = vmatprep.subr.mxu0 0.0
    %v748 = vand.u32 %v69, 4294901760
    %749 = vmatpush1.msra.mxu0 %v748
    %750 = vmatprep.subr.mxu0 0.0
    %v751 = vand.u32 %v70, 4294901760
    %752 = vmatpush1.msra.mxu0 %v751
    %753 = vmatprep.subr.mxu0 0.0
    %v754 = vand.u32 %v71, 4294901760
    %755 = vmatpush1.msra.mxu0 %v754
    %756 = vmatprep.subr.mxu0 0.0
    %v757 = vand.u32 %v72, 4294901760
    %758 = vmatpush1.msra.mxu0 %v757
    %759 = vmatprep.subr.mxu0 0.0
    %v760 = vand.u32 %v73, 4294901760
    %761 = vmatpush1.msra.mxu0 %v760
    %762 = vmatprep.subr.mxu0 0.0
    %v763 = vand.u32 %v74, 4294901760
    %764 = vmatpush1.msra.mxu0 %v763
    %765 = vmatprep.subr.mxu0 0.0
    %v766 = vand.u32 %v75, 4294901760
    %767 = vmatpush1.msra.mxu0 %v766
    %768 = vmatprep.subr.mxu0 0.0
    %v769 = vand.u32 %v76, 4294901760
    %770 = vmatpush1.msra.mxu0 %v769
    %771 = vmatprep.subr.mxu0 0.0
    %v772 = vand.u32 %v77, 4294901760
    %773 = vmatpush1.msra.mxu0 %v772
    %774 = vmatprep.subr.mxu0 0.0
    %v775 = vand.u32 %v78, 4294901760
    %776 = vmatpush1.msra.mxu0 %v775
    %777 = vmatprep.subr.mxu0 0.0
    %v778 = vand.u32 %v79, 4294901760
    %779 = vmatpush1.msra.mxu0 %v778
    %780 = vmatprep.subr.mxu0 0.0
    %v781 = vand.u32 %v80, 4294901760
    %782 = vmatpush1.msra.mxu0 %v781
    %783 = vmatprep.subr.mxu0 0.0
    %v784 = vand.u32 %v81, 4294901760
    %785 = vmatpush1.msra.mxu0 %v784
    %786 = vmatprep.subr.mxu0 0.0
    %v787 = vand.u32 %v82, 4294901760
    %788 = vmatpush1.msra.mxu0 %v787
    %789 = vmatprep.subr.mxu0 0.0
    %v790 = vand.u32 %v83, 4294901760
    %791 = vmatpush1.msra.mxu0 %v790
    %v792 = vand.u32 %v43, 4294901760
    %v793 = vsub.f32 %v43, %v792
    %v794 = vand.u32 %v793, 4294901760
    %795 = vmatprep.mubr.f32.mxu0 %v794
    %v796 = vand.u32 %v42, 4294901760
    %v797 = vsub.f32 %v42, %v796
    %v798 = vand.u32 %v797, 4294901760
    %799 = vmatmul.mubr.f32.gmra.mrb[0].mxu0 %v798
    %v800 = vpop.f32.mrb[0].mxu0
    %v801 = vadd.f32 %v693, %v800
    %v802 = vpop.f32.mrb[0].mxu0
    %803 = vdwg.mxu0
    %804 = vmatprep.subr.mxu0 0.0
    %v805 = vand.u32 %v52, 4294901760
    %v806 = vsub.f32 %v52, %v805
    %v807 = vand.u32 %v806, 4294901760
    %808 = vmatpush1.msra.mxu0 %v807
    %809 = vmatprep.subr.mxu0 0.0
    %v810 = vand.u32 %v53, 4294901760
    %v811 = vsub.f32 %v53, %v810
    %v812 = vand.u32 %v811, 4294901760
    %813 = vmatpush1.msra.mxu0 %v812
    %814 = vmatprep.subr.mxu0 0.0
    %v815 = vand.u32 %v54, 4294901760
    %v816 = vsub.f32 %v54, %v815
    %v817 = vand.u32 %v816, 4294901760
    %818 = vmatpush1.msra.mxu0 %v817
    %819 = vmatprep.subr.mxu0 0.0
    %v820 = vand.u32 %v55, 4294901760
    %v821 = vsub.f32 %v55, %v820
    %v822 = vand.u32 %v821, 4294901760
    %823 = vmatpush1.msra.mxu0 %v822
    %824 = vmatprep.subr.mxu0 0.0
    %v825 = vand.u32 %v56, 4294901760
    %v826 = vsub.f32 %v56, %v825
    %v827 = vand.u32 %v826, 4294901760
    %828 = vmatpush1.msra.mxu0 %v827
    %829 = vmatprep.subr.mxu0 0.0
    %v830 = vand.u32 %v57, 4294901760
    %v831 = vsub.f32 %v57, %v830
    %v832 = vand.u32 %v831, 4294901760
    %833 = vmatpush1.msra.mxu0 %v832
    %834 = vmatprep.subr.mxu0 0.0
    %v835 = vand.u32 %v58, 4294901760
    %v836 = vsub.f32 %v58, %v835
    %v837 = vand.u32 %v836, 4294901760
    %838 = vmatpush1.msra.mxu0 %v837
    %839 = vmatprep.subr.mxu0 0.0
    %v840 = vand.u32 %v59, 4294901760
    %v841 = vsub.f32 %v59, %v840
    %v842 = vand.u32 %v841, 4294901760
    %843 = vmatpush1.msra.mxu0 %v842
    %844 = vmatprep.subr.mxu0 0.0
    %v845 = vand.u32 %v60, 4294901760
    %v846 = vsub.f32 %v60, %v845
    %v847 = vand.u32 %v846, 4294901760
    %848 = vmatpush1.msra.mxu0 %v847
    %849 = vmatprep.subr.mxu0 0.0
    %v850 = vand.u32 %v61, 4294901760
    %v851 = vsub.f32 %v61, %v850
    %v852 = vand.u32 %v851, 4294901760
    %853 = vmatpush1.msra.mxu0 %v852
    %854 = vmatprep.subr.mxu0 0.0
    %v855 = vand.u32 %v62, 4294901760
    %v856 = vsub.f32 %v62, %v855
    %v857 = vand.u32 %v856, 4294901760
    %858 = vmatpush1.msra.mxu0 %v857
    %859 = vmatprep.subr.mxu0 0.0
    %v860 = vand.u32 %v63, 4294901760
    %v861 = vsub.f32 %v63, %v860
    %v862 = vand.u32 %v861, 4294901760
    %863 = vmatpush1.msra.mxu0 %v862
    %864 = vmatprep.subr.mxu0 0.0
    %v865 = vand.u32 %v64, 4294901760
    %v866 = vsub.f32 %v64, %v865
    %v867 = vand.u32 %v866, 4294901760
    %868 = vmatpush1.msra.mxu0 %v867
    %869 = vmatprep.subr.mxu0 0.0
    %v870 = vand.u32 %v65, 4294901760
    %v871 = vsub.f32 %v65, %v870
    %v872 = vand.u32 %v871, 4294901760
    %873 = vmatpush1.msra.mxu0 %v872
    %874 = vmatprep.subr.mxu0 0.0
    %v875 = vand.u32 %v66, 4294901760
    %v876 = vsub.f32 %v66, %v875
    %v877 = vand.u32 %v876, 4294901760
    %878 = vmatpush1.msra.mxu0 %v877
    %879 = vmatprep.subr.mxu0 0.0
    %v880 = vand.u32 %v67, 4294901760
    %v881 = vsub.f32 %v67, %v880
    %v882 = vand.u32 %v881, 4294901760
    %883 = vmatpush1.msra.mxu0 %v882
    %884 = vmatprep.subr.mxu0 0.0
    %v885 = vand.u32 %v68, 4294901760
    %v886 = vsub.f32 %v68, %v885
    %v887 = vand.u32 %v886, 4294901760
    %888 = vmatpush1.msra.mxu0 %v887
    %889 = vmatprep.subr.mxu0 0.0
    %v890 = vand.u32 %v69, 4294901760
    %v891 = vsub.f32 %v69, %v890
    %v892 = vand.u32 %v891, 4294901760
    %893 = vmatpush1.msra.mxu0 %v892
    %894 = vmatprep.subr.mxu0 0.0
    %v895 = vand.u32 %v70, 4294901760
    %v896 = vsub.f32 %v70, %v895
    %v897 = vand.u32 %v896, 4294901760
    %898 = vmatpush1.msra.mxu0 %v897
    %899 = vmatprep.subr.mxu0 0.0
    %v900 = vand.u32 %v71, 4294901760
    %v901 = vsub.f32 %v71, %v900
    %v902 = vand.u32 %v901, 4294901760
    %903 = vmatpush1.msra.mxu0 %v902
    %904 = vmatprep.subr.mxu0 0.0
    %v905 = vand.u32 %v72, 4294901760
    %v906 = vsub.f32 %v72, %v905
    %v907 = vand.u32 %v906, 4294901760
    %908 = vmatpush1.msra.mxu0 %v907
    %909 = vmatprep.subr.mxu0 0.0
    %v910 = vand.u32 %v73, 4294901760
    %v911 = vsub.f32 %v73, %v910
    %v912 = vand.u32 %v911, 4294901760
    %913 = vmatpush1.msra.mxu0 %v912
    %914 = vmatprep.subr.mxu0 0.0
    %v915 = vand.u32 %v74, 4294901760
    %v916 = vsub.f32 %v74, %v915
    %v917 = vand.u32 %v916, 4294901760
    %918 = vmatpush1.msra.mxu0 %v917
    %919 = vmatprep.subr.mxu0 0.0
    %v920 = vand.u32 %v75, 4294901760
    %v921 = vsub.f32 %v75, %v920
    %v922 = vand.u32 %v921, 4294901760
    %923 = vmatpush1.msra.mxu0 %v922
    %924 = vmatprep.subr.mxu0 0.0
    %v925 = vand.u32 %v76, 4294901760
    %v926 = vsub.f32 %v76, %v925
    %v927 = vand.u32 %v926, 4294901760
    %928 = vmatpush1.msra.mxu0 %v927
    %929 = vmatprep.subr.mxu0 0.0
    %v930 = vand.u32 %v77, 4294901760
    %v931 = vsub.f32 %v77, %v930
    %v932 = vand.u32 %v931, 4294901760
    %933 = vmatpush1.msra.mxu0 %v932
    %934 = vmatprep.subr.mxu0 0.0
    %v935 = vand.u32 %v78, 4294901760
    %v936 = vsub.f32 %v78, %v935
    %v937 = vand.u32 %v936, 4294901760
    %938 = vmatpush1.msra.mxu0 %v937
    %939 = vmatprep.subr.mxu0 0.0
    %v940 = vand.u32 %v79, 4294901760
    %v941 = vsub.f32 %v79, %v940
    %v942 = vand.u32 %v941, 4294901760
    %943 = vmatpush1.msra.mxu0 %v942
    %944 = vmatprep.subr.mxu0 0.0
    %v945 = vand.u32 %v80, 4294901760
    %v946 = vsub.f32 %v80, %v945
    %v947 = vand.u32 %v946, 4294901760
    %948 = vmatpush1.msra.mxu0 %v947
    %949 = vmatprep.subr.mxu0 0.0
    %v950 = vand.u32 %v81, 4294901760
    %v951 = vsub.f32 %v81, %v950
    %v952 = vand.u32 %v951, 4294901760
    %953 = vmatpush1.msra.mxu0 %v952
    %954 = vmatprep.subr.mxu0 0.0
    %v955 = vand.u32 %v82, 4294901760
    %v956 = vsub.f32 %v82, %v955
    %v957 = vand.u32 %v956, 4294901760
    %958 = vmatpush1.msra.mxu0 %v957
    %959 = vmatprep.subr.mxu0 0.0
    %v960 = vand.u32 %v83, 4294901760
    %v961 = vsub.f32 %v83, %v960
    %v962 = vand.u32 %v961, 4294901760
    %963 = vmatpush1.msra.mxu0 %v962
    %v964 = vand.u32 %v43, 4294901760
    %965 = vmatprep.mubr.f32.mxu0 %v964
    %v966 = vand.u32 %v42, 4294901760
    %967 = vmatmul.mubr.f32.gmra.mrb[0].mxu0 %v966
    %v968 = vpop.f32.mrb[0].mxu0
    %v969 = vadd.f32 %v801, %v968
    %v970 = vpop.f32.mrb[0].mxu0
    %971 = vdwg.mxu0
    %972 = vmatprep.subr.mxu0 0.0
    %v973 = vand.u32 %v52, 4294901760
    %974 = vmatpush1.msra.mxu0 %v973
    %975 = vmatprep.subr.mxu0 0.0
    %v976 = vand.u32 %v53, 4294901760
    %977 = vmatpush1.msra.mxu0 %v976
    %978 = vmatprep.subr.mxu0 0.0
    %v979 = vand.u32 %v54, 4294901760
    %980 = vmatpush1.msra.mxu0 %v979
    %981 = vmatprep.subr.mxu0 0.0
    %v982 = vand.u32 %v55, 4294901760
    %983 = vmatpush1.msra.mxu0 %v982
    %984 = vmatprep.subr.mxu0 0.0
    %v985 = vand.u32 %v56, 4294901760
    %986 = vmatpush1.msra.mxu0 %v985
    %987 = vmatprep.subr.mxu0 0.0
    %v988 = vand.u32 %v57, 4294901760
    %989 = vmatpush1.msra.mxu0 %v988
    %990 = vmatprep.subr.mxu0 0.0
    %v991 = vand.u32 %v58, 4294901760
    %992 = vmatpush1.msra.mxu0 %v991
    %993 = vmatprep.subr.mxu0 0.0
    %v994 = vand.u32 %v59, 4294901760
    %995 = vmatpush1.msra.mxu0 %v994
    %996 = vmatprep.subr.mxu0 0.0
    %v997 = vand.u32 %v60, 4294901760
    %998 = vmatpush1.msra.mxu0 %v997
    %999 = vmatprep.subr.mxu0 0.0
    %v1000 = vand.u32 %v61, 4294901760
    %1001 = vmatpush1.msra.mxu0 %v1000
    %1002 = vmatprep.subr.mxu0 0.0
    %v1003 = vand.u32 %v62, 4294901760
    %1004 = vmatpush1.msra.mxu0 %v1003
    %1005 = vmatprep.subr.mxu0 0.0
    %v1006 = vand.u32 %v63, 4294901760
    %1007 = vmatpush1.msra.mxu0 %v1006
    %1008 = vmatprep.subr.mxu0 0.0
    %v1009 = vand.u32 %v64, 4294901760
    %1010 = vmatpush1.msra.mxu0 %v1009
    %1011 = vmatprep.subr.mxu0 0.0
    %v1012 = vand.u32 %v65, 4294901760
    %1013 = vmatpush1.msra.mxu0 %v1012
    %1014 = vmatprep.subr.mxu0 0.0
    %v1015 = vand.u32 %v66, 4294901760
    %1016 = vmatpush1.msra.mxu0 %v1015
    %1017 = vmatprep.subr.mxu0 0.0
    %v1018 = vand.u32 %v67, 4294901760
    %1019 = vmatpush1.msra.mxu0 %v1018
    %1020 = vmatprep.subr.mxu0 0.0
    %v1021 = vand.u32 %v68, 4294901760
    %1022 = vmatpush1.msra.mxu0 %v1021
    %1023 = vmatprep.subr.mxu0 0.0
    %v1024 = vand.u32 %v69, 4294901760
    %1025 = vmatpush1.msra.mxu0 %v1024
    %1026 = vmatprep.subr.mxu0 0.0
    %v1027 = vand.u32 %v70, 4294901760
    %1028 = vmatpush1.msra.mxu0 %v1027
    %1029 = vmatprep.subr.mxu0 0.0
    %v1030 = vand.u32 %v71, 4294901760
    %1031 = vmatpush1.msra.mxu0 %v1030
    %1032 = vmatprep.subr.mxu0 0.0
    %v1033 = vand.u32 %v72, 4294901760
    %1034 = vmatpush1.msra.mxu0 %v1033
    %1035 = vmatprep.subr.mxu0 0.0
    %v1036 = vand.u32 %v73, 4294901760
    %1037 = vmatpush1.msra.mxu0 %v1036
    %1038 = vmatprep.subr.mxu0 0.0
    %v1039 = vand.u32 %v74, 4294901760
    %1040 = vmatpush1.msra.mxu0 %v1039
    %1041 = vmatprep.subr.mxu0 0.0
    %v1042 = vand.u32 %v75, 4294901760
    %1043 = vmatpush1.msra.mxu0 %v1042
    %1044 = vmatprep.subr.mxu0 0.0
    %v1045 = vand.u32 %v76, 4294901760
    %1046 = vmatpush1.msra.mxu0 %v1045
    %1047 = vmatprep.subr.mxu0 0.0
    %v1048 = vand.u32 %v77, 4294901760
    %1049 = vmatpush1.msra.mxu0 %v1048
    %1050 = vmatprep.subr.mxu0 0.0
    %v1051 = vand.u32 %v78, 4294901760
    %1052 = vmatpush1.msra.mxu0 %v1051
    %1053 = vmatprep.subr.mxu0 0.0
    %v1054 = vand.u32 %v79, 4294901760
    %1055 = vmatpush1.msra.mxu0 %v1054
    %1056 = vmatprep.subr.mxu0 0.0
    %v1057 = vand.u32 %v80, 4294901760
    %1058 = vmatpush1.msra.mxu0 %v1057
    %1059 = vmatprep.subr.mxu0 0.0
    %v1060 = vand.u32 %v81, 4294901760
    %1061 = vmatpush1.msra.mxu0 %v1060
    %1062 = vmatprep.subr.mxu0 0.0
    %v1063 = vand.u32 %v82, 4294901760
    %1064 = vmatpush1.msra.mxu0 %v1063
    %1065 = vmatprep.subr.mxu0 0.0
    %v1066 = vand.u32 %v83, 4294901760
    %1067 = vmatpush1.msra.mxu0 %v1066
    %v1068 = vand.u32 %v43, 4294901760
    %1069 = vmatprep.mubr.f32.mxu0 %v1068
    %v1070 = vand.u32 %v42, 4294901760
    %1071 = vmatmul.mubr.f32.gmra.mrb[0].mxu0 %v1070
    %v1072 = vpop.f32.mrb[0].mxu0
    %v1073 = vadd.f32 %v969, %v1072
    %v1074 = vpop.f32.mrb[0].mxu0
    %1075 = vdwg.mxu0
    %1076 = vmatprep.subr.mxu0 0.0
    %v1077 = vand.u32 %v84, 4294901760
    %1078 = vmatpush1.msra.mxu0 %v1077
    %1079 = vmatprep.subr.mxu0 0.0
    %v1080 = vand.u32 %v85, 4294901760
    %1081 = vmatpush1.msra.mxu0 %v1080
    %1082 = vmatprep.subr.mxu0 0.0
    %v1083 = vand.u32 %v86, 4294901760
    %1084 = vmatpush1.msra.mxu0 %v1083
    %1085 = vmatprep.subr.mxu0 0.0
    %v1086 = vand.u32 %v87, 4294901760
    %1087 = vmatpush1.msra.mxu0 %v1086
    %1088 = vmatprep.subr.mxu0 0.0
    %v1089 = vand.u32 %v88, 4294901760
    %1090 = vmatpush1.msra.mxu0 %v1089
    %1091 = vmatprep.subr.mxu0 0.0
    %v1092 = vand.u32 %v89, 4294901760
    %1093 = vmatpush1.msra.mxu0 %v1092
    %1094 = vmatprep.subr.mxu0 0.0
    %v1095 = vand.u32 %v90, 4294901760
    %1096 = vmatpush1.msra.mxu0 %v1095
    %1097 = vmatprep.subr.mxu0 0.0
    %v1098 = vand.u32 %v91, 4294901760
    %1099 = vmatpush1.msra.mxu0 %v1098
    %1100 = vmatprep.subr.mxu0 0.0
    %v1101 = vand.u32 %v92, 4294901760
    %1102 = vmatpush1.msra.mxu0 %v1101
    %1103 = vmatprep.subr.mxu0 0.0
    %v1104 = vand.u32 %v93, 4294901760
    %1105 = vmatpush1.msra.mxu0 %v1104
    %1106 = vmatprep.subr.mxu0 0.0
    %v1107 = vand.u32 %v94, 4294901760
    %1108 = vmatpush1.msra.mxu0 %v1107
    %1109 = vmatprep.subr.mxu0 0.0
    %v1110 = vand.u32 %v95, 4294901760
    %1111 = vmatpush1.msra.mxu0 %v1110
    %1112 = vmatprep.subr.mxu0 0.0
    %v1113 = vand.u32 %v96, 4294901760
    %1114 = vmatpush1.msra.mxu0 %v1113
    %1115 = vmatprep.subr.mxu0 0.0
    %v1116 = vand.u32 %v97, 4294901760
    %1117 = vmatpush1.msra.mxu0 %v1116
    %1118 = vmatprep.subr.mxu0 0.0
    %v1119 = vand.u32 %v98, 4294901760
    %1120 = vmatpush1.msra.mxu0 %v1119
    %1121 = vmatprep.subr.mxu0 0.0
    %v1122 = vand.u32 %v99, 4294901760
    %1123 = vmatpush1.msra.mxu0 %v1122
    %1124 = vmatprep.subr.mxu0 0.0
    %v1125 = vand.u32 %v100, 4294901760
    %1126 = vmatpush1.msra.mxu0 %v1125
    %1127 = vmatprep.subr.mxu0 0.0
    %v1128 = vand.u32 %v101, 4294901760
    %1129 = vmatpush1.msra.mxu0 %v1128
    %1130 = vmatprep.subr.mxu0 0.0
    %v1131 = vand.u32 %v102, 4294901760
    %1132 = vmatpush1.msra.mxu0 %v1131
    %1133 = vmatprep.subr.mxu0 0.0
    %v1134 = vand.u32 %v103, 4294901760
    %1135 = vmatpush1.msra.mxu0 %v1134
    %1136 = vmatprep.subr.mxu0 0.0
    %v1137 = vand.u32 %v104, 4294901760
    %1138 = vmatpush1.msra.mxu0 %v1137
    %1139 = vmatprep.subr.mxu0 0.0
    %v1140 = vand.u32 %v105, 4294901760
    %1141 = vmatpush1.msra.mxu0 %v1140
    %1142 = vmatprep.subr.mxu0 0.0
    %v1143 = vand.u32 %v106, 4294901760
    %1144 = vmatpush1.msra.mxu0 %v1143
    %1145 = vmatprep.subr.mxu0 0.0
    %v1146 = vand.u32 %v107, 4294901760
    %1147 = vmatpush1.msra.mxu0 %v1146
    %1148 = vmatprep.subr.mxu0 0.0
    %v1149 = vand.u32 %v108, 4294901760
    %1150 = vmatpush1.msra.mxu0 %v1149
    %1151 = vmatprep.subr.mxu0 0.0
    %v1152 = vand.u32 %v109, 4294901760
    %1153 = vmatpush1.msra.mxu0 %v1152
    %1154 = vmatprep.subr.mxu0 0.0
    %v1155 = vand.u32 %v110, 4294901760
    %1156 = vmatpush1.msra.mxu0 %v1155
    %1157 = vmatprep.subr.mxu0 0.0
    %v1158 = vand.u32 %v111, 4294901760
    %1159 = vmatpush1.msra.mxu0 %v1158
    %1160 = vmatprep.subr.mxu0 0.0
    %v1161 = vand.u32 %v112, 4294901760
    %1162 = vmatpush1.msra.mxu0 %v1161
    %1163 = vmatprep.subr.mxu0 0.0
    %v1164 = vand.u32 %v113, 4294901760
    %1165 = vmatpush1.msra.mxu0 %v1164
    %1166 = vmatprep.subr.mxu0 0.0
    %v1167 = vand.u32 %v114, 4294901760
    %1168 = vmatpush1.msra.mxu0 %v1167
    %1169 = vmatprep.subr.mxu0 0.0
    %v1170 = vand.u32 %v115, 4294901760
    %1171 = vmatpush1.msra.mxu0 %v1170
    %v1172 = vand.u32 %v45, 4294901760
    %v1173 = vsub.f32 %v45, %v1172
    %v1174 = vand.u32 %v1173, 4294901760
    %v1175 = vsub.f32 %v1173, %v1174
    %v1176 = vand.u32 %v1175, 4294901760
    %1177 = vmatprep.mubr.f32.mxu0 %v1176
    %v1178 = vand.u32 %v44, 4294901760
    %v1179 = vsub.f32 %v44, %v1178
    %v1180 = vand.u32 %v1179, 4294901760
    %v1181 = vsub.f32 %v1179, %v1180
    %v1182 = vand.u32 %v1181, 4294901760
    %1183 = vmatmul.mubr.f32.gmra.mrb[0].mxu0 %v1182
    %v1184 = vpop.f32.mrb[0].mxu0
    %v1185 = vadd.f32 %v1073, %v1184
    %v1186 = vpop.f32.mrb[0].mxu0
    %1187 = vdwg.mxu0
    %1188 = vmatprep.subr.mxu0 0.0
    %v1189 = vand.u32 %v84, 4294901760
    %v1190 = vsub.f32 %v84, %v1189
    %v1191 = vand.u32 %v1190, 4294901760
    %v1192 = vsub.f32 %v1190, %v1191
    %v1193 = vand.u32 %v1192, 4294901760
    %1194 = vmatpush1.msra.mxu0 %v1193
    %1195 = vmatprep.subr.mxu0 0.0
    %v1196 = vand.u32 %v85, 4294901760
    %v1197 = vsub.f32 %v85, %v1196
    %v1198 = vand.u32 %v1197, 4294901760
    %v1199 = vsub.f32 %v1197, %v1198
    %v1200 = vand.u32 %v1199, 4294901760
    %1201 = vmatpush1.msra.mxu0 %v1200
    %1202 = vmatprep.subr.mxu0 0.0
    %v1203 = vand.u32 %v86, 4294901760
    %v1204 = vsub.f32 %v86, %v1203
    %v1205 = vand.u32 %v1204, 4294901760
    %v1206 = vsub.f32 %v1204, %v1205
    %v1207 = vand.u32 %v1206, 4294901760
    %1208 = vmatpush1.msra.mxu0 %v1207
    %1209 = vmatprep.subr.mxu0 0.0
    %v1210 = vand.u32 %v87, 4294901760
    %v1211 = vsub.f32 %v87, %v1210
    %v1212 = vand.u32 %v1211, 4294901760
    %v1213 = vsub.f32 %v1211, %v1212
    %v1214 = vand.u32 %v1213, 4294901760
    %1215 = vmatpush1.msra.mxu0 %v1214
    %1216 = vmatprep.subr.mxu0 0.0
    %v1217 = vand.u32 %v88, 4294901760
    %v1218 = vsub.f32 %v88, %v1217
    %v1219 = vand.u32 %v1218, 4294901760
    %v1220 = vsub.f32 %v1218, %v1219
    %v1221 = vand.u32 %v1220, 4294901760
    %1222 = vmatpush1.msra.mxu0 %v1221
    %1223 = vmatprep.subr.mxu0 0.0
    %v1224 = vand.u32 %v89, 4294901760
    %v1225 = vsub.f32 %v89, %v1224
    %v1226 = vand.u32 %v1225, 4294901760
    %v1227 = vsub.f32 %v1225, %v1226
    %v1228 = vand.u32 %v1227, 4294901760
    %1229 = vmatpush1.msra.mxu0 %v1228
    %1230 = vmatprep.subr.mxu0 0.0
    %v1231 = vand.u32 %v90, 4294901760
    %v1232 = vsub.f32 %v90, %v1231
    %v1233 = vand.u32 %v1232, 4294901760
    %v1234 = vsub.f32 %v1232, %v1233
    %v1235 = vand.u32 %v1234, 4294901760
    %1236 = vmatpush1.msra.mxu0 %v1235
    %1237 = vmatprep.subr.mxu0 0.0
    %v1238 = vand.u32 %v91, 4294901760
    %v1239 = vsub.f32 %v91, %v1238
    %v1240 = vand.u32 %v1239, 4294901760
    %v1241 = vsub.f32 %v1239, %v1240
    %v1242 = vand.u32 %v1241, 4294901760
    %1243 = vmatpush1.msra.mxu0 %v1242
    %1244 = vmatprep.subr.mxu0 0.0
    %v1245 = vand.u32 %v92, 4294901760
    %v1246 = vsub.f32 %v92, %v1245
    %v1247 = vand.u32 %v1246, 4294901760
    %v1248 = vsub.f32 %v1246, %v1247
    %v1249 = vand.u32 %v1248, 4294901760
    %1250 = vmatpush1.msra.mxu0 %v1249
    %1251 = vmatprep.subr.mxu0 0.0
    %v1252 = vand.u32 %v93, 4294901760
    %v1253 = vsub.f32 %v93, %v1252
    %v1254 = vand.u32 %v1253, 4294901760
    %v1255 = vsub.f32 %v1253, %v1254
    %v1256 = vand.u32 %v1255, 4294901760
    %1257 = vmatpush1.msra.mxu0 %v1256
    %1258 = vmatprep.subr.mxu0 0.0
    %v1259 = vand.u32 %v94, 4294901760
    %v1260 = vsub.f32 %v94, %v1259
    %v1261 = vand.u32 %v1260, 4294901760
    %v1262 = vsub.f32 %v1260, %v1261
    %v1263 = vand.u32 %v1262, 4294901760
    %1264 = vmatpush1.msra.mxu0 %v1263
    %1265 = vmatprep.subr.mxu0 0.0
    %v1266 = vand.u32 %v95, 4294901760
    %v1267 = vsub.f32 %v95, %v1266
    %v1268 = vand.u32 %v1267, 4294901760
    %v1269 = vsub.f32 %v1267, %v1268
    %v1270 = vand.u32 %v1269, 4294901760
    %1271 = vmatpush1.msra.mxu0 %v1270
    %1272 = vmatprep.subr.mxu0 0.0
    %v1273 = vand.u32 %v96, 4294901760
    %v1274 = vsub.f32 %v96, %v1273
    %v1275 = vand.u32 %v1274, 4294901760
    %v1276 = vsub.f32 %v1274, %v1275
    %v1277 = vand.u32 %v1276, 4294901760
    %1278 = vmatpush1.msra.mxu0 %v1277
    %1279 = vmatprep.subr.mxu0 0.0
    %v1280 = vand.u32 %v97, 4294901760
    %v1281 = vsub.f32 %v97, %v1280
    %v1282 = vand.u32 %v1281, 4294901760
    %v1283 = vsub.f32 %v1281, %v1282
    %v1284 = vand.u32 %v1283, 4294901760
    %1285 = vmatpush1.msra.mxu0 %v1284
    %1286 = vmatprep.subr.mxu0 0.0
    %v1287 = vand.u32 %v98, 4294901760
    %v1288 = vsub.f32 %v98, %v1287
    %v1289 = vand.u32 %v1288, 4294901760
    %v1290 = vsub.f32 %v1288, %v1289
    %v1291 = vand.u32 %v1290, 4294901760
    %1292 = vmatpush1.msra.mxu0 %v1291
    %1293 = vmatprep.subr.mxu0 0.0
    %v1294 = vand.u32 %v99, 4294901760
    %v1295 = vsub.f32 %v99, %v1294
    %v1296 = vand.u32 %v1295, 4294901760
    %v1297 = vsub.f32 %v1295, %v1296
    %v1298 = vand.u32 %v1297, 4294901760
    %1299 = vmatpush1.msra.mxu0 %v1298
    %1300 = vmatprep.subr.mxu0 0.0
    %v1301 = vand.u32 %v100, 4294901760
    %v1302 = vsub.f32 %v100, %v1301
    %v1303 = vand.u32 %v1302, 4294901760
    %v1304 = vsub.f32 %v1302, %v1303
    %v1305 = vand.u32 %v1304, 4294901760
    %1306 = vmatpush1.msra.mxu0 %v1305
    %1307 = vmatprep.subr.mxu0 0.0
    %v1308 = vand.u32 %v101, 4294901760
    %v1309 = vsub.f32 %v101, %v1308
    %v1310 = vand.u32 %v1309, 4294901760
    %v1311 = vsub.f32 %v1309, %v1310
    %v1312 = vand.u32 %v1311, 4294901760
    %1313 = vmatpush1.msra.mxu0 %v1312
    %1314 = vmatprep.subr.mxu0 0.0
    %v1315 = vand.u32 %v102, 4294901760
    %v1316 = vsub.f32 %v102, %v1315
    %v1317 = vand.u32 %v1316, 4294901760
    %v1318 = vsub.f32 %v1316, %v1317
    %v1319 = vand.u32 %v1318, 4294901760
    %1320 = vmatpush1.msra.mxu0 %v1319
    %1321 = vmatprep.subr.mxu0 0.0
    %v1322 = vand.u32 %v103, 4294901760
    %v1323 = vsub.f32 %v103, %v1322
    %v1324 = vand.u32 %v1323, 4294901760
    %v1325 = vsub.f32 %v1323, %v1324
    %v1326 = vand.u32 %v1325, 4294901760
    %1327 = vmatpush1.msra.mxu0 %v1326
    %1328 = vmatprep.subr.mxu0 0.0
    %v1329 = vand.u32 %v104, 4294901760
    %v1330 = vsub.f32 %v104, %v1329
    %v1331 = vand.u32 %v1330, 4294901760
    %v1332 = vsub.f32 %v1330, %v1331
    %v1333 = vand.u32 %v1332, 4294901760
    %1334 = vmatpush1.msra.mxu0 %v1333
    %1335 = vmatprep.subr.mxu0 0.0
    %v1336 = vand.u32 %v105, 4294901760
    %v1337 = vsub.f32 %v105, %v1336
    %v1338 = vand.u32 %v1337, 4294901760
    %v1339 = vsub.f32 %v1337, %v1338
    %v1340 = vand.u32 %v1339, 4294901760
    %1341 = vmatpush1.msra.mxu0 %v1340
    %1342 = vmatprep.subr.mxu0 0.0
    %v1343 = vand.u32 %v106, 4294901760
    %v1344 = vsub.f32 %v106, %v1343
    %v1345 = vand.u32 %v1344, 4294901760
    %v1346 = vsub.f32 %v1344, %v1345
    %v1347 = vand.u32 %v1346, 4294901760
    %1348 = vmatpush1.msra.mxu0 %v1347
    %1349 = vmatprep.subr.mxu0 0.0
    %v1350 = vand.u32 %v107, 4294901760
    %v1351 = vsub.f32 %v107, %v1350
    %v1352 = vand.u32 %v1351, 4294901760
    %v1353 = vsub.f32 %v1351, %v1352
    %v1354 = vand.u32 %v1353, 4294901760
    %1355 = vmatpush1.msra.mxu0 %v1354
    %1356 = vmatprep.subr.mxu0 0.0
    %v1357 = vand.u32 %v108, 4294901760
    %v1358 = vsub.f32 %v108, %v1357
    %v1359 = vand.u32 %v1358, 4294901760
    %v1360 = vsub.f32 %v1358, %v1359
    %v1361 = vand.u32 %v1360, 4294901760
    %1362 = vmatpush1.msra.mxu0 %v1361
    %1363 = vmatprep.subr.mxu0 0.0
    %v1364 = vand.u32 %v109, 4294901760
    %v1365 = vsub.f32 %v109, %v1364
    %v1366 = vand.u32 %v1365, 4294901760
    %v1367 = vsub.f32 %v1365, %v1366
    %v1368 = vand.u32 %v1367, 4294901760
    %1369 = vmatpush1.msra.mxu0 %v1368
    %1370 = vmatprep.subr.mxu0 0.0
    %v1371 = vand.u32 %v110, 4294901760
    %v1372 = vsub.f32 %v110, %v1371
    %v1373 = vand.u32 %v1372, 4294901760
    %v1374 = vsub.f32 %v1372, %v1373
    %v1375 = vand.u32 %v1374, 4294901760
    %1376 = vmatpush1.msra.mxu0 %v1375
    %1377 = vmatprep.subr.mxu0 0.0
    %v1378 = vand.u32 %v111, 4294901760
    %v1379 = vsub.f32 %v111, %v1378
    %v1380 = vand.u32 %v1379, 4294901760
    %v1381 = vsub.f32 %v1379, %v1380
    %v1382 = vand.u32 %v1381, 4294901760
    %1383 = vmatpush1.msra.mxu0 %v1382
    %1384 = vmatprep.subr.mxu0 0.0
    %v1385 = vand.u32 %v112, 4294901760
    %v1386 = vsub.f32 %v112, %v1385
    %v1387 = vand.u32 %v1386, 4294901760
    %v1388 = vsub.f32 %v1386, %v1387
    %v1389 = vand.u32 %v1388, 4294901760
    %1390 = vmatpush1.msra.mxu0 %v1389
    %1391 = vmatprep.subr.mxu0 0.0
    %v1392 = vand.u32 %v113, 4294901760
    %v1393 = vsub.f32 %v113, %v1392
    %v1394 = vand.u32 %v1393, 4294901760
    %v1395 = vsub.f32 %v1393, %v1394
    %v1396 = vand.u32 %v1395, 4294901760
    %1397 = vmatpush1.msra.mxu0 %v1396
    %1398 = vmatprep.subr.mxu0 0.0
    %v1399 = vand.u32 %v114, 4294901760
    %v1400 = vsub.f32 %v114, %v1399
    %v1401 = vand.u32 %v1400, 4294901760
    %v1402 = vsub.f32 %v1400, %v1401
    %v1403 = vand.u32 %v1402, 4294901760
    %1404 = vmatpush1.msra.mxu0 %v1403
    %1405 = vmatprep.subr.mxu0 0.0
    %v1406 = vand.u32 %v115, 4294901760
    %v1407 = vsub.f32 %v115, %v1406
    %v1408 = vand.u32 %v1407, 4294901760
    %v1409 = vsub.f32 %v1407, %v1408
    %v1410 = vand.u32 %v1409, 4294901760
    %1411 = vmatpush1.msra.mxu0 %v1410
    %v1412 = vand.u32 %v45, 4294901760
    %1413 = vmatprep.mubr.f32.mxu0 %v1412
    %v1414 = vand.u32 %v44, 4294901760
    %1415 = vmatmul.mubr.f32.gmra.mrb[0].mxu0 %v1414
    %v1416 = vpop.f32.mrb[0].mxu0
    %v1417 = vadd.f32 %v1185, %v1416
    %v1418 = vpop.f32.mrb[0].mxu0
    %1419 = vdwg.mxu0
    %1420 = vmatprep.subr.mxu0 0.0
    %v1421 = vand.u32 %v84, 4294901760
    %v1422 = vsub.f32 %v84, %v1421
    %1423 = vmatpush1.msra.mxu0 %v1422
    %1424 = vmatprep.subr.mxu0 0.0
    %v1425 = vand.u32 %v85, 4294901760
    %v1426 = vsub.f32 %v85, %v1425
    %1427 = vmatpush1.msra.mxu0 %v1426
    %1428 = vmatprep.subr.mxu0 0.0
    %v1429 = vand.u32 %v86, 4294901760
    %v1430 = vsub.f32 %v86, %v1429
    %1431 = vmatpush1.msra.mxu0 %v1430
    %1432 = vmatprep.subr.mxu0 0.0
    %v1433 = vand.u32 %v87, 4294901760
    %v1434 = vsub.f32 %v87, %v1433
    %1435 = vmatpush1.msra.mxu0 %v1434
    %1436 = vmatprep.subr.mxu0 0.0
    %v1437 = vand.u32 %v88, 4294901760
    %v1438 = vsub.f32 %v88, %v1437
    %1439 = vmatpush1.msra.mxu0 %v1438
    %1440 = vmatprep.subr.mxu0 0.0
    %v1441 = vand.u32 %v89, 4294901760
    %v1442 = vsub.f32 %v89, %v1441
    %1443 = vmatpush1.msra.mxu0 %v1442
    %1444 = vmatprep.subr.mxu0 0.0
    %v1445 = vand.u32 %v90, 4294901760
    %v1446 = vsub.f32 %v90, %v1445
    %1447 = vmatpush1.msra.mxu0 %v1446
    %1448 = vmatprep.subr.mxu0 0.0
    %v1449 = vand.u32 %v91, 4294901760
    %v1450 = vsub.f32 %v91, %v1449
    %1451 = vmatpush1.msra.mxu0 %v1450
    %1452 = vmatprep.subr.mxu0 0.0
    %v1453 = vand.u32 %v92, 4294901760
    %v1454 = vsub.f32 %v92, %v1453
    %1455 = vmatpush1.msra.mxu0 %v1454
    %1456 = vmatprep.subr.mxu0 0.0
    %v1457 = vand.u32 %v93, 4294901760
    %v1458 = vsub.f32 %v93, %v1457
    %1459 = vmatpush1.msra.mxu0 %v1458
    %1460 = vmatprep.subr.mxu0 0.0
    %v1461 = vand.u32 %v94, 4294901760
    %v1462 = vsub.f32 %v94, %v1461
    %1463 = vmatpush1.msra.mxu0 %v1462
    %1464 = vmatprep.subr.mxu0 0.0
    %v1465 = vand.u32 %v95, 4294901760
    %v1466 = vsub.f32 %v95, %v1465
    %1467 = vmatpush1.msra.mxu0 %v1466
    %1468 = vmatprep.subr.mxu0 0.0
    %v1469 = vand.u32 %v96, 4294901760
    %v1470 = vsub.f32 %v96, %v1469
    %1471 = vmatpush1.msra.mxu0 %v1470
    %1472 = vmatprep.subr.mxu0 0.0
    %v1473 = vand.u32 %v97, 4294901760
    %v1474 = vsub.f32 %v97, %v1473
    %1475 = vmatpush1.msra.mxu0 %v1474
    %1476 = vmatprep.subr.mxu0 0.0
    %v1477 = vand.u32 %v98, 4294901760
    %v1478 = vsub.f32 %v98, %v1477
    %1479 = vmatpush1.msra.mxu0 %v1478
    %1480 = vmatprep.subr.mxu0 0.0
    %v1481 = vand.u32 %v99, 4294901760
    %v1482 = vsub.f32 %v99, %v1481
    %1483 = vmatpush1.msra.mxu0 %v1482
    %1484 = vmatprep.subr.mxu0 0.0
    %v1485 = vand.u32 %v100, 4294901760
    %v1486 = vsub.f32 %v100, %v1485
    %1487 = vmatpush1.msra.mxu0 %v1486
    %1488 = vmatprep.subr.mxu0 0.0
    %v1489 = vand.u32 %v101, 4294901760
    %v1490 = vsub.f32 %v101, %v1489
    %1491 = vmatpush1.msra.mxu0 %v1490
    %1492 = vmatprep.subr.mxu0 0.0
    %v1493 = vand.u32 %v102, 4294901760
    %v1494 = vsub.f32 %v102, %v1493
    %1495 = vmatpush1.msra.mxu0 %v1494
    %1496 = vmatprep.subr.mxu0 0.0
    %v1497 = vand.u32 %v103, 4294901760
    %v1498 = vsub.f32 %v103, %v1497
    %1499 = vmatpush1.msra.mxu0 %v1498
    %1500 = vmatprep.subr.mxu0 0.0
    %v1501 = vand.u32 %v104, 4294901760
    %v1502 = vsub.f32 %v104, %v1501
    %1503 = vmatpush1.msra.mxu0 %v1502
    %1504 = vmatprep.subr.mxu0 0.0
    %v1505 = vand.u32 %v105, 4294901760
    %v1506 = vsub.f32 %v105, %v1505
    %1507 = vmatpush1.msra.mxu0 %v1506
    %1508 = vmatprep.subr.mxu0 0.0
    %v1509 = vand.u32 %v106, 4294901760
    %v1510 = vsub.f32 %v106, %v1509
    %1511 = vmatpush1.msra.mxu0 %v1510
    %1512 = vmatprep.subr.mxu0 0.0
    %v1513 = vand.u32 %v107, 4294901760
    %v1514 = vsub.f32 %v107, %v1513
    %1515 = vmatpush1.msra.mxu0 %v1514
    %1516 = vmatprep.subr.mxu0 0.0
    %v1517 = vand.u32 %v108, 4294901760
    %v1518 = vsub.f32 %v108, %v1517
    %1519 = vmatpush1.msra.mxu0 %v1518
    %1520 = vmatprep.subr.mxu0 0.0
    %v1521 = vand.u32 %v109, 4294901760
    %v1522 = vsub.f32 %v109, %v1521
    %1523 = vmatpush1.msra.mxu0 %v1522
    %1524 = vmatprep.subr.mxu0 0.0
    %v1525 = vand.u32 %v110, 4294901760
    %v1526 = vsub.f32 %v110, %v1525
    %1527 = vmatpush1.msra.mxu0 %v1526
    %1528 = vmatprep.subr.mxu0 0.0
    %v1529 = vand.u32 %v111, 4294901760
    %v1530 = vsub.f32 %v111, %v1529
    %1531 = vmatpush1.msra.mxu0 %v1530
    %1532 = vmatprep.subr.mxu0 0.0
    %v1533 = vand.u32 %v112, 4294901760
    %v1534 = vsub.f32 %v112, %v1533
    %1535 = vmatpush1.msra.mxu0 %v1534
    %1536 = vmatprep.subr.mxu0 0.0
    %v1537 = vand.u32 %v113, 4294901760
    %v1538 = vsub.f32 %v113, %v1537
    %1539 = vmatpush1.msra.mxu0 %v1538
    %1540 = vmatprep.subr.mxu0 0.0
    %v1541 = vand.u32 %v114, 4294901760
    %v1542 = vsub.f32 %v114, %v1541
    %1543 = vmatpush1.msra.mxu0 %v1542
    %1544 = vmatprep.subr.mxu0 0.0
    %v1545 = vand.u32 %v115, 4294901760
    %v1546 = vsub.f32 %v115, %v1545
    %1547 = vmatpush1.msra.mxu0 %v1546
    %v1548 = vand.u32 %v45, 4294901760
    %v1549 = vsub.f32 %v45, %v1548
    %1550 = vmatprep.mubr.f32.mxu0 %v1549
    %v1551 = vand.u32 %v44, 4294901760
    %v1552 = vsub.f32 %v44, %v1551
    %1553 = vmatmul.mubr.f32.gmra.mrb[0].mxu0 %v1552
    %v1554 = vpop.f32.mrb[0].mxu0
    %v1555 = vadd.f32 %v1417, %v1554
    %v1556 = vpop.f32.mrb[0].mxu0
    %1557 = vdwg.mxu0
    %1558 = vmatprep.subr.mxu0 0.0
    %v1559 = vand.u32 %v84, 4294901760
    %1560 = vmatpush1.msra.mxu0 %v1559
    %1561 = vmatprep.subr.mxu0 0.0
    %v1562 = vand.u32 %v85, 4294901760
    %1563 = vmatpush1.msra.mxu0 %v1562
    %1564 = vmatprep.subr.mxu0 0.0
    %v1565 = vand.u32 %v86, 4294901760
    %1566 = vmatpush1.msra.mxu0 %v1565
    %1567 = vmatprep.subr.mxu0 0.0
    %v1568 = vand.u32 %v87, 4294901760
    %1569 = vmatpush1.msra.mxu0 %v1568
    %1570 = vmatprep.subr.mxu0 0.0
    %v1571 = vand.u32 %v88, 4294901760
    %1572 = vmatpush1.msra.mxu0 %v1571
    %1573 = vmatprep.subr.mxu0 0.0
    %v1574 = vand.u32 %v89, 4294901760
    %1575 = vmatpush1.msra.mxu0 %v1574
    %1576 = vmatprep.subr.mxu0 0.0
    %v1577 = vand.u32 %v90, 4294901760
    %1578 = vmatpush1.msra.mxu0 %v1577
    %1579 = vmatprep.subr.mxu0 0.0
    %v1580 = vand.u32 %v91, 4294901760
    %1581 = vmatpush1.msra.mxu0 %v1580
    %1582 = vmatprep.subr.mxu0 0.0
    %v1583 = vand.u32 %v92, 4294901760
    %1584 = vmatpush1.msra.mxu0 %v1583
    %1585 = vmatprep.subr.mxu0 0.0
    %v1586 = vand.u32 %v93, 4294901760
    %1587 = vmatpush1.msra.mxu0 %v1586
    %1588 = vmatprep.subr.mxu0 0.0
    %v1589 = vand.u32 %v94, 4294901760
    %1590 = vmatpush1.msra.mxu0 %v1589
    %1591 = vmatprep.subr.mxu0 0.0
    %v1592 = vand.u32 %v95, 4294901760
    %1593 = vmatpush1.msra.mxu0 %v1592
    %1594 = vmatprep.subr.mxu0 0.0
    %v1595 = vand.u32 %v96, 4294901760
    %1596 = vmatpush1.msra.mxu0 %v1595
    %1597 = vmatprep.subr.mxu0 0.0
    %v1598 = vand.u32 %v97, 4294901760
    %1599 = vmatpush1.msra.mxu0 %v1598
    %1600 = vmatprep.subr.mxu0 0.0
    %v1601 = vand.u32 %v98, 4294901760
    %1602 = vmatpush1.msra.mxu0 %v1601
    %1603 = vmatprep.subr.mxu0 0.0
    %v1604 = vand.u32 %v99, 4294901760
    %1605 = vmatpush1.msra.mxu0 %v1604
    %1606 = vmatprep.subr.mxu0 0.0
    %v1607 = vand.u32 %v100, 4294901760
    %1608 = vmatpush1.msra.mxu0 %v1607
    %1609 = vmatprep.subr.mxu0 0.0
    %v1610 = vand.u32 %v101, 4294901760
    %1611 = vmatpush1.msra.mxu0 %v1610
    %1612 = vmatprep.subr.mxu0 0.0
    %v1613 = vand.u32 %v102, 4294901760
    %1614 = vmatpush1.msra.mxu0 %v1613
    %1615 = vmatprep.subr.mxu0 0.0
    %v1616 = vand.u32 %v103, 4294901760
    %1617 = vmatpush1.msra.mxu0 %v1616
    %1618 = vmatprep.subr.mxu0 0.0
    %v1619 = vand.u32 %v104, 4294901760
    %1620 = vmatpush1.msra.mxu0 %v1619
    %1621 = vmatprep.subr.mxu0 0.0
    %v1622 = vand.u32 %v105, 4294901760
    %1623 = vmatpush1.msra.mxu0 %v1622
    %1624 = vmatprep.subr.mxu0 0.0
    %v1625 = vand.u32 %v106, 4294901760
    %1626 = vmatpush1.msra.mxu0 %v1625
    %1627 = vmatprep.subr.mxu0 0.0
    %v1628 = vand.u32 %v107, 4294901760
    %1629 = vmatpush1.msra.mxu0 %v1628
    %1630 = vmatprep.subr.mxu0 0.0
    %v1631 = vand.u32 %v108, 4294901760
    %1632 = vmatpush1.msra.mxu0 %v1631
    %1633 = vmatprep.subr.mxu0 0.0
    %v1634 = vand.u32 %v109, 4294901760
    %1635 = vmatpush1.msra.mxu0 %v1634
    %1636 = vmatprep.subr.mxu0 0.0
    %v1637 = vand.u32 %v110, 4294901760
    %1638 = vmatpush1.msra.mxu0 %v1637
    %1639 = vmatprep.subr.mxu0 0.0
    %v1640 = vand.u32 %v111, 4294901760
    %1641 = vmatpush1.msra.mxu0 %v1640
    %1642 = vmatprep.subr.mxu0 0.0
    %v1643 = vand.u32 %v112, 4294901760
    %1644 = vmatpush1.msra.mxu0 %v1643
    %1645 = vmatprep.subr.mxu0 0.0
    %v1646 = vand.u32 %v113, 4294901760
    %1647 = vmatpush1.msra.mxu0 %v1646
    %1648 = vmatprep.subr.mxu0 0.0
    %v1649 = vand.u32 %v114, 4294901760
    %1650 = vmatpush1.msra.mxu0 %v1649
    %1651 = vmatprep.subr.mxu0 0.0
    %v1652 = vand.u32 %v115, 4294901760
    %1653 = vmatpush1.msra.mxu0 %v1652
    %v1654 = vand.u32 %v45, 4294901760
    %v1655 = vsub.f32 %v45, %v1654
    %v1656 = vand.u32 %v1655, 4294901760
    %1657 = vmatprep.mubr.f32.mxu0 %v1656
    %v1658 = vand.u32 %v44, 4294901760
    %v1659 = vsub.f32 %v44, %v1658
    %v1660 = vand.u32 %v1659, 4294901760
    %1661 = vmatmul.mubr.f32.gmra.mrb[0].mxu0 %v1660
    %v1662 = vpop.f32.mrb[0].mxu0
    %v1663 = vadd.f32 %v1555, %v1662
    %v1664 = vpop.f32.mrb[0].mxu0
    %1665 = vdwg.mxu0
    %1666 = vmatprep.subr.mxu0 0.0
    %v1667 = vand.u32 %v84, 4294901760
    %v1668 = vsub.f32 %v84, %v1667
    %v1669 = vand.u32 %v1668, 4294901760
    %1670 = vmatpush1.msra.mxu0 %v1669
    %1671 = vmatprep.subr.mxu0 0.0
    %v1672 = vand.u32 %v85, 4294901760
    %v1673 = vsub.f32 %v85, %v1672
    %v1674 = vand.u32 %v1673, 4294901760
    %1675 = vmatpush1.msra.mxu0 %v1674
    %1676 = vmatprep.subr.mxu0 0.0
    %v1677 = vand.u32 %v86, 4294901760
    %v1678 = vsub.f32 %v86, %v1677
    %v1679 = vand.u32 %v1678, 4294901760
    %1680 = vmatpush1.msra.mxu0 %v1679
    %1681 = vmatprep.subr.mxu0 0.0
    %v1682 = vand.u32 %v87, 4294901760
    %v1683 = vsub.f32 %v87, %v1682
    %v1684 = vand.u32 %v1683, 4294901760
    %1685 = vmatpush1.msra.mxu0 %v1684
    %1686 = vmatprep.subr.mxu0 0.0
    %v1687 = vand.u32 %v88, 4294901760
    %v1688 = vsub.f32 %v88, %v1687
    %v1689 = vand.u32 %v1688, 4294901760
    %1690 = vmatpush1.msra.mxu0 %v1689
    %1691 = vmatprep.subr.mxu0 0.0
    %v1692 = vand.u32 %v89, 4294901760
    %v1693 = vsub.f32 %v89, %v1692
    %v1694 = vand.u32 %v1693, 4294901760
    %1695 = vmatpush1.msra.mxu0 %v1694
    %1696 = vmatprep.subr.mxu0 0.0
    %v1697 = vand.u32 %v90, 4294901760
    %v1698 = vsub.f32 %v90, %v1697
    %v1699 = vand.u32 %v1698, 4294901760
    %1700 = vmatpush1.msra.mxu0 %v1699
    %1701 = vmatprep.subr.mxu0 0.0
    %v1702 = vand.u32 %v91, 4294901760
    %v1703 = vsub.f32 %v91, %v1702
    %v1704 = vand.u32 %v1703, 4294901760
    %1705 = vmatpush1.msra.mxu0 %v1704
    %1706 = vmatprep.subr.mxu0 0.0
    %v1707 = vand.u32 %v92, 4294901760
    %v1708 = vsub.f32 %v92, %v1707
    %v1709 = vand.u32 %v1708, 4294901760
    %1710 = vmatpush1.msra.mxu0 %v1709
    %1711 = vmatprep.subr.mxu0 0.0
    %v1712 = vand.u32 %v93, 4294901760
    %v1713 = vsub.f32 %v93, %v1712
    %v1714 = vand.u32 %v1713, 4294901760
    %1715 = vmatpush1.msra.mxu0 %v1714
    %1716 = vmatprep.subr.mxu0 0.0
    %v1717 = vand.u32 %v94, 4294901760
    %v1718 = vsub.f32 %v94, %v1717
    %v1719 = vand.u32 %v1718, 4294901760
    %1720 = vmatpush1.msra.mxu0 %v1719
    %1721 = vmatprep.subr.mxu0 0.0
    %v1722 = vand.u32 %v95, 4294901760
    %v1723 = vsub.f32 %v95, %v1722
    %v1724 = vand.u32 %v1723, 4294901760
    %1725 = vmatpush1.msra.mxu0 %v1724
    %1726 = vmatprep.subr.mxu0 0.0
    %v1727 = vand.u32 %v96, 4294901760
    %v1728 = vsub.f32 %v96, %v1727
    %v1729 = vand.u32 %v1728, 4294901760
    %1730 = vmatpush1.msra.mxu0 %v1729
    %1731 = vmatprep.subr.mxu0 0.0
    %v1732 = vand.u32 %v97, 4294901760
    %v1733 = vsub.f32 %v97, %v1732
    %v1734 = vand.u32 %v1733, 4294901760
    %1735 = vmatpush1.msra.mxu0 %v1734
    %1736 = vmatprep.subr.mxu0 0.0
    %v1737 = vand.u32 %v98, 4294901760
    %v1738 = vsub.f32 %v98, %v1737
    %v1739 = vand.u32 %v1738, 4294901760
    %1740 = vmatpush1.msra.mxu0 %v1739
    %1741 = vmatprep.subr.mxu0 0.0
    %v1742 = vand.u32 %v99, 4294901760
    %v1743 = vsub.f32 %v99, %v1742
    %v1744 = vand.u32 %v1743, 4294901760
    %1745 = vmatpush1.msra.mxu0 %v1744
    %1746 = vmatprep.subr.mxu0 0.0
    %v1747 = vand.u32 %v100, 4294901760
    %v1748 = vsub.f32 %v100, %v1747
    %v1749 = vand.u32 %v1748, 4294901760
    %1750 = vmatpush1.msra.mxu0 %v1749
    %1751 = vmatprep.subr.mxu0 0.0
    %v1752 = vand.u32 %v101, 4294901760
    %v1753 = vsub.f32 %v101, %v1752
    %v1754 = vand.u32 %v1753, 4294901760
    %1755 = vmatpush1.msra.mxu0 %v1754
    %1756 = vmatprep.subr.mxu0 0.0
    %v1757 = vand.u32 %v102, 4294901760
    %v1758 = vsub.f32 %v102, %v1757
    %v1759 = vand.u32 %v1758, 4294901760
    %1760 = vmatpush1.msra.mxu0 %v1759
    %1761 = vmatprep.subr.mxu0 0.0
    %v1762 = vand.u32 %v103, 4294901760
    %v1763 = vsub.f32 %v103, %v1762
    %v1764 = vand.u32 %v1763, 4294901760
    %1765 = vmatpush1.msra.mxu0 %v1764
    %1766 = vmatprep.subr.mxu0 0.0
    %v1767 = vand.u32 %v104, 4294901760
    %v1768 = vsub.f32 %v104, %v1767
    %v1769 = vand.u32 %v1768, 4294901760
    %1770 = vmatpush1.msra.mxu0 %v1769
    %1771 = vmatprep.subr.mxu0 0.0
    %v1772 = vand.u32 %v105, 4294901760
    %v1773 = vsub.f32 %v105, %v1772
    %v1774 = vand.u32 %v1773, 4294901760
    %1775 = vmatpush1.msra.mxu0 %v1774
    %1776 = vmatprep.subr.mxu0 0.0
    %v1777 = vand.u32 %v106, 4294901760
    %v1778 = vsub.f32 %v106, %v1777
    %v1779 = vand.u32 %v1778, 4294901760
    %1780 = vmatpush1.msra.mxu0 %v1779
    %1781 = vmatprep.subr.mxu0 0.0
    %v1782 = vand.u32 %v107, 4294901760
    %v1783 = vsub.f32 %v107, %v1782
    %v1784 = vand.u32 %v1783, 4294901760
    %1785 = vmatpush1.msra.mxu0 %v1784
    %1786 = vmatprep.subr.mxu0 0.0
    %v1787 = vand.u32 %v108, 4294901760
    %v1788 = vsub.f32 %v108, %v1787
    %v1789 = vand.u32 %v1788, 4294901760
    %1790 = vmatpush1.msra.mxu0 %v1789
    %1791 = vmatprep.subr.mxu0 0.0
    %v1792 = vand.u32 %v109, 4294901760
    %v1793 = vsub.f32 %v109, %v1792
    %v1794 = vand.u32 %v1793, 4294901760
    %1795 = vmatpush1.msra.mxu0 %v1794
    %1796 = vmatprep.subr.mxu0 0.0
    %v1797 = vand.u32 %v110, 4294901760
    %v1798 = vsub.f32 %v110, %v1797
    %v1799 = vand.u32 %v1798, 4294901760
    %1800 = vmatpush1.msra.mxu0 %v1799
    %1801 = vmatprep.subr.mxu0 0.0
    %v1802 = vand.u32 %v111, 4294901760
    %v1803 = vsub.f32 %v111, %v1802
    %v1804 = vand.u32 %v1803, 4294901760
    %1805 = vmatpush1.msra.mxu0 %v1804
    %1806 = vmatprep.subr.mxu0 0.0
    %v1807 = vand.u32 %v112, 4294901760
    %v1808 = vsub.f32 %v112, %v1807
    %v1809 = vand.u32 %v1808, 4294901760
    %1810 = vmatpush1.msra.mxu0 %v1809
    %1811 = vmatprep.subr.mxu0 0.0
    %v1812 = vand.u32 %v113, 4294901760
    %v1813 = vsub.f32 %v113, %v1812
    %v1814 = vand.u32 %v1813, 4294901760
    %1815 = vmatpush1.msra.mxu0 %v1814
    %1816 = vmatprep.subr.mxu0 0.0
    %v1817 = vand.u32 %v114, 4294901760
    %v1818 = vsub.f32 %v114, %v1817
    %v1819 = vand.u32 %v1818, 4294901760
    %1820 = vmatpush1.msra.mxu0 %v1819
    %1821 = vmatprep.subr.mxu0 0.0
    %v1822 = vand.u32 %v115, 4294901760
    %v1823 = vsub.f32 %v115, %v1822
    %v1824 = vand.u32 %v1823, 4294901760
    %1825 = vmatpush1.msra.mxu0 %v1824
    %v1826 = vand.u32 %v45, 4294901760
    %1827 = vmatprep.mubr.f32.mxu0 %v1826
    %v1828 = vand.u32 %v44, 4294901760
    %1829 = vmatmul.mubr.f32.gmra.mrb[0].mxu0 %v1828
    %v1830 = vpop.f32.mrb[0].mxu0
    %v1831 = vadd.f32 %v1663, %v1830
    %v1832 = vpop.f32.mrb[0].mxu0
    %1833 = vdwg.mxu0
    %1834 = vmatprep.subr.mxu0 0.0
    %v1835 = vand.u32 %v84, 4294901760
    %1836 = vmatpush1.msra.mxu0 %v1835
    %1837 = vmatprep.subr.mxu0 0.0
    %v1838 = vand.u32 %v85, 4294901760
    %1839 = vmatpush1.msra.mxu0 %v1838
    %1840 = vmatprep.subr.mxu0 0.0
    %v1841 = vand.u32 %v86, 4294901760
    %1842 = vmatpush1.msra.mxu0 %v1841
    %1843 = vmatprep.subr.mxu0 0.0
    %v1844 = vand.u32 %v87, 4294901760
    %1845 = vmatpush1.msra.mxu0 %v1844
    %1846 = vmatprep.subr.mxu0 0.0
    %v1847 = vand.u32 %v88, 4294901760
    %1848 = vmatpush1.msra.mxu0 %v1847
    %1849 = vmatprep.subr.mxu0 0.0
    %v1850 = vand.u32 %v89, 4294901760
    %1851 = vmatpush1.msra.mxu0 %v1850
    %1852 = vmatprep.subr.mxu0 0.0
    %v1853 = vand.u32 %v90, 4294901760
    %1854 = vmatpush1.msra.mxu0 %v1853
    %1855 = vmatprep.subr.mxu0 0.0
    %v1856 = vand.u32 %v91, 4294901760
    %1857 = vmatpush1.msra.mxu0 %v1856
    %1858 = vmatprep.subr.mxu0 0.0
    %v1859 = vand.u32 %v92, 4294901760
    %1860 = vmatpush1.msra.mxu0 %v1859
    %1861 = vmatprep.subr.mxu0 0.0
    %v1862 = vand.u32 %v93, 4294901760
    %1863 = vmatpush1.msra.mxu0 %v1862
    %1864 = vmatprep.subr.mxu0 0.0
    %v1865 = vand.u32 %v94, 4294901760
    %1866 = vmatpush1.msra.mxu0 %v1865
    %1867 = vmatprep.subr.mxu0 0.0
    %v1868 = vand.u32 %v95, 4294901760
    %1869 = vmatpush1.msra.mxu0 %v1868
    %1870 = vmatprep.subr.mxu0 0.0
    %v1871 = vand.u32 %v96, 4294901760
    %1872 = vmatpush1.msra.mxu0 %v1871
    %1873 = vmatprep.subr.mxu0 0.0
    %v1874 = vand.u32 %v97, 4294901760
    %1875 = vmatpush1.msra.mxu0 %v1874
    %1876 = vmatprep.subr.mxu0 0.0
    %v1877 = vand.u32 %v98, 4294901760
    %1878 = vmatpush1.msra.mxu0 %v1877
    %1879 = vmatprep.subr.mxu0 0.0
    %v1880 = vand.u32 %v99, 4294901760
    %1881 = vmatpush1.msra.mxu0 %v1880
    %1882 = vmatprep.subr.mxu0 0.0
    %v1883 = vand.u32 %v100, 4294901760
    %1884 = vmatpush1.msra.mxu0 %v1883
    %1885 = vmatprep.subr.mxu0 0.0
    %v1886 = vand.u32 %v101, 4294901760
    %1887 = vmatpush1.msra.mxu0 %v1886
    %1888 = vmatprep.subr.mxu0 0.0
    %v1889 = vand.u32 %v102, 4294901760
    %1890 = vmatpush1.msra.mxu0 %v1889
    %1891 = vmatprep.subr.mxu0 0.0
    %v1892 = vand.u32 %v103, 4294901760
    %1893 = vmatpush1.msra.mxu0 %v1892
    %1894 = vmatprep.subr.mxu0 0.0
    %v1895 = vand.u32 %v104, 4294901760
    %1896 = vmatpush1.msra.mxu0 %v1895
    %1897 = vmatprep.subr.mxu0 0.0
    %v1898 = vand.u32 %v105, 4294901760
    %1899 = vmatpush1.msra.mxu0 %v1898
    %1900 = vmatprep.subr.mxu0 0.0
    %v1901 = vand.u32 %v106, 4294901760
    %1902 = vmatpush1.msra.mxu0 %v1901
    %1903 = vmatprep.subr.mxu0 0.0
    %v1904 = vand.u32 %v107, 4294901760
    %1905 = vmatpush1.msra.mxu0 %v1904
    %1906 = vmatprep.subr.mxu0 0.0
    %v1907 = vand.u32 %v108, 4294901760
    %1908 = vmatpush1.msra.mxu0 %v1907
    %1909 = vmatprep.subr.mxu0 0.0
    %v1910 = vand.u32 %v109, 4294901760
    %1911 = vmatpush1.msra.mxu0 %v1910
    %1912 = vmatprep.subr.mxu0 0.0
    %v1913 = vand.u32 %v110, 4294901760
    %1914 = vmatpush1.msra.mxu0 %v1913
    %1915 = vmatprep.subr.mxu0 0.0
    %v1916 = vand.u32 %v111, 4294901760
    %1917 = vmatpush1.msra.mxu0 %v1916
    %1918 = vmatprep.subr.mxu0 0.0
    %v1919 = vand.u32 %v112, 4294901760
    %1920 = vmatpush1.msra.mxu0 %v1919
    %1921 = vmatprep.subr.mxu0 0.0
    %v1922 = vand.u32 %v113, 4294901760
    %1923 = vmatpush1.msra.mxu0 %v1922
    %1924 = vmatprep.subr.mxu0 0.0
    %v1925 = vand.u32 %v114, 4294901760
    %1926 = vmatpush1.msra.mxu0 %v1925
    %1927 = vmatprep.subr.mxu0 0.0
    %v1928 = vand.u32 %v115, 4294901760
    %1929 = vmatpush1.msra.mxu0 %v1928
    %v1930 = vand.u32 %v45, 4294901760
    %1931 = vmatprep.mubr.f32.mxu0 %v1930
    %v1932 = vand.u32 %v44, 4294901760
    %1933 = vmatmul.mubr.f32.gmra.mrb[0].mxu0 %v1932
    %v1934 = vpop.f32.mrb[0].mxu0
    %v1935 = vadd.f32 %v1831, %v1934
    %v1936 = vpop.f32.mrb[0].mxu0
    %1937 = vdwg.mxu0
    %1938 = vmatprep.subr.mxu0 0.0
    %v1939 = vand.u32 %v116, 4294901760
    %1940 = vmatpush1.msra.mxu0 %v1939
    %1941 = vmatprep.subr.mxu0 0.0
    %v1942 = vand.u32 %v117, 4294901760
    %1943 = vmatpush1.msra.mxu0 %v1942
    %1944 = vmatprep.subr.mxu0 0.0
    %v1945 = vand.u32 %v118, 4294901760
    %1946 = vmatpush1.msra.mxu0 %v1945
    %1947 = vmatprep.subr.mxu0 0.0
    %v1948 = vand.u32 %v119, 4294901760
    %1949 = vmatpush1.msra.mxu0 %v1948
    %1950 = vmatprep.subr.mxu0 0.0
    %v1951 = vand.u32 %v120, 4294901760
    %1952 = vmatpush1.msra.mxu0 %v1951
    %1953 = vmatprep.subr.mxu0 0.0
    %v1954 = vand.u32 %v121, 4294901760
    %1955 = vmatpush1.msra.mxu0 %v1954
    %1956 = vmatprep.subr.mxu0 0.0
    %v1957 = vand.u32 %v122, 4294901760
    %1958 = vmatpush1.msra.mxu0 %v1957
    %1959 = vmatprep.subr.mxu0 0.0
    %v1960 = vand.u32 %v123, 4294901760
    %1961 = vmatpush1.msra.mxu0 %v1960
    %1962 = vmatprep.subr.mxu0 0.0
    %v1963 = vand.u32 %v124, 4294901760
    %1964 = vmatpush1.msra.mxu0 %v1963
    %1965 = vmatprep.subr.mxu0 0.0
    %v1966 = vand.u32 %v125, 4294901760
    %1967 = vmatpush1.msra.mxu0 %v1966
    %1968 = vmatprep.subr.mxu0 0.0
    %v1969 = vand.u32 %v126, 4294901760
    %1970 = vmatpush1.msra.mxu0 %v1969
    %1971 = vmatprep.subr.mxu0 0.0
    %v1972 = vand.u32 %v127, 4294901760
    %1973 = vmatpush1.msra.mxu0 %v1972
    %1974 = vmatprep.subr.mxu0 0.0
    %v1975 = vand.u32 %v128, 4294901760
    %1976 = vmatpush1.msra.mxu0 %v1975
    %1977 = vmatprep.subr.mxu0 0.0
    %v1978 = vand.u32 %v129, 4294901760
    %1979 = vmatpush1.msra.mxu0 %v1978
    %1980 = vmatprep.subr.mxu0 0.0
    %v1981 = vand.u32 %v130, 4294901760
    %1982 = vmatpush1.msra.mxu0 %v1981
    %1983 = vmatprep.subr.mxu0 0.0
    %v1984 = vand.u32 %v131, 4294901760
    %1985 = vmatpush1.msra.mxu0 %v1984
    %1986 = vmatprep.subr.mxu0 0.0
    %v1987 = vand.u32 %v132, 4294901760
    %1988 = vmatpush1.msra.mxu0 %v1987
    %1989 = vmatprep.subr.mxu0 0.0
    %v1990 = vand.u32 %v133, 4294901760
    %1991 = vmatpush1.msra.mxu0 %v1990
    %1992 = vmatprep.subr.mxu0 0.0
    %v1993 = vand.u32 %v134, 4294901760
    %1994 = vmatpush1.msra.mxu0 %v1993
    %1995 = vmatprep.subr.mxu0 0.0
    %v1996 = vand.u32 %v135, 4294901760
    %1997 = vmatpush1.msra.mxu0 %v1996
    %1998 = vmatprep.subr.mxu0 0.0
    %v1999 = vand.u32 %v136, 4294901760
    %2000 = vmatpush1.msra.mxu0 %v1999
    %2001 = vmatprep.subr.mxu0 0.0
    %v2002 = vand.u32 %v137, 4294901760
    %2003 = vmatpush1.msra.mxu0 %v2002
    %2004 = vmatprep.subr.mxu0 0.0
    %v2005 = vand.u32 %v138, 4294901760
    %2006 = vmatpush1.msra.mxu0 %v2005
    %2007 = vmatprep.subr.mxu0 0.0
    %v2008 = vand.u32 %v139, 4294901760
    %2009 = vmatpush1.msra.mxu0 %v2008
    %2010 = vmatprep.subr.mxu0 0.0
    %v2011 = vand.u32 %v140, 4294901760
    %2012 = vmatpush1.msra.mxu0 %v2011
    %2013 = vmatprep.subr.mxu0 0.0
    %v2014 = vand.u32 %v141, 4294901760
    %2015 = vmatpush1.msra.mxu0 %v2014
    %2016 = vmatprep.subr.mxu0 0.0
    %v2017 = vand.u32 %v142, 4294901760
    %2018 = vmatpush1.msra.mxu0 %v2017
    %2019 = vmatprep.subr.mxu0 0.0
    %v2020 = vand.u32 %v143, 4294901760
    %2021 = vmatpush1.msra.mxu0 %v2020
    %2022 = vmatprep.subr.mxu0 0.0
    %v2023 = vand.u32 %v144, 4294901760
    %2024 = vmatpush1.msra.mxu0 %v2023
    %2025 = vmatprep.subr.mxu0 0.0
    %v2026 = vand.u32 %v145, 4294901760
    %2027 = vmatpush1.msra.mxu0 %v2026
    %2028 = vmatprep.subr.mxu0 0.0
    %v2029 = vand.u32 %v146, 4294901760
    %2030 = vmatpush1.msra.mxu0 %v2029
    %2031 = vmatprep.subr.mxu0 0.0
    %v2032 = vand.u32 %v147, 4294901760
    %2033 = vmatpush1.msra.mxu0 %v2032
    %v2034 = vand.u32 %v47, 4294901760
    %v2035 = vsub.f32 %v47, %v2034
    %v2036 = vand.u32 %v2035, 4294901760
    %v2037 = vsub.f32 %v2035, %v2036
    %v2038 = vand.u32 %v2037, 4294901760
    %2039 = vmatprep.mubr.f32.mxu0 %v2038
    %v2040 = vand.u32 %v46, 4294901760
    %v2041 = vsub.f32 %v46, %v2040
    %v2042 = vand.u32 %v2041, 4294901760
    %v2043 = vsub.f32 %v2041, %v2042
    %v2044 = vand.u32 %v2043, 4294901760
    %2045 = vmatmul.mubr.f32.gmra.mrb[0].mxu0 %v2044
    %v2046 = vpop.f32.mrb[0].mxu0
    %v2047 = vadd.f32 %v1935, %v2046
    %v2048 = vpop.f32.mrb[0].mxu0
    %2049 = vdwg.mxu0
    %2050 = vmatprep.subr.mxu0 0.0
    %v2051 = vand.u32 %v116, 4294901760
    %v2052 = vsub.f32 %v116, %v2051
    %v2053 = vand.u32 %v2052, 4294901760
    %v2054 = vsub.f32 %v2052, %v2053
    %v2055 = vand.u32 %v2054, 4294901760
    %2056 = vmatpush1.msra.mxu0 %v2055
    %2057 = vmatprep.subr.mxu0 0.0
    %v2058 = vand.u32 %v117, 4294901760
    %v2059 = vsub.f32 %v117, %v2058
    %v2060 = vand.u32 %v2059, 4294901760
    %v2061 = vsub.f32 %v2059, %v2060
    %v2062 = vand.u32 %v2061, 4294901760
    %2063 = vmatpush1.msra.mxu0 %v2062
    %2064 = vmatprep.subr.mxu0 0.0
    %v2065 = vand.u32 %v118, 4294901760
    %v2066 = vsub.f32 %v118, %v2065
    %v2067 = vand.u32 %v2066, 4294901760
    %v2068 = vsub.f32 %v2066, %v2067
    %v2069 = vand.u32 %v2068, 4294901760
    %2070 = vmatpush1.msra.mxu0 %v2069
    %2071 = vmatprep.subr.mxu0 0.0
    %v2072 = vand.u32 %v119, 4294901760
    %v2073 = vsub.f32 %v119, %v2072
    %v2074 = vand.u32 %v2073, 4294901760
    %v2075 = vsub.f32 %v2073, %v2074
    %v2076 = vand.u32 %v2075, 4294901760
    %2077 = vmatpush1.msra.mxu0 %v2076
    %2078 = vmatprep.subr.mxu0 0.0
    %v2079 = vand.u32 %v120, 4294901760
    %v2080 = vsub.f32 %v120, %v2079
    %v2081 = vand.u32 %v2080, 4294901760
    %v2082 = vsub.f32 %v2080, %v2081
    %v2083 = vand.u32 %v2082, 4294901760
    %2084 = vmatpush1.msra.mxu0 %v2083
    %2085 = vmatprep.subr.mxu0 0.0
    %v2086 = vand.u32 %v121, 4294901760
    %v2087 = vsub.f32 %v121, %v2086
    %v2088 = vand.u32 %v2087, 4294901760
    %v2089 = vsub.f32 %v2087, %v2088
    %v2090 = vand.u32 %v2089, 4294901760
    %2091 = vmatpush1.msra.mxu0 %v2090
    %2092 = vmatprep.subr.mxu0 0.0
    %v2093 = vand.u32 %v122, 4294901760
    %v2094 = vsub.f32 %v122, %v2093
    %v2095 = vand.u32 %v2094, 4294901760
    %v2096 = vsub.f32 %v2094, %v2095
    %v2097 = vand.u32 %v2096, 4294901760
    %2098 = vmatpush1.msra.mxu0 %v2097
    %2099 = vmatprep.subr.mxu0 0.0
    %v2100 = vand.u32 %v123, 4294901760
    %v2101 = vsub.f32 %v123, %v2100
    %v2102 = vand.u32 %v2101, 4294901760
    %v2103 = vsub.f32 %v2101, %v2102
    %v2104 = vand.u32 %v2103, 4294901760
    %2105 = vmatpush1.msra.mxu0 %v2104
    %2106 = vmatprep.subr.mxu0 0.0
    %v2107 = vand.u32 %v124, 4294901760
    %v2108 = vsub.f32 %v124, %v2107
    %v2109 = vand.u32 %v2108, 4294901760
    %v2110 = vsub.f32 %v2108, %v2109
    %v2111 = vand.u32 %v2110, 4294901760
    %2112 = vmatpush1.msra.mxu0 %v2111
    %2113 = vmatprep.subr.mxu0 0.0
    %v2114 = vand.u32 %v125, 4294901760
    %v2115 = vsub.f32 %v125, %v2114
    %v2116 = vand.u32 %v2115, 4294901760
    %v2117 = vsub.f32 %v2115, %v2116
    %v2118 = vand.u32 %v2117, 4294901760
    %2119 = vmatpush1.msra.mxu0 %v2118
    %2120 = vmatprep.subr.mxu0 0.0
    %v2121 = vand.u32 %v126, 4294901760
    %v2122 = vsub.f32 %v126, %v2121
    %v2123 = vand.u32 %v2122, 4294901760
    %v2124 = vsub.f32 %v2122, %v2123
    %v2125 = vand.u32 %v2124, 4294901760
    %2126 = vmatpush1.msra.mxu0 %v2125
    %2127 = vmatprep.subr.mxu0 0.0
    %v2128 = vand.u32 %v127, 4294901760
    %v2129 = vsub.f32 %v127, %v2128
    %v2130 = vand.u32 %v2129, 4294901760
    %v2131 = vsub.f32 %v2129, %v2130
    %v2132 = vand.u32 %v2131, 4294901760
    %2133 = vmatpush1.msra.mxu0 %v2132
    %2134 = vmatprep.subr.mxu0 0.0
    %v2135 = vand.u32 %v128, 4294901760
    %v2136 = vsub.f32 %v128, %v2135
    %v2137 = vand.u32 %v2136, 4294901760
    %v2138 = vsub.f32 %v2136, %v2137
    %v2139 = vand.u32 %v2138, 4294901760
    %2140 = vmatpush1.msra.mxu0 %v2139
    %2141 = vmatprep.subr.mxu0 0.0
    %v2142 = vand.u32 %v129, 4294901760
    %v2143 = vsub.f32 %v129, %v2142
    %v2144 = vand.u32 %v2143, 4294901760
    %v2145 = vsub.f32 %v2143, %v2144
    %v2146 = vand.u32 %v2145, 4294901760
    %2147 = vmatpush1.msra.mxu0 %v2146
    %2148 = vmatprep.subr.mxu0 0.0
    %v2149 = vand.u32 %v130, 4294901760
    %v2150 = vsub.f32 %v130, %v2149
    %v2151 = vand.u32 %v2150, 4294901760
    %v2152 = vsub.f32 %v2150, %v2151
    %v2153 = vand.u32 %v2152, 4294901760
    %2154 = vmatpush1.msra.mxu0 %v2153
    %2155 = vmatprep.subr.mxu0 0.0
    %v2156 = vand.u32 %v131, 4294901760
    %v2157 = vsub.f32 %v131, %v2156
    %v2158 = vand.u32 %v2157, 4294901760
    %v2159 = vsub.f32 %v2157, %v2158
    %v2160 = vand.u32 %v2159, 4294901760
    %2161 = vmatpush1.msra.mxu0 %v2160
    %2162 = vmatprep.subr.mxu0 0.0
    %v2163 = vand.u32 %v132, 4294901760
    %v2164 = vsub.f32 %v132, %v2163
    %v2165 = vand.u32 %v2164, 4294901760
    %v2166 = vsub.f32 %v2164, %v2165
    %v2167 = vand.u32 %v2166, 4294901760
    %2168 = vmatpush1.msra.mxu0 %v2167
    %2169 = vmatprep.subr.mxu0 0.0
    %v2170 = vand.u32 %v133, 4294901760
    %v2171 = vsub.f32 %v133, %v2170
    %v2172 = vand.u32 %v2171, 4294901760
    %v2173 = vsub.f32 %v2171, %v2172
    %v2174 = vand.u32 %v2173, 4294901760
    %2175 = vmatpush1.msra.mxu0 %v2174
    %2176 = vmatprep.subr.mxu0 0.0
    %v2177 = vand.u32 %v134, 4294901760
    %v2178 = vsub.f32 %v134, %v2177
    %v2179 = vand.u32 %v2178, 4294901760
    %v2180 = vsub.f32 %v2178, %v2179
    %v2181 = vand.u32 %v2180, 4294901760
    %2182 = vmatpush1.msra.mxu0 %v2181
    %2183 = vmatprep.subr.mxu0 0.0
    %v2184 = vand.u32 %v135, 4294901760
    %v2185 = vsub.f32 %v135, %v2184
    %v2186 = vand.u32 %v2185, 4294901760
    %v2187 = vsub.f32 %v2185, %v2186
    %v2188 = vand.u32 %v2187, 4294901760
    %2189 = vmatpush1.msra.mxu0 %v2188
    %2190 = vmatprep.subr.mxu0 0.0
    %v2191 = vand.u32 %v136, 4294901760
    %v2192 = vsub.f32 %v136, %v2191
    %v2193 = vand.u32 %v2192, 4294901760
    %v2194 = vsub.f32 %v2192, %v2193
    %v2195 = vand.u32 %v2194, 4294901760
    %2196 = vmatpush1.msra.mxu0 %v2195
    %2197 = vmatprep.subr.mxu0 0.0
    %v2198 = vand.u32 %v137, 4294901760
    %v2199 = vsub.f32 %v137, %v2198
    %v2200 = vand.u32 %v2199, 4294901760
    %v2201 = vsub.f32 %v2199, %v2200
    %v2202 = vand.u32 %v2201, 4294901760
    %2203 = vmatpush1.msra.mxu0 %v2202
    %2204 = vmatprep.subr.mxu0 0.0
    %v2205 = vand.u32 %v138, 4294901760
    %v2206 = vsub.f32 %v138, %v2205
    %v2207 = vand.u32 %v2206, 4294901760
    %v2208 = vsub.f32 %v2206, %v2207
    %v2209 = vand.u32 %v2208, 4294901760
    %2210 = vmatpush1.msra.mxu0 %v2209
    %2211 = vmatprep.subr.mxu0 0.0
    %v2212 = vand.u32 %v139, 4294901760
    %v2213 = vsub.f32 %v139, %v2212
    %v2214 = vand.u32 %v2213, 4294901760
    %v2215 = vsub.f32 %v2213, %v2214
    %v2216 = vand.u32 %v2215, 4294901760
    %2217 = vmatpush1.msra.mxu0 %v2216
    %2218 = vmatprep.subr.mxu0 0.0
    %v2219 = vand.u32 %v140, 4294901760
    %v2220 = vsub.f32 %v140, %v2219
    %v2221 = vand.u32 %v2220, 4294901760
    %v2222 = vsub.f32 %v2220, %v2221
    %v2223 = vand.u32 %v2222, 4294901760
    %2224 = vmatpush1.msra.mxu0 %v2223
    %2225 = vmatprep.subr.mxu0 0.0
    %v2226 = vand.u32 %v141, 4294901760
    %v2227 = vsub.f32 %v141, %v2226
    %v2228 = vand.u32 %v2227, 4294901760
    %v2229 = vsub.f32 %v2227, %v2228
    %v2230 = vand.u32 %v2229, 4294901760
    %2231 = vmatpush1.msra.mxu0 %v2230
    %2232 = vmatprep.subr.mxu0 0.0
    %v2233 = vand.u32 %v142, 4294901760
    %v2234 = vsub.f32 %v142, %v2233
    %v2235 = vand.u32 %v2234, 4294901760
    %v2236 = vsub.f32 %v2234, %v2235
    %v2237 = vand.u32 %v2236, 4294901760
    %2238 = vmatpush1.msra.mxu0 %v2237
    %2239 = vmatprep.subr.mxu0 0.0
    %v2240 = vand.u32 %v143, 4294901760
    %v2241 = vsub.f32 %v143, %v2240
    %v2242 = vand.u32 %v2241, 4294901760
    %v2243 = vsub.f32 %v2241, %v2242
    %v2244 = vand.u32 %v2243, 4294901760
    %2245 = vmatpush1.msra.mxu0 %v2244
    %2246 = vmatprep.subr.mxu0 0.0
    %v2247 = vand.u32 %v144, 4294901760
    %v2248 = vsub.f32 %v144, %v2247
    %v2249 = vand.u32 %v2248, 4294901760
    %v2250 = vsub.f32 %v2248, %v2249
    %v2251 = vand.u32 %v2250, 4294901760
    %2252 = vmatpush1.msra.mxu0 %v2251
    %2253 = vmatprep.subr.mxu0 0.0
    %v2254 = vand.u32 %v145, 4294901760
    %v2255 = vsub.f32 %v145, %v2254
    %v2256 = vand.u32 %v2255, 4294901760
    %v2257 = vsub.f32 %v2255, %v2256
    %v2258 = vand.u32 %v2257, 4294901760
    %2259 = vmatpush1.msra.mxu0 %v2258
    %2260 = vmatprep.subr.mxu0 0.0
    %v2261 = vand.u32 %v146, 4294901760
    %v2262 = vsub.f32 %v146, %v2261
    %v2263 = vand.u32 %v2262, 4294901760
    %v2264 = vsub.f32 %v2262, %v2263
    %v2265 = vand.u32 %v2264, 4294901760
    %2266 = vmatpush1.msra.mxu0 %v2265
    %2267 = vmatprep.subr.mxu0 0.0
    %v2268 = vand.u32 %v147, 4294901760
    %v2269 = vsub.f32 %v147, %v2268
    %v2270 = vand.u32 %v2269, 4294901760
    %v2271 = vsub.f32 %v2269, %v2270
    %v2272 = vand.u32 %v2271, 4294901760
    %2273 = vmatpush1.msra.mxu0 %v2272
    %v2274 = vand.u32 %v47, 4294901760
    %2275 = vmatprep.mubr.f32.mxu0 %v2274
    %v2276 = vand.u32 %v46, 4294901760
    %2277 = vmatmul.mubr.f32.gmra.mrb[0].mxu0 %v2276
    %v2278 = vpop.f32.mrb[0].mxu0
    %v2279 = vadd.f32 %v2047, %v2278
    %v2280 = vpop.f32.mrb[0].mxu0
    %2281 = vdwg.mxu0
    %2282 = vmatprep.subr.mxu0 0.0
    %v2283 = vand.u32 %v116, 4294901760
    %v2284 = vsub.f32 %v116, %v2283
    %2285 = vmatpush1.msra.mxu0 %v2284
    %2286 = vmatprep.subr.mxu0 0.0
    %v2287 = vand.u32 %v117, 4294901760
    %v2288 = vsub.f32 %v117, %v2287
    %2289 = vmatpush1.msra.mxu0 %v2288
    %2290 = vmatprep.subr.mxu0 0.0
    %v2291 = vand.u32 %v118, 4294901760
    %v2292 = vsub.f32 %v118, %v2291
    %2293 = vmatpush1.msra.mxu0 %v2292
    %2294 = vmatprep.subr.mxu0 0.0
    %v2295 = vand.u32 %v119, 4294901760
    %v2296 = vsub.f32 %v119, %v2295
    %2297 = vmatpush1.msra.mxu0 %v2296
    %2298 = vmatprep.subr.mxu0 0.0
    %v2299 = vand.u32 %v120, 4294901760
    %v2300 = vsub.f32 %v120, %v2299
    %2301 = vmatpush1.msra.mxu0 %v2300
    %2302 = vmatprep.subr.mxu0 0.0
    %v2303 = vand.u32 %v121, 4294901760
    %v2304 = vsub.f32 %v121, %v2303
    %2305 = vmatpush1.msra.mxu0 %v2304
    %2306 = vmatprep.subr.mxu0 0.0
    %v2307 = vand.u32 %v122, 4294901760
    %v2308 = vsub.f32 %v122, %v2307
    %2309 = vmatpush1.msra.mxu0 %v2308
    %2310 = vmatprep.subr.mxu0 0.0
    %v2311 = vand.u32 %v123, 4294901760
    %v2312 = vsub.f32 %v123, %v2311
    %2313 = vmatpush1.msra.mxu0 %v2312
    %2314 = vmatprep.subr.mxu0 0.0
    %v2315 = vand.u32 %v124, 4294901760
    %v2316 = vsub.f32 %v124, %v2315
    %2317 = vmatpush1.msra.mxu0 %v2316
    %2318 = vmatprep.subr.mxu0 0.0
    %v2319 = vand.u32 %v125, 4294901760
    %v2320 = vsub.f32 %v125, %v2319
    %2321 = vmatpush1.msra.mxu0 %v2320
    %2322 = vmatprep.subr.mxu0 0.0
    %v2323 = vand.u32 %v126, 4294901760
    %v2324 = vsub.f32 %v126, %v2323
    %2325 = vmatpush1.msra.mxu0 %v2324
    %2326 = vmatprep.subr.mxu0 0.0
    %v2327 = vand.u32 %v127, 4294901760
    %v2328 = vsub.f32 %v127, %v2327
    %2329 = vmatpush1.msra.mxu0 %v2328
    %2330 = vmatprep.subr.mxu0 0.0
    %v2331 = vand.u32 %v128, 4294901760
    %v2332 = vsub.f32 %v128, %v2331
    %2333 = vmatpush1.msra.mxu0 %v2332
    %2334 = vmatprep.subr.mxu0 0.0
    %v2335 = vand.u32 %v129, 4294901760
    %v2336 = vsub.f32 %v129, %v2335
    %2337 = vmatpush1.msra.mxu0 %v2336
    %2338 = vmatprep.subr.mxu0 0.0
    %v2339 = vand.u32 %v130, 4294901760
    %v2340 = vsub.f32 %v130, %v2339
    %2341 = vmatpush1.msra.mxu0 %v2340
    %2342 = vmatprep.subr.mxu0 0.0
    %v2343 = vand.u32 %v131, 4294901760
    %v2344 = vsub.f32 %v131, %v2343
    %2345 = vmatpush1.msra.mxu0 %v2344
    %2346 = vmatprep.subr.mxu0 0.0
    %v2347 = vand.u32 %v132, 4294901760
    %v2348 = vsub.f32 %v132, %v2347
    %2349 = vmatpush1.msra.mxu0 %v2348
    %2350 = vmatprep.subr.mxu0 0.0
    %v2351 = vand.u32 %v133, 4294901760
    %v2352 = vsub.f32 %v133, %v2351
    %2353 = vmatpush1.msra.mxu0 %v2352
    %2354 = vmatprep.subr.mxu0 0.0
    %v2355 = vand.u32 %v134, 4294901760
    %v2356 = vsub.f32 %v134, %v2355
    %2357 = vmatpush1.msra.mxu0 %v2356
    %2358 = vmatprep.subr.mxu0 0.0
    %v2359 = vand.u32 %v135, 4294901760
    %v2360 = vsub.f32 %v135, %v2359
    %2361 = vmatpush1.msra.mxu0 %v2360
    %2362 = vmatprep.subr.mxu0 0.0
    %v2363 = vand.u32 %v136, 4294901760
    %v2364 = vsub.f32 %v136, %v2363
    %2365 = vmatpush1.msra.mxu0 %v2364
    %2366 = vmatprep.subr.mxu0 0.0
    %v2367 = vand.u32 %v137, 4294901760
    %v2368 = vsub.f32 %v137, %v2367
    %2369 = vmatpush1.msra.mxu0 %v2368
    %2370 = vmatprep.subr.mxu0 0.0
    %v2371 = vand.u32 %v138, 4294901760
    %v2372 = vsub.f32 %v138, %v2371
    %2373 = vmatpush1.msra.mxu0 %v2372
    %2374 = vmatprep.subr.mxu0 0.0
    %v2375 = vand.u32 %v139, 4294901760
    %v2376 = vsub.f32 %v139, %v2375
    %2377 = vmatpush1.msra.mxu0 %v2376
    %2378 = vmatprep.subr.mxu0 0.0
    %v2379 = vand.u32 %v140, 4294901760
    %v2380 = vsub.f32 %v140, %v2379
    %2381 = vmatpush1.msra.mxu0 %v2380
    %2382 = vmatprep.subr.mxu0 0.0
    %v2383 = vand.u32 %v141, 4294901760
    %v2384 = vsub.f32 %v141, %v2383
    %2385 = vmatpush1.msra.mxu0 %v2384
    %2386 = vmatprep.subr.mxu0 0.0
    %v2387 = vand.u32 %v142, 4294901760
    %v2388 = vsub.f32 %v142, %v2387
    %2389 = vmatpush1.msra.mxu0 %v2388
    %2390 = vmatprep.subr.mxu0 0.0
    %v2391 = vand.u32 %v143, 4294901760
    %v2392 = vsub.f32 %v143, %v2391
    %2393 = vmatpush1.msra.mxu0 %v2392
    %2394 = vmatprep.subr.mxu0 0.0
    %v2395 = vand.u32 %v144, 4294901760
    %v2396 = vsub.f32 %v144, %v2395
    %2397 = vmatpush1.msra.mxu0 %v2396
    %2398 = vmatprep.subr.mxu0 0.0
    %v2399 = vand.u32 %v145, 4294901760
    %v2400 = vsub.f32 %v145, %v2399
    %2401 = vmatpush1.msra.mxu0 %v2400
    %2402 = vmatprep.subr.mxu0 0.0
    %v2403 = vand.u32 %v146, 4294901760
    %v2404 = vsub.f32 %v146, %v2403
    %2405 = vmatpush1.msra.mxu0 %v2404
    %2406 = vmatprep.subr.mxu0 0.0
    %v2407 = vand.u32 %v147, 4294901760
    %v2408 = vsub.f32 %v147, %v2407
    %2409 = vmatpush1.msra.mxu0 %v2408
    %v2410 = vand.u32 %v47, 4294901760
    %v2411 = vsub.f32 %v47, %v2410
    %2412 = vmatprep.mubr.f32.mxu0 %v2411
    %v2413 = vand.u32 %v46, 4294901760
    %v2414 = vsub.f32 %v46, %v2413
    %2415 = vmatmul.mubr.f32.gmra.mrb[0].mxu0 %v2414
    %v2416 = vpop.f32.mrb[0].mxu0
    %v2417 = vadd.f32 %v2279, %v2416
    %v2418 = vpop.f32.mrb[0].mxu0
    %2419 = vdwg.mxu0
    %2420 = vmatprep.subr.mxu0 0.0
    %v2421 = vand.u32 %v116, 4294901760
    %2422 = vmatpush1.msra.mxu0 %v2421
    %2423 = vmatprep.subr.mxu0 0.0
    %v2424 = vand.u32 %v117, 4294901760
    %2425 = vmatpush1.msra.mxu0 %v2424
    %2426 = vmatprep.subr.mxu0 0.0
    %v2427 = vand.u32 %v118, 4294901760
    %2428 = vmatpush1.msra.mxu0 %v2427
    %2429 = vmatprep.subr.mxu0 0.0
    %v2430 = vand.u32 %v119, 4294901760
    %2431 = vmatpush1.msra.mxu0 %v2430
    %2432 = vmatprep.subr.mxu0 0.0
    %v2433 = vand.u32 %v120, 4294901760
    %2434 = vmatpush1.msra.mxu0 %v2433
    %2435 = vmatprep.subr.mxu0 0.0
    %v2436 = vand.u32 %v121, 4294901760
    %2437 = vmatpush1.msra.mxu0 %v2436
    %2438 = vmatprep.subr.mxu0 0.0
    %v2439 = vand.u32 %v122, 4294901760
    %2440 = vmatpush1.msra.mxu0 %v2439
    %2441 = vmatprep.subr.mxu0 0.0
    %v2442 = vand.u32 %v123, 4294901760
    %2443 = vmatpush1.msra.mxu0 %v2442
    %2444 = vmatprep.subr.mxu0 0.0
    %v2445 = vand.u32 %v124, 4294901760
    %2446 = vmatpush1.msra.mxu0 %v2445
    %2447 = vmatprep.subr.mxu0 0.0
    %v2448 = vand.u32 %v125, 4294901760
    %2449 = vmatpush1.msra.mxu0 %v2448
    %2450 = vmatprep.subr.mxu0 0.0
    %v2451 = vand.u32 %v126, 4294901760
    %2452 = vmatpush1.msra.mxu0 %v2451
    %2453 = vmatprep.subr.mxu0 0.0
    %v2454 = vand.u32 %v127, 4294901760
    %2455 = vmatpush1.msra.mxu0 %v2454
    %2456 = vmatprep.subr.mxu0 0.0
    %v2457 = vand.u32 %v128, 4294901760
    %2458 = vmatpush1.msra.mxu0 %v2457
    %2459 = vmatprep.subr.mxu0 0.0
    %v2460 = vand.u32 %v129, 4294901760
    %2461 = vmatpush1.msra.mxu0 %v2460
    %2462 = vmatprep.subr.mxu0 0.0
    %v2463 = vand.u32 %v130, 4294901760
    %2464 = vmatpush1.msra.mxu0 %v2463
    %2465 = vmatprep.subr.mxu0 0.0
    %v2466 = vand.u32 %v131, 4294901760
    %2467 = vmatpush1.msra.mxu0 %v2466
    %2468 = vmatprep.subr.mxu0 0.0
    %v2469 = vand.u32 %v132, 4294901760
    %2470 = vmatpush1.msra.mxu0 %v2469
    %2471 = vmatprep.subr.mxu0 0.0
    %v2472 = vand.u32 %v133, 4294901760
    %2473 = vmatpush1.msra.mxu0 %v2472
    %2474 = vmatprep.subr.mxu0 0.0
    %v2475 = vand.u32 %v134, 4294901760
    %2476 = vmatpush1.msra.mxu0 %v2475
    %2477 = vmatprep.subr.mxu0 0.0
    %v2478 = vand.u32 %v135, 4294901760
    %2479 = vmatpush1.msra.mxu0 %v2478
    %2480 = vmatprep.subr.mxu0 0.0
    %v2481 = vand.u32 %v136, 4294901760
    %2482 = vmatpush1.msra.mxu0 %v2481
    %2483 = vmatprep.subr.mxu0 0.0
    %v2484 = vand.u32 %v137, 4294901760
    %2485 = vmatpush1.msra.mxu0 %v2484
    %2486 = vmatprep.subr.mxu0 0.0
    %v2487 = vand.u32 %v138, 4294901760
    %2488 = vmatpush1.msra.mxu0 %v2487
    %2489 = vmatprep.subr.mxu0 0.0
    %v2490 = vand.u32 %v139, 4294901760
    %2491 = vmatpush1.msra.mxu0 %v2490
    %2492 = vmatprep.subr.mxu0 0.0
    %v2493 = vand.u32 %v140, 4294901760
    %2494 = vmatpush1.msra.mxu0 %v2493
    %2495 = vmatprep.subr.mxu0 0.0
    %v2496 = vand.u32 %v141, 4294901760
    %2497 = vmatpush1.msra.mxu0 %v2496
    %2498 = vmatprep.subr.mxu0 0.0
    %v2499 = vand.u32 %v142, 4294901760
    %2500 = vmatpush1.msra.mxu0 %v2499
    %2501 = vmatprep.subr.mxu0 0.0
    %v2502 = vand.u32 %v143, 4294901760
    %2503 = vmatpush1.msra.mxu0 %v2502
    %2504 = vmatprep.subr.mxu0 0.0
    %v2505 = vand.u32 %v144, 4294901760
    %2506 = vmatpush1.msra.mxu0 %v2505
    %2507 = vmatprep.subr.mxu0 0.0
    %v2508 = vand.u32 %v145, 4294901760
    %2509 = vmatpush1.msra.mxu0 %v2508
    %2510 = vmatprep.subr.mxu0 0.0
    %v2511 = vand.u32 %v146, 4294901760
    %2512 = vmatpush1.msra.mxu0 %v2511
    %2513 = vmatprep.subr.mxu0 0.0
    %v2514 = vand.u32 %v147, 4294901760
    %2515 = vmatpush1.msra.mxu0 %v2514
    %v2516 = vand.u32 %v47, 4294901760
    %v2517 = vsub.f32 %v47, %v2516
    %v2518 = vand.u32 %v2517, 4294901760
    %2519 = vmatprep.mubr.f32.mxu0 %v2518
    %v2520 = vand.u32 %v46, 4294901760
    %v2521 = vsub.f32 %v46, %v2520
    %v2522 = vand.u32 %v2521, 4294901760
    %2523 = vmatmul.mubr.f32.gmra.mrb[0].mxu0 %v2522
    %v2524 = vpop.f32.mrb[0].mxu0
    %v2525 = vadd.f32 %v2417, %v2524
    %v2526 = vpop.f32.mrb[0].mxu0
    %2527 = vdwg.mxu0
    %2528 = vmatprep.subr.mxu0 0.0
    %v2529 = vand.u32 %v116, 4294901760
    %v2530 = vsub.f32 %v116, %v2529
    %v2531 = vand.u32 %v2530, 4294901760
    %2532 = vmatpush1.msra.mxu0 %v2531
    %2533 = vmatprep.subr.mxu0 0.0
    %v2534 = vand.u32 %v117, 4294901760
    %v2535 = vsub.f32 %v117, %v2534
    %v2536 = vand.u32 %v2535, 4294901760
    %2537 = vmatpush1.msra.mxu0 %v2536
    %2538 = vmatprep.subr.mxu0 0.0
    %v2539 = vand.u32 %v118, 4294901760
    %v2540 = vsub.f32 %v118, %v2539
    %v2541 = vand.u32 %v2540, 4294901760
    %2542 = vmatpush1.msra.mxu0 %v2541
    %2543 = vmatprep.subr.mxu0 0.0
    %v2544 = vand.u32 %v119, 4294901760
    %v2545 = vsub.f32 %v119, %v2544
    %v2546 = vand.u32 %v2545, 4294901760
    %2547 = vmatpush1.msra.mxu0 %v2546
    %2548 = vmatprep.subr.mxu0 0.0
    %v2549 = vand.u32 %v120, 4294901760
    %v2550 = vsub.f32 %v120, %v2549
    %v2551 = vand.u32 %v2550, 4294901760
    %2552 = vmatpush1.msra.mxu0 %v2551
    %2553 = vmatprep.subr.mxu0 0.0
    %v2554 = vand.u32 %v121, 4294901760
    %v2555 = vsub.f32 %v121, %v2554
    %v2556 = vand.u32 %v2555, 4294901760
    %2557 = vmatpush1.msra.mxu0 %v2556
    %2558 = vmatprep.subr.mxu0 0.0
    %v2559 = vand.u32 %v122, 4294901760
    %v2560 = vsub.f32 %v122, %v2559
    %v2561 = vand.u32 %v2560, 4294901760
    %2562 = vmatpush1.msra.mxu0 %v2561
    %2563 = vmatprep.subr.mxu0 0.0
    %v2564 = vand.u32 %v123, 4294901760
    %v2565 = vsub.f32 %v123, %v2564
    %v2566 = vand.u32 %v2565, 4294901760
    %2567 = vmatpush1.msra.mxu0 %v2566
    %2568 = vmatprep.subr.mxu0 0.0
    %v2569 = vand.u32 %v124, 4294901760
    %v2570 = vsub.f32 %v124, %v2569
    %v2571 = vand.u32 %v2570, 4294901760
    %2572 = vmatpush1.msra.mxu0 %v2571
    %2573 = vmatprep.subr.mxu0 0.0
    %v2574 = vand.u32 %v125, 4294901760
    %v2575 = vsub.f32 %v125, %v2574
    %v2576 = vand.u32 %v2575, 4294901760
    %2577 = vmatpush1.msra.mxu0 %v2576
    %2578 = vmatprep.subr.mxu0 0.0
    %v2579 = vand.u32 %v126, 4294901760
    %v2580 = vsub.f32 %v126, %v2579
    %v2581 = vand.u32 %v2580, 4294901760
    %2582 = vmatpush1.msra.mxu0 %v2581
    %2583 = vmatprep.subr.mxu0 0.0
    %v2584 = vand.u32 %v127, 4294901760
    %v2585 = vsub.f32 %v127, %v2584
    %v2586 = vand.u32 %v2585, 4294901760
    %2587 = vmatpush1.msra.mxu0 %v2586
    %2588 = vmatprep.subr.mxu0 0.0
    %v2589 = vand.u32 %v128, 4294901760
    %v2590 = vsub.f32 %v128, %v2589
    %v2591 = vand.u32 %v2590, 4294901760
    %2592 = vmatpush1.msra.mxu0 %v2591
    %2593 = vmatprep.subr.mxu0 0.0
    %v2594 = vand.u32 %v129, 4294901760
    %v2595 = vsub.f32 %v129, %v2594
    %v2596 = vand.u32 %v2595, 4294901760
    %2597 = vmatpush1.msra.mxu0 %v2596
    %2598 = vmatprep.subr.mxu0 0.0
    %v2599 = vand.u32 %v130, 4294901760
    %v2600 = vsub.f32 %v130, %v2599
    %v2601 = vand.u32 %v2600, 4294901760
    %2602 = vmatpush1.msra.mxu0 %v2601
    %2603 = vmatprep.subr.mxu0 0.0
    %v2604 = vand.u32 %v131, 4294901760
    %v2605 = vsub.f32 %v131, %v2604
    %v2606 = vand.u32 %v2605, 4294901760
    %2607 = vmatpush1.msra.mxu0 %v2606
    %2608 = vmatprep.subr.mxu0 0.0
    %v2609 = vand.u32 %v132, 4294901760
    %v2610 = vsub.f32 %v132, %v2609
    %v2611 = vand.u32 %v2610, 4294901760
    %2612 = vmatpush1.msra.mxu0 %v2611
    %2613 = vmatprep.subr.mxu0 0.0
    %v2614 = vand.u32 %v133, 4294901760
    %v2615 = vsub.f32 %v133, %v2614
    %v2616 = vand.u32 %v2615, 4294901760
    %2617 = vmatpush1.msra.mxu0 %v2616
    %2618 = vmatprep.subr.mxu0 0.0
    %v2619 = vand.u32 %v134, 4294901760
    %v2620 = vsub.f32 %v134, %v2619
    %v2621 = vand.u32 %v2620, 4294901760
    %2622 = vmatpush1.msra.mxu0 %v2621
    %2623 = vmatprep.subr.mxu0 0.0
    %v2624 = vand.u32 %v135, 4294901760
    %v2625 = vsub.f32 %v135, %v2624
    %v2626 = vand.u32 %v2625, 4294901760
    %2627 = vmatpush1.msra.mxu0 %v2626
    %2628 = vmatprep.subr.mxu0 0.0
    %v2629 = vand.u32 %v136, 4294901760
    %v2630 = vsub.f32 %v136, %v2629
    %v2631 = vand.u32 %v2630, 4294901760
    %2632 = vmatpush1.msra.mxu0 %v2631
    %2633 = vmatprep.subr.mxu0 0.0
    %v2634 = vand.u32 %v137, 4294901760
    %v2635 = vsub.f32 %v137, %v2634
    %v2636 = vand.u32 %v2635, 4294901760
    %2637 = vmatpush1.msra.mxu0 %v2636
    %2638 = vmatprep.subr.mxu0 0.0
    %v2639 = vand.u32 %v138, 4294901760
    %v2640 = vsub.f32 %v138, %v2639
    %v2641 = vand.u32 %v2640, 4294901760
    %2642 = vmatpush1.msra.mxu0 %v2641
    %2643 = vmatprep.subr.mxu0 0.0
    %v2644 = vand.u32 %v139, 4294901760
    %v2645 = vsub.f32 %v139, %v2644
    %v2646 = vand.u32 %v2645, 4294901760
    %2647 = vmatpush1.msra.mxu0 %v2646
    %2648 = vmatprep.subr.mxu0 0.0
    %v2649 = vand.u32 %v140, 4294901760
    %v2650 = vsub.f32 %v140, %v2649
    %v2651 = vand.u32 %v2650, 4294901760
    %2652 = vmatpush1.msra.mxu0 %v2651
    %2653 = vmatprep.subr.mxu0 0.0
    %v2654 = vand.u32 %v141, 4294901760
    %v2655 = vsub.f32 %v141, %v2654
    %v2656 = vand.u32 %v2655, 4294901760
    %2657 = vmatpush1.msra.mxu0 %v2656
    %2658 = vmatprep.subr.mxu0 0.0
    %v2659 = vand.u32 %v142, 4294901760
    %v2660 = vsub.f32 %v142, %v2659
    %v2661 = vand.u32 %v2660, 4294901760
    %2662 = vmatpush1.msra.mxu0 %v2661
    %2663 = vmatprep.subr.mxu0 0.0
    %v2664 = vand.u32 %v143, 4294901760
    %v2665 = vsub.f32 %v143, %v2664
    %v2666 = vand.u32 %v2665, 4294901760
    %2667 = vmatpush1.msra.mxu0 %v2666
    %2668 = vmatprep.subr.mxu0 0.0
    %v2669 = vand.u32 %v144, 4294901760
    %v2670 = vsub.f32 %v144, %v2669
    %v2671 = vand.u32 %v2670, 4294901760
    %2672 = vmatpush1.msra.mxu0 %v2671
    %2673 = vmatprep.subr.mxu0 0.0
    %v2674 = vand.u32 %v145, 4294901760
    %v2675 = vsub.f32 %v145, %v2674
    %v2676 = vand.u32 %v2675, 4294901760
    %2677 = vmatpush1.msra.mxu0 %v2676
    %2678 = vmatprep.subr.mxu0 0.0
    %v2679 = vand.u32 %v146, 4294901760
    %v2680 = vsub.f32 %v146, %v2679
    %v2681 = vand.u32 %v2680, 4294901760
    %2682 = vmatpush1.msra.mxu0 %v2681
    %2683 = vmatprep.subr.mxu0 0.0
    %v2684 = vand.u32 %v147, 4294901760
    %v2685 = vsub.f32 %v147, %v2684
    %v2686 = vand.u32 %v2685, 4294901760
    %2687 = vmatpush1.msra.mxu0 %v2686
    %v2688 = vand.u32 %v47, 4294901760
    %2689 = vmatprep.mubr.f32.mxu0 %v2688
    %v2690 = vand.u32 %v46, 4294901760
    %2691 = vmatmul.mubr.f32.gmra.mrb[0].mxu0 %v2690
    %v2692 = vpop.f32.mrb[0].mxu0
    %v2693 = vadd.f32 %v2525, %v2692
    %v2694 = vpop.f32.mrb[0].mxu0
    %2695 = vdwg.mxu0
    %2696 = vmatprep.subr.mxu0 0.0
    %v2697 = vand.u32 %v116, 4294901760
    %2698 = vmatpush1.msra.mxu0 %v2697
    %2699 = vmatprep.subr.mxu0 0.0
    %v2700 = vand.u32 %v117, 4294901760
    %2701 = vmatpush1.msra.mxu0 %v2700
    %2702 = vmatprep.subr.mxu0 0.0
    %v2703 = vand.u32 %v118, 4294901760
    %2704 = vmatpush1.msra.mxu0 %v2703
    %2705 = vmatprep.subr.mxu0 0.0
    %v2706 = vand.u32 %v119, 4294901760
    %2707 = vmatpush1.msra.mxu0 %v2706
    %2708 = vmatprep.subr.mxu0 0.0
    %v2709 = vand.u32 %v120, 4294901760
    %2710 = vmatpush1.msra.mxu0 %v2709
    %2711 = vmatprep.subr.mxu0 0.0
    %v2712 = vand.u32 %v121, 4294901760
    %2713 = vmatpush1.msra.mxu0 %v2712
    %2714 = vmatprep.subr.mxu0 0.0
    %v2715 = vand.u32 %v122, 4294901760
    %2716 = vmatpush1.msra.mxu0 %v2715
    %2717 = vmatprep.subr.mxu0 0.0
    %v2718 = vand.u32 %v123, 4294901760
    %2719 = vmatpush1.msra.mxu0 %v2718
    %2720 = vmatprep.subr.mxu0 0.0
    %v2721 = vand.u32 %v124, 4294901760
    %2722 = vmatpush1.msra.mxu0 %v2721
    %2723 = vmatprep.subr.mxu0 0.0
    %v2724 = vand.u32 %v125, 4294901760
    %2725 = vmatpush1.msra.mxu0 %v2724
    %2726 = vmatprep.subr.mxu0 0.0
    %v2727 = vand.u32 %v126, 4294901760
    %2728 = vmatpush1.msra.mxu0 %v2727
    %2729 = vmatprep.subr.mxu0 0.0
    %v2730 = vand.u32 %v127, 4294901760
    %2731 = vmatpush1.msra.mxu0 %v2730
    %2732 = vmatprep.subr.mxu0 0.0
    %v2733 = vand.u32 %v128, 4294901760
    %2734 = vmatpush1.msra.mxu0 %v2733
    %2735 = vmatprep.subr.mxu0 0.0
    %v2736 = vand.u32 %v129, 4294901760
    %2737 = vmatpush1.msra.mxu0 %v2736
    %2738 = vmatprep.subr.mxu0 0.0
    %v2739 = vand.u32 %v130, 4294901760
    %2740 = vmatpush1.msra.mxu0 %v2739
    %2741 = vmatprep.subr.mxu0 0.0
    %v2742 = vand.u32 %v131, 4294901760
    %2743 = vmatpush1.msra.mxu0 %v2742
    %2744 = vmatprep.subr.mxu0 0.0
    %v2745 = vand.u32 %v132, 4294901760
    %2746 = vmatpush1.msra.mxu0 %v2745
    %2747 = vmatprep.subr.mxu0 0.0
    %v2748 = vand.u32 %v133, 4294901760
    %2749 = vmatpush1.msra.mxu0 %v2748
    %2750 = vmatprep.subr.mxu0 0.0
    %v2751 = vand.u32 %v134, 4294901760
    %2752 = vmatpush1.msra.mxu0 %v2751
    %2753 = vmatprep.subr.mxu0 0.0
    %v2754 = vand.u32 %v135, 4294901760
    %2755 = vmatpush1.msra.mxu0 %v2754
    %2756 = vmatprep.subr.mxu0 0.0
    %v2757 = vand.u32 %v136, 4294901760
    %2758 = vmatpush1.msra.mxu0 %v2757
    %2759 = vmatprep.subr.mxu0 0.0
    %v2760 = vand.u32 %v137, 4294901760
    %2761 = vmatpush1.msra.mxu0 %v2760
    %2762 = vmatprep.subr.mxu0 0.0
    %v2763 = vand.u32 %v138, 4294901760
    %2764 = vmatpush1.msra.mxu0 %v2763
    %2765 = vmatprep.subr.mxu0 0.0
    %v2766 = vand.u32 %v139, 4294901760
    %2767 = vmatpush1.msra.mxu0 %v2766
    %2768 = vmatprep.subr.mxu0 0.0
    %v2769 = vand.u32 %v140, 4294901760
    %2770 = vmatpush1.msra.mxu0 %v2769
    %2771 = vmatprep.subr.mxu0 0.0
    %v2772 = vand.u32 %v141, 4294901760
    %2773 = vmatpush1.msra.mxu0 %v2772
    %2774 = vmatprep.subr.mxu0 0.0
    %v2775 = vand.u32 %v142, 4294901760
    %2776 = vmatpush1.msra.mxu0 %v2775
    %2777 = vmatprep.subr.mxu0 0.0
    %v2778 = vand.u32 %v143, 4294901760
    %2779 = vmatpush1.msra.mxu0 %v2778
    %2780 = vmatprep.subr.mxu0 0.0
    %v2781 = vand.u32 %v144, 4294901760
    %2782 = vmatpush1.msra.mxu0 %v2781
    %2783 = vmatprep.subr.mxu0 0.0
    %v2784 = vand.u32 %v145, 4294901760
    %2785 = vmatpush1.msra.mxu0 %v2784
    %2786 = vmatprep.subr.mxu0 0.0
    %v2787 = vand.u32 %v146, 4294901760
    %2788 = vmatpush1.msra.mxu0 %v2787
    %2789 = vmatprep.subr.mxu0 0.0
    %v2790 = vand.u32 %v147, 4294901760
    %2791 = vmatpush1.msra.mxu0 %v2790
    %v2792 = vand.u32 %v47, 4294901760
    %2793 = vmatprep.mubr.f32.mxu0 %v2792
    %v2794 = vand.u32 %v46, 4294901760
    %2795 = vmatmul.mubr.f32.gmra.mrb[0].mxu0 %v2794
    %v2796 = vpop.f32.mrb[0].mxu0
    %v2797 = vadd.f32 %v2693, %v2796
    %v2798 = vpop.f32.mrb[0].mxu0
    %2799 = vdwg.mxu0
    %2800 = vmatprep.subr.mxu0 0.0
    %v2801 = vand.u32 %v148, 4294901760
    %2802 = vmatpush1.msra.mxu0 %v2801
    %2803 = vmatprep.subr.mxu0 0.0
    %v2804 = vand.u32 %v149, 4294901760
    %2805 = vmatpush1.msra.mxu0 %v2804
    %2806 = vmatprep.subr.mxu0 0.0
    %v2807 = vand.u32 %v150, 4294901760
    %2808 = vmatpush1.msra.mxu0 %v2807
    %2809 = vmatprep.subr.mxu0 0.0
    %v2810 = vand.u32 %v151, 4294901760
    %2811 = vmatpush1.msra.mxu0 %v2810
    %2812 = vmatprep.subr.mxu0 0.0
    %v2813 = vand.u32 %v152, 4294901760
    %2814 = vmatpush1.msra.mxu0 %v2813
    %2815 = vmatprep.subr.mxu0 0.0
    %v2816 = vand.u32 %v153, 4294901760
    %2817 = vmatpush1.msra.mxu0 %v2816
    %2818 = vmatprep.subr.mxu0 0.0
    %v2819 = vand.u32 %v154, 4294901760
    %2820 = vmatpush1.msra.mxu0 %v2819
    %2821 = vmatprep.subr.mxu0 0.0
    %v2822 = vand.u32 %v155, 4294901760
    %2823 = vmatpush1.msra.mxu0 %v2822
    %2824 = vmatprep.subr.mxu0 0.0
    %v2825 = vand.u32 %v156, 4294901760
    %2826 = vmatpush1.msra.mxu0 %v2825
    %2827 = vmatprep.subr.mxu0 0.0
    %v2828 = vand.u32 %v157, 4294901760
    %2829 = vmatpush1.msra.mxu0 %v2828
    %2830 = vmatprep.subr.mxu0 0.0
    %v2831 = vand.u32 %v158, 4294901760
    %2832 = vmatpush1.msra.mxu0 %v2831
    %2833 = vmatprep.subr.mxu0 0.0
    %v2834 = vand.u32 %v159, 4294901760
    %2835 = vmatpush1.msra.mxu0 %v2834
    %2836 = vmatprep.subr.mxu0 0.0
    %v2837 = vand.u32 %v160, 4294901760
    %2838 = vmatpush1.msra.mxu0 %v2837
    %2839 = vmatprep.subr.mxu0 0.0
    %v2840 = vand.u32 %v161, 4294901760
    %2841 = vmatpush1.msra.mxu0 %v2840
    %2842 = vmatprep.subr.mxu0 0.0
    %v2843 = vand.u32 %v162, 4294901760
    %2844 = vmatpush1.msra.mxu0 %v2843
    %2845 = vmatprep.subr.mxu0 0.0
    %v2846 = vand.u32 %v163, 4294901760
    %2847 = vmatpush1.msra.mxu0 %v2846
    %2848 = vmatprep.subr.mxu0 0.0
    %v2849 = vand.u32 %v164, 4294901760
    %2850 = vmatpush1.msra.mxu0 %v2849
    %2851 = vmatprep.subr.mxu0 0.0
    %v2852 = vand.u32 %v165, 4294901760
    %2853 = vmatpush1.msra.mxu0 %v2852
    %2854 = vmatprep.subr.mxu0 0.0
    %v2855 = vand.u32 %v166, 4294901760
    %2856 = vmatpush1.msra.mxu0 %v2855
    %2857 = vmatprep.subr.mxu0 0.0
    %v2858 = vand.u32 %v167, 4294901760
    %2859 = vmatpush1.msra.mxu0 %v2858
    %2860 = vmatprep.subr.mxu0 0.0
    %v2861 = vand.u32 %v168, 4294901760
    %2862 = vmatpush1.msra.mxu0 %v2861
    %2863 = vmatprep.subr.mxu0 0.0
    %v2864 = vand.u32 %v169, 4294901760
    %2865 = vmatpush1.msra.mxu0 %v2864
    %2866 = vmatprep.subr.mxu0 0.0
    %v2867 = vand.u32 %v170, 4294901760
    %2868 = vmatpush1.msra.mxu0 %v2867
    %2869 = vmatprep.subr.mxu0 0.0
    %v2870 = vand.u32 %v171, 4294901760
    %2871 = vmatpush1.msra.mxu0 %v2870
    %2872 = vmatprep.subr.mxu0 0.0
    %v2873 = vand.u32 %v172, 4294901760
    %2874 = vmatpush1.msra.mxu0 %v2873
    %2875 = vmatprep.subr.mxu0 0.0
    %v2876 = vand.u32 %v173, 4294901760
    %2877 = vmatpush1.msra.mxu0 %v2876
    %2878 = vmatprep.subr.mxu0 0.0
    %v2879 = vand.u32 %v174, 4294901760
    %2880 = vmatpush1.msra.mxu0 %v2879
    %2881 = vmatprep.subr.mxu0 0.0
    %v2882 = vand.u32 %v175, 4294901760
    %2883 = vmatpush1.msra.mxu0 %v2882
    %2884 = vmatprep.subr.mxu0 0.0
    %v2885 = vand.u32 %v176, 4294901760
    %2886 = vmatpush1.msra.mxu0 %v2885
    %2887 = vmatprep.subr.mxu0 0.0
    %v2888 = vand.u32 %v177, 4294901760
    %2889 = vmatpush1.msra.mxu0 %v2888
    %2890 = vmatprep.subr.mxu0 0.0
    %v2891 = vand.u32 %v178, 4294901760
    %2892 = vmatpush1.msra.mxu0 %v2891
    %2893 = vmatprep.subr.mxu0 0.0
    %v2894 = vand.u32 %v179, 4294901760
    %2895 = vmatpush1.msra.mxu0 %v2894
    %v2896 = vand.u32 %v49, 4294901760
    %v2897 = vsub.f32 %v49, %v2896
    %v2898 = vand.u32 %v2897, 4294901760
    %v2899 = vsub.f32 %v2897, %v2898
    %v2900 = vand.u32 %v2899, 4294901760
    %2901 = vmatprep.mubr.f32.mxu0 %v2900
    %v2902 = vand.u32 %v48, 4294901760
    %v2903 = vsub.f32 %v48, %v2902
    %v2904 = vand.u32 %v2903, 4294901760
    %v2905 = vsub.f32 %v2903, %v2904
    %v2906 = vand.u32 %v2905, 4294901760
    %2907 = vmatmul.mubr.f32.gmra.mrb[0].mxu0 %v2906
    %v2908 = vpop.f32.mrb[0].mxu0
    %v2909 = vadd.f32 %v2797, %v2908
    %v2910 = vpop.f32.mrb[0].mxu0
    %2911 = vdwg.mxu0
    %2912 = vmatprep.subr.mxu0 0.0
    %v2913 = vand.u32 %v148, 4294901760
    %v2914 = vsub.f32 %v148, %v2913
    %v2915 = vand.u32 %v2914, 4294901760
    %v2916 = vsub.f32 %v2914, %v2915
    %v2917 = vand.u32 %v2916, 4294901760
    %2918 = vmatpush1.msra.mxu0 %v2917
    %2919 = vmatprep.subr.mxu0 0.0
    %v2920 = vand.u32 %v149, 4294901760
    %v2921 = vsub.f32 %v149, %v2920
    %v2922 = vand.u32 %v2921, 4294901760
    %v2923 = vsub.f32 %v2921, %v2922
    %v2924 = vand.u32 %v2923, 4294901760
    %2925 = vmatpush1.msra.mxu0 %v2924
    %2926 = vmatprep.subr.mxu0 0.0
    %v2927 = vand.u32 %v150, 4294901760
    %v2928 = vsub.f32 %v150, %v2927
    %v2929 = vand.u32 %v2928, 4294901760
    %v2930 = vsub.f32 %v2928, %v2929
    %v2931 = vand.u32 %v2930, 4294901760
    %2932 = vmatpush1.msra.mxu0 %v2931
    %2933 = vmatprep.subr.mxu0 0.0
    %v2934 = vand.u32 %v151, 4294901760
    %v2935 = vsub.f32 %v151, %v2934
    %v2936 = vand.u32 %v2935, 4294901760
    %v2937 = vsub.f32 %v2935, %v2936
    %v2938 = vand.u32 %v2937, 4294901760
    %2939 = vmatpush1.msra.mxu0 %v2938
    %2940 = vmatprep.subr.mxu0 0.0
    %v2941 = vand.u32 %v152, 4294901760
    %v2942 = vsub.f32 %v152, %v2941
    %v2943 = vand.u32 %v2942, 4294901760
    %v2944 = vsub.f32 %v2942, %v2943
    %v2945 = vand.u32 %v2944, 4294901760
    %2946 = vmatpush1.msra.mxu0 %v2945
    %2947 = vmatprep.subr.mxu0 0.0
    %v2948 = vand.u32 %v153, 4294901760
    %v2949 = vsub.f32 %v153, %v2948
    %v2950 = vand.u32 %v2949, 4294901760
    %v2951 = vsub.f32 %v2949, %v2950
    %v2952 = vand.u32 %v2951, 4294901760
    %2953 = vmatpush1.msra.mxu0 %v2952
    %2954 = vmatprep.subr.mxu0 0.0
    %v2955 = vand.u32 %v154, 4294901760
    %v2956 = vsub.f32 %v154, %v2955
    %v2957 = vand.u32 %v2956, 4294901760
    %v2958 = vsub.f32 %v2956, %v2957
    %v2959 = vand.u32 %v2958, 4294901760
    %2960 = vmatpush1.msra.mxu0 %v2959
    %2961 = vmatprep.subr.mxu0 0.0
    %v2962 = vand.u32 %v155, 4294901760
    %v2963 = vsub.f32 %v155, %v2962
    %v2964 = vand.u32 %v2963, 4294901760
    %v2965 = vsub.f32 %v2963, %v2964
    %v2966 = vand.u32 %v2965, 4294901760
    %2967 = vmatpush1.msra.mxu0 %v2966
    %2968 = vmatprep.subr.mxu0 0.0
    %v2969 = vand.u32 %v156, 4294901760
    %v2970 = vsub.f32 %v156, %v2969
    %v2971 = vand.u32 %v2970, 4294901760
    %v2972 = vsub.f32 %v2970, %v2971
    %v2973 = vand.u32 %v2972, 4294901760
    %2974 = vmatpush1.msra.mxu0 %v2973
    %2975 = vmatprep.subr.mxu0 0.0
    %v2976 = vand.u32 %v157, 4294901760
    %v2977 = vsub.f32 %v157, %v2976
    %v2978 = vand.u32 %v2977, 4294901760
    %v2979 = vsub.f32 %v2977, %v2978
    %v2980 = vand.u32 %v2979, 4294901760
    %2981 = vmatpush1.msra.mxu0 %v2980
    %2982 = vmatprep.subr.mxu0 0.0
    %v2983 = vand.u32 %v158, 4294901760
    %v2984 = vsub.f32 %v158, %v2983
    %v2985 = vand.u32 %v2984, 4294901760
    %v2986 = vsub.f32 %v2984, %v2985
    %v2987 = vand.u32 %v2986, 4294901760
    %2988 = vmatpush1.msra.mxu0 %v2987
    %2989 = vmatprep.subr.mxu0 0.0
    %v2990 = vand.u32 %v159, 4294901760
    %v2991 = vsub.f32 %v159, %v2990
    %v2992 = vand.u32 %v2991, 4294901760
    %v2993 = vsub.f32 %v2991, %v2992
    %v2994 = vand.u32 %v2993, 4294901760
    %2995 = vmatpush1.msra.mxu0 %v2994
    %2996 = vmatprep.subr.mxu0 0.0
    %v2997 = vand.u32 %v160, 4294901760
    %v2998 = vsub.f32 %v160, %v2997
    %v2999 = vand.u32 %v2998, 4294901760
    %v3000 = vsub.f32 %v2998, %v2999
    %v3001 = vand.u32 %v3000, 4294901760
    %3002 = vmatpush1.msra.mxu0 %v3001
    %3003 = vmatprep.subr.mxu0 0.0
    %v3004 = vand.u32 %v161, 4294901760
    %v3005 = vsub.f32 %v161, %v3004
    %v3006 = vand.u32 %v3005, 4294901760
    %v3007 = vsub.f32 %v3005, %v3006
    %v3008 = vand.u32 %v3007, 4294901760
    %3009 = vmatpush1.msra.mxu0 %v3008
    %3010 = vmatprep.subr.mxu0 0.0
    %v3011 = vand.u32 %v162, 4294901760
    %v3012 = vsub.f32 %v162, %v3011
    %v3013 = vand.u32 %v3012, 4294901760
    %v3014 = vsub.f32 %v3012, %v3013
    %v3015 = vand.u32 %v3014, 4294901760
    %3016 = vmatpush1.msra.mxu0 %v3015
    %3017 = vmatprep.subr.mxu0 0.0
    %v3018 = vand.u32 %v163, 4294901760
    %v3019 = vsub.f32 %v163, %v3018
    %v3020 = vand.u32 %v3019, 4294901760
    %v3021 = vsub.f32 %v3019, %v3020
    %v3022 = vand.u32 %v3021, 4294901760
    %3023 = vmatpush1.msra.mxu0 %v3022
    %3024 = vmatprep.subr.mxu0 0.0
    %v3025 = vand.u32 %v164, 4294901760
    %v3026 = vsub.f32 %v164, %v3025
    %v3027 = vand.u32 %v3026, 4294901760
    %v3028 = vsub.f32 %v3026, %v3027
    %v3029 = vand.u32 %v3028, 4294901760
    %3030 = vmatpush1.msra.mxu0 %v3029
    %3031 = vmatprep.subr.mxu0 0.0
    %v3032 = vand.u32 %v165, 4294901760
    %v3033 = vsub.f32 %v165, %v3032
    %v3034 = vand.u32 %v3033, 4294901760
    %v3035 = vsub.f32 %v3033, %v3034
    %v3036 = vand.u32 %v3035, 4294901760
    %3037 = vmatpush1.msra.mxu0 %v3036
    %3038 = vmatprep.subr.mxu0 0.0
    %v3039 = vand.u32 %v166, 4294901760
    %v3040 = vsub.f32 %v166, %v3039
    %v3041 = vand.u32 %v3040, 4294901760
    %v3042 = vsub.f32 %v3040, %v3041
    %v3043 = vand.u32 %v3042, 4294901760
    %3044 = vmatpush1.msra.mxu0 %v3043
    %3045 = vmatprep.subr.mxu0 0.0
    %v3046 = vand.u32 %v167, 4294901760
    %v3047 = vsub.f32 %v167, %v3046
    %v3048 = vand.u32 %v3047, 4294901760
    %v3049 = vsub.f32 %v3047, %v3048
    %v3050 = vand.u32 %v3049, 4294901760
    %3051 = vmatpush1.msra.mxu0 %v3050
    %3052 = vmatprep.subr.mxu0 0.0
    %v3053 = vand.u32 %v168, 4294901760
    %v3054 = vsub.f32 %v168, %v3053
    %v3055 = vand.u32 %v3054, 4294901760
    %v3056 = vsub.f32 %v3054, %v3055
    %v3057 = vand.u32 %v3056, 4294901760
    %3058 = vmatpush1.msra.mxu0 %v3057
    %3059 = vmatprep.subr.mxu0 0.0
    %v3060 = vand.u32 %v169, 4294901760
    %v3061 = vsub.f32 %v169, %v3060
    %v3062 = vand.u32 %v3061, 4294901760
    %v3063 = vsub.f32 %v3061, %v3062
    %v3064 = vand.u32 %v3063, 4294901760
    %3065 = vmatpush1.msra.mxu0 %v3064
    %3066 = vmatprep.subr.mxu0 0.0
    %v3067 = vand.u32 %v170, 4294901760
    %v3068 = vsub.f32 %v170, %v3067
    %v3069 = vand.u32 %v3068, 4294901760
    %v3070 = vsub.f32 %v3068, %v3069
    %v3071 = vand.u32 %v3070, 4294901760
    %3072 = vmatpush1.msra.mxu0 %v3071
    %3073 = vmatprep.subr.mxu0 0.0
    %v3074 = vand.u32 %v171, 4294901760
    %v3075 = vsub.f32 %v171, %v3074
    %v3076 = vand.u32 %v3075, 4294901760
    %v3077 = vsub.f32 %v3075, %v3076
    %v3078 = vand.u32 %v3077, 4294901760
    %3079 = vmatpush1.msra.mxu0 %v3078
    %3080 = vmatprep.subr.mxu0 0.0
    %v3081 = vand.u32 %v172, 4294901760
    %v3082 = vsub.f32 %v172, %v3081
    %v3083 = vand.u32 %v3082, 4294901760
    %v3084 = vsub.f32 %v3082, %v3083
    %v3085 = vand.u32 %v3084, 4294901760
    %3086 = vmatpush1.msra.mxu0 %v3085
    %3087 = vmatprep.subr.mxu0 0.0
    %v3088 = vand.u32 %v173, 4294901760
    %v3089 = vsub.f32 %v173, %v3088
    %v3090 = vand.u32 %v3089, 4294901760
    %v3091 = vsub.f32 %v3089, %v3090
    %v3092 = vand.u32 %v3091, 4294901760
    %3093 = vmatpush1.msra.mxu0 %v3092
    %3094 = vmatprep.subr.mxu0 0.0
    %v3095 = vand.u32 %v174, 4294901760
    %v3096 = vsub.f32 %v174, %v3095
    %v3097 = vand.u32 %v3096, 4294901760
    %v3098 = vsub.f32 %v3096, %v3097
    %v3099 = vand.u32 %v3098, 4294901760
    %3100 = vmatpush1.msra.mxu0 %v3099
    %3101 = vmatprep.subr.mxu0 0.0
    %v3102 = vand.u32 %v175, 4294901760
    %v3103 = vsub.f32 %v175, %v3102
    %v3104 = vand.u32 %v3103, 4294901760
    %v3105 = vsub.f32 %v3103, %v3104
    %v3106 = vand.u32 %v3105, 4294901760
    %3107 = vmatpush1.msra.mxu0 %v3106
    %3108 = vmatprep.subr.mxu0 0.0
    %v3109 = vand.u32 %v176, 4294901760
    %v3110 = vsub.f32 %v176, %v3109
    %v3111 = vand.u32 %v3110, 4294901760
    %v3112 = vsub.f32 %v3110, %v3111
    %v3113 = vand.u32 %v3112, 4294901760
    %3114 = vmatpush1.msra.mxu0 %v3113
    %3115 = vmatprep.subr.mxu0 0.0
    %v3116 = vand.u32 %v177, 4294901760
    %v3117 = vsub.f32 %v177, %v3116
    %v3118 = vand.u32 %v3117, 4294901760
    %v3119 = vsub.f32 %v3117, %v3118
    %v3120 = vand.u32 %v3119, 4294901760
    %3121 = vmatpush1.msra.mxu0 %v3120
    %3122 = vmatprep.subr.mxu0 0.0
    %v3123 = vand.u32 %v178, 4294901760
    %v3124 = vsub.f32 %v178, %v3123
    %v3125 = vand.u32 %v3124, 4294901760
    %v3126 = vsub.f32 %v3124, %v3125
    %v3127 = vand.u32 %v3126, 4294901760
    %3128 = vmatpush1.msra.mxu0 %v3127
    %3129 = vmatprep.subr.mxu0 0.0
    %v3130 = vand.u32 %v179, 4294901760
    %v3131 = vsub.f32 %v179, %v3130
    %v3132 = vand.u32 %v3131, 4294901760
    %v3133 = vsub.f32 %v3131, %v3132
    %v3134 = vand.u32 %v3133, 4294901760
    %3135 = vmatpush1.msra.mxu0 %v3134
    %v3136 = vand.u32 %v49, 4294901760
    %3137 = vmatprep.mubr.f32.mxu0 %v3136
    %v3138 = vand.u32 %v48, 4294901760
    %3139 = vmatmul.mubr.f32.gmra.mrb[0].mxu0 %v3138
    %v3140 = vpop.f32.mrb[0].mxu0
    %v3141 = vadd.f32 %v2909, %v3140
    %v3142 = vpop.f32.mrb[0].mxu0
    %3143 = vdwg.mxu0
    %3144 = vmatprep.subr.mxu0 0.0
    %v3145 = vand.u32 %v148, 4294901760
    %v3146 = vsub.f32 %v148, %v3145
    %3147 = vmatpush1.msra.mxu0 %v3146
    %3148 = vmatprep.subr.mxu0 0.0
    %v3149 = vand.u32 %v149, 4294901760
    %v3150 = vsub.f32 %v149, %v3149
    %3151 = vmatpush1.msra.mxu0 %v3150
    %3152 = vmatprep.subr.mxu0 0.0
    %v3153 = vand.u32 %v150, 4294901760
    %v3154 = vsub.f32 %v150, %v3153
    %3155 = vmatpush1.msra.mxu0 %v3154
    %3156 = vmatprep.subr.mxu0 0.0
    %v3157 = vand.u32 %v151, 4294901760
    %v3158 = vsub.f32 %v151, %v3157
    %3159 = vmatpush1.msra.mxu0 %v3158
    %3160 = vmatprep.subr.mxu0 0.0
    %v3161 = vand.u32 %v152, 4294901760
    %v3162 = vsub.f32 %v152, %v3161
    %3163 = vmatpush1.msra.mxu0 %v3162
    %3164 = vmatprep.subr.mxu0 0.0
    %v3165 = vand.u32 %v153, 4294901760
    %v3166 = vsub.f32 %v153, %v3165
    %3167 = vmatpush1.msra.mxu0 %v3166
    %3168 = vmatprep.subr.mxu0 0.0
    %v3169 = vand.u32 %v154, 4294901760
    %v3170 = vsub.f32 %v154, %v3169
    %3171 = vmatpush1.msra.mxu0 %v3170
    %3172 = vmatprep.subr.mxu0 0.0
    %v3173 = vand.u32 %v155, 4294901760
    %v3174 = vsub.f32 %v155, %v3173
    %3175 = vmatpush1.msra.mxu0 %v3174
    %3176 = vmatprep.subr.mxu0 0.0
    %v3177 = vand.u32 %v156, 4294901760
    %v3178 = vsub.f32 %v156, %v3177
    %3179 = vmatpush1.msra.mxu0 %v3178
    %3180 = vmatprep.subr.mxu0 0.0
    %v3181 = vand.u32 %v157, 4294901760
    %v3182 = vsub.f32 %v157, %v3181
    %3183 = vmatpush1.msra.mxu0 %v3182
    %3184 = vmatprep.subr.mxu0 0.0
    %v3185 = vand.u32 %v158, 4294901760
    %v3186 = vsub.f32 %v158, %v3185
    %3187 = vmatpush1.msra.mxu0 %v3186
    %3188 = vmatprep.subr.mxu0 0.0
    %v3189 = vand.u32 %v159, 4294901760
    %v3190 = vsub.f32 %v159, %v3189
    %3191 = vmatpush1.msra.mxu0 %v3190
    %3192 = vmatprep.subr.mxu0 0.0
    %v3193 = vand.u32 %v160, 4294901760
    %v3194 = vsub.f32 %v160, %v3193
    %3195 = vmatpush1.msra.mxu0 %v3194
    %3196 = vmatprep.subr.mxu0 0.0
    %v3197 = vand.u32 %v161, 4294901760
    %v3198 = vsub.f32 %v161, %v3197
    %3199 = vmatpush1.msra.mxu0 %v3198
    %3200 = vmatprep.subr.mxu0 0.0
    %v3201 = vand.u32 %v162, 4294901760
    %v3202 = vsub.f32 %v162, %v3201
    %3203 = vmatpush1.msra.mxu0 %v3202
    %3204 = vmatprep.subr.mxu0 0.0
    %v3205 = vand.u32 %v163, 4294901760
    %v3206 = vsub.f32 %v163, %v3205
    %3207 = vmatpush1.msra.mxu0 %v3206
    %3208 = vmatprep.subr.mxu0 0.0
    %v3209 = vand.u32 %v164, 4294901760
    %v3210 = vsub.f32 %v164, %v3209
    %3211 = vmatpush1.msra.mxu0 %v3210
    %3212 = vmatprep.subr.mxu0 0.0
    %v3213 = vand.u32 %v165, 4294901760
    %v3214 = vsub.f32 %v165, %v3213
    %3215 = vmatpush1.msra.mxu0 %v3214
    %3216 = vmatprep.subr.mxu0 0.0
    %v3217 = vand.u32 %v166, 4294901760
    %v3218 = vsub.f32 %v166, %v3217
    %3219 = vmatpush1.msra.mxu0 %v3218
    %3220 = vmatprep.subr.mxu0 0.0
    %v3221 = vand.u32 %v167, 4294901760
    %v3222 = vsub.f32 %v167, %v3221
    %3223 = vmatpush1.msra.mxu0 %v3222
    %3224 = vmatprep.subr.mxu0 0.0
    %v3225 = vand.u32 %v168, 4294901760
    %v3226 = vsub.f32 %v168, %v3225
    %3227 = vmatpush1.msra.mxu0 %v3226
    %3228 = vmatprep.subr.mxu0 0.0
    %v3229 = vand.u32 %v169, 4294901760
    %v3230 = vsub.f32 %v169, %v3229
    %3231 = vmatpush1.msra.mxu0 %v3230
    %3232 = vmatprep.subr.mxu0 0.0
    %v3233 = vand.u32 %v170, 4294901760
    %v3234 = vsub.f32 %v170, %v3233
    %3235 = vmatpush1.msra.mxu0 %v3234
    %3236 = vmatprep.subr.mxu0 0.0
    %v3237 = vand.u32 %v171, 4294901760
    %v3238 = vsub.f32 %v171, %v3237
    %3239 = vmatpush1.msra.mxu0 %v3238
    %3240 = vmatprep.subr.mxu0 0.0
    %v3241 = vand.u32 %v172, 4294901760
    %v3242 = vsub.f32 %v172, %v3241
    %3243 = vmatpush1.msra.mxu0 %v3242
    %3244 = vmatprep.subr.mxu0 0.0
    %v3245 = vand.u32 %v173, 4294901760
    %v3246 = vsub.f32 %v173, %v3245
    %3247 = vmatpush1.msra.mxu0 %v3246
    %3248 = vmatprep.subr.mxu0 0.0
    %v3249 = vand.u32 %v174, 4294901760
    %v3250 = vsub.f32 %v174, %v3249
    %3251 = vmatpush1.msra.mxu0 %v3250
    %3252 = vmatprep.subr.mxu0 0.0
    %v3253 = vand.u32 %v175, 4294901760
    %v3254 = vsub.f32 %v175, %v3253
    %3255 = vmatpush1.msra.mxu0 %v3254
    %3256 = vmatprep.subr.mxu0 0.0
    %v3257 = vand.u32 %v176, 4294901760
    %v3258 = vsub.f32 %v176, %v3257
    %3259 = vmatpush1.msra.mxu0 %v3258
    %3260 = vmatprep.subr.mxu0 0.0
    %v3261 = vand.u32 %v177, 4294901760
    %v3262 = vsub.f32 %v177, %v3261
    %3263 = vmatpush1.msra.mxu0 %v3262
    %3264 = vmatprep.subr.mxu0 0.0
    %v3265 = vand.u32 %v178, 4294901760
    %v3266 = vsub.f32 %v178, %v3265
    %3267 = vmatpush1.msra.mxu0 %v3266
    %3268 = vmatprep.subr.mxu0 0.0
    %v3269 = vand.u32 %v179, 4294901760
    %v3270 = vsub.f32 %v179, %v3269
    %3271 = vmatpush1.msra.mxu0 %v3270
    %v3272 = vand.u32 %v49, 4294901760
    %v3273 = vsub.f32 %v49, %v3272
    %3274 = vmatprep.mubr.f32.mxu0 %v3273
    %v3275 = vand.u32 %v48, 4294901760
    %v3276 = vsub.f32 %v48, %v3275
    %3277 = vmatmul.mubr.f32.gmra.mrb[0].mxu0 %v3276
    %v3278 = vpop.f32.mrb[0].mxu0
    %v3279 = vadd.f32 %v3141, %v3278
    %v3280 = vpop.f32.mrb[0].mxu0
    %3281 = vdwg.mxu0
    %3282 = vmatprep.subr.mxu0 0.0
    %v3283 = vand.u32 %v148, 4294901760
    %3284 = vmatpush1.msra.mxu0 %v3283
    %3285 = vmatprep.subr.mxu0 0.0
    %v3286 = vand.u32 %v149, 4294901760
    %3287 = vmatpush1.msra.mxu0 %v3286
    %3288 = vmatprep.subr.mxu0 0.0
    %v3289 = vand.u32 %v150, 4294901760
    %3290 = vmatpush1.msra.mxu0 %v3289
    %3291 = vmatprep.subr.mxu0 0.0
    %v3292 = vand.u32 %v151, 4294901760
    %3293 = vmatpush1.msra.mxu0 %v3292
    %3294 = vmatprep.subr.mxu0 0.0
    %v3295 = vand.u32 %v152, 4294901760
    %3296 = vmatpush1.msra.mxu0 %v3295
    %3297 = vmatprep.subr.mxu0 0.0
    %v3298 = vand.u32 %v153, 4294901760
    %3299 = vmatpush1.msra.mxu0 %v3298
    %3300 = vmatprep.subr.mxu0 0.0
    %v3301 = vand.u32 %v154, 4294901760
    %3302 = vmatpush1.msra.mxu0 %v3301
    %3303 = vmatprep.subr.mxu0 0.0
    %v3304 = vand.u32 %v155, 4294901760
    %3305 = vmatpush1.msra.mxu0 %v3304
    %3306 = vmatprep.subr.mxu0 0.0
    %v3307 = vand.u32 %v156, 4294901760
    %3308 = vmatpush1.msra.mxu0 %v3307
    %3309 = vmatprep.subr.mxu0 0.0
    %v3310 = vand.u32 %v157, 4294901760
    %3311 = vmatpush1.msra.mxu0 %v3310
    %3312 = vmatprep.subr.mxu0 0.0
    %v3313 = vand.u32 %v158, 4294901760
    %3314 = vmatpush1.msra.mxu0 %v3313
    %3315 = vmatprep.subr.mxu0 0.0
    %v3316 = vand.u32 %v159, 4294901760
    %3317 = vmatpush1.msra.mxu0 %v3316
    %3318 = vmatprep.subr.mxu0 0.0
    %v3319 = vand.u32 %v160, 4294901760
    %3320 = vmatpush1.msra.mxu0 %v3319
    %3321 = vmatprep.subr.mxu0 0.0
    %v3322 = vand.u32 %v161, 4294901760
    %3323 = vmatpush1.msra.mxu0 %v3322
    %3324 = vmatprep.subr.mxu0 0.0
    %v3325 = vand.u32 %v162, 4294901760
    %3326 = vmatpush1.msra.mxu0 %v3325
    %3327 = vmatprep.subr.mxu0 0.0
    %v3328 = vand.u32 %v163, 4294901760
    %3329 = vmatpush1.msra.mxu0 %v3328
    %3330 = vmatprep.subr.mxu0 0.0
    %v3331 = vand.u32 %v164, 4294901760
    %3332 = vmatpush1.msra.mxu0 %v3331
    %3333 = vmatprep.subr.mxu0 0.0
    %v3334 = vand.u32 %v165, 4294901760
    %3335 = vmatpush1.msra.mxu0 %v3334
    %3336 = vmatprep.subr.mxu0 0.0
    %v3337 = vand.u32 %v166, 4294901760
    %3338 = vmatpush1.msra.mxu0 %v3337
    %3339 = vmatprep.subr.mxu0 0.0
    %v3340 = vand.u32 %v167, 4294901760
    %3341 = vmatpush1.msra.mxu0 %v3340
    %3342 = vmatprep.subr.mxu0 0.0
    %v3343 = vand.u32 %v168, 4294901760
    %3344 = vmatpush1.msra.mxu0 %v3343
    %3345 = vmatprep.subr.mxu0 0.0
    %v3346 = vand.u32 %v169, 4294901760
    %3347 = vmatpush1.msra.mxu0 %v3346
    %3348 = vmatprep.subr.mxu0 0.0
    %v3349 = vand.u32 %v170, 4294901760
    %3350 = vmatpush1.msra.mxu0 %v3349
    %3351 = vmatprep.subr.mxu0 0.0
    %v3352 = vand.u32 %v171, 4294901760
    %3353 = vmatpush1.msra.mxu0 %v3352
    %3354 = vmatprep.subr.mxu0 0.0
    %v3355 = vand.u32 %v172, 4294901760
    %3356 = vmatpush1.msra.mxu0 %v3355
    %3357 = vmatprep.subr.mxu0 0.0
    %v3358 = vand.u32 %v173, 4294901760
    %3359 = vmatpush1.msra.mxu0 %v3358
    %3360 = vmatprep.subr.mxu0 0.0
    %v3361 = vand.u32 %v174, 4294901760
    %3362 = vmatpush1.msra.mxu0 %v3361
    %3363 = vmatprep.subr.mxu0 0.0
    %v3364 = vand.u32 %v175, 4294901760
    %3365 = vmatpush1.msra.mxu0 %v3364
    %3366 = vmatprep.subr.mxu0 0.0
    %v3367 = vand.u32 %v176, 4294901760
    %3368 = vmatpush1.msra.mxu0 %v3367
    %3369 = vmatprep.subr.mxu0 0.0
    %v3370 = vand.u32 %v177, 4294901760
    %3371 = vmatpush1.msra.mxu0 %v3370
    %3372 = vmatprep.subr.mxu0 0.0
    %v3373 = vand.u32 %v178, 4294901760
    %3374 = vmatpush1.msra.mxu0 %v3373
    %3375 = vmatprep.subr.mxu0 0.0
    %v3376 = vand.u32 %v179, 4294901760
    %3377 = vmatpush1.msra.mxu0 %v3376
    %v3378 = vand.u32 %v49, 4294901760
    %v3379 = vsub.f32 %v49, %v3378
    %v3380 = vand.u32 %v3379, 4294901760
    %3381 = vmatprep.mubr.f32.mxu0 %v3380
    %v3382 = vand.u32 %v48, 4294901760
    %v3383 = vsub.f32 %v48, %v3382
    %v3384 = vand.u32 %v3383, 4294901760
    %3385 = vmatmul.mubr.f32.gmra.mrb[0].mxu0 %v3384
    %v3386 = vpop.f32.mrb[0].mxu0
    %v3387 = vadd.f32 %v3279, %v3386
    %v3388 = vpop.f32.mrb[0].mxu0
    %3389 = vdwg.mxu0
    %3390 = vmatprep.subr.mxu0 0.0
    %v3391 = vand.u32 %v148, 4294901760
    %v3392 = vsub.f32 %v148, %v3391
    %v3393 = vand.u32 %v3392, 4294901760
    %3394 = vmatpush1.msra.mxu0 %v3393
    %3395 = vmatprep.subr.mxu0 0.0
    %v3396 = vand.u32 %v149, 4294901760
    %v3397 = vsub.f32 %v149, %v3396
    %v3398 = vand.u32 %v3397, 4294901760
    %3399 = vmatpush1.msra.mxu0 %v3398
    %3400 = vmatprep.subr.mxu0 0.0
    %v3401 = vand.u32 %v150, 4294901760
    %v3402 = vsub.f32 %v150, %v3401
    %v3403 = vand.u32 %v3402, 4294901760
    %3404 = vmatpush1.msra.mxu0 %v3403
    %3405 = vmatprep.subr.mxu0 0.0
    %v3406 = vand.u32 %v151, 4294901760
    %v3407 = vsub.f32 %v151, %v3406
    %v3408 = vand.u32 %v3407, 4294901760
    %3409 = vmatpush1.msra.mxu0 %v3408
    %3410 = vmatprep.subr.mxu0 0.0
    %v3411 = vand.u32 %v152, 4294901760
    %v3412 = vsub.f32 %v152, %v3411
    %v3413 = vand.u32 %v3412, 4294901760
    %3414 = vmatpush1.msra.mxu0 %v3413
    %3415 = vmatprep.subr.mxu0 0.0
    %v3416 = vand.u32 %v153, 4294901760
    %v3417 = vsub.f32 %v153, %v3416
    %v3418 = vand.u32 %v3417, 4294901760
    %3419 = vmatpush1.msra.mxu0 %v3418
    %3420 = vmatprep.subr.mxu0 0.0
    %v3421 = vand.u32 %v154, 4294901760
    %v3422 = vsub.f32 %v154, %v3421
    %v3423 = vand.u32 %v3422, 4294901760
    %3424 = vmatpush1.msra.mxu0 %v3423
    %3425 = vmatprep.subr.mxu0 0.0
    %v3426 = vand.u32 %v155, 4294901760
    %v3427 = vsub.f32 %v155, %v3426
    %v3428 = vand.u32 %v3427, 4294901760
    %3429 = vmatpush1.msra.mxu0 %v3428
    %3430 = vmatprep.subr.mxu0 0.0
    %v3431 = vand.u32 %v156, 4294901760
    %v3432 = vsub.f32 %v156, %v3431
    %v3433 = vand.u32 %v3432, 4294901760
    %3434 = vmatpush1.msra.mxu0 %v3433
    %3435 = vmatprep.subr.mxu0 0.0
    %v3436 = vand.u32 %v157, 4294901760
    %v3437 = vsub.f32 %v157, %v3436
    %v3438 = vand.u32 %v3437, 4294901760
    %3439 = vmatpush1.msra.mxu0 %v3438
    %3440 = vmatprep.subr.mxu0 0.0
    %v3441 = vand.u32 %v158, 4294901760
    %v3442 = vsub.f32 %v158, %v3441
    %v3443 = vand.u32 %v3442, 4294901760
    %3444 = vmatpush1.msra.mxu0 %v3443
    %3445 = vmatprep.subr.mxu0 0.0
    %v3446 = vand.u32 %v159, 4294901760
    %v3447 = vsub.f32 %v159, %v3446
    %v3448 = vand.u32 %v3447, 4294901760
    %3449 = vmatpush1.msra.mxu0 %v3448
    %3450 = vmatprep.subr.mxu0 0.0
    %v3451 = vand.u32 %v160, 4294901760
    %v3452 = vsub.f32 %v160, %v3451
    %v3453 = vand.u32 %v3452, 4294901760
    %3454 = vmatpush1.msra.mxu0 %v3453
    %3455 = vmatprep.subr.mxu0 0.0
    %v3456 = vand.u32 %v161, 4294901760
    %v3457 = vsub.f32 %v161, %v3456
    %v3458 = vand.u32 %v3457, 4294901760
    %3459 = vmatpush1.msra.mxu0 %v3458
    %3460 = vmatprep.subr.mxu0 0.0
    %v3461 = vand.u32 %v162, 4294901760
    %v3462 = vsub.f32 %v162, %v3461
    %v3463 = vand.u32 %v3462, 4294901760
    %3464 = vmatpush1.msra.mxu0 %v3463
    %3465 = vmatprep.subr.mxu0 0.0
    %v3466 = vand.u32 %v163, 4294901760
    %v3467 = vsub.f32 %v163, %v3466
    %v3468 = vand.u32 %v3467, 4294901760
    %3469 = vmatpush1.msra.mxu0 %v3468
    %3470 = vmatprep.subr.mxu0 0.0
    %v3471 = vand.u32 %v164, 4294901760
    %v3472 = vsub.f32 %v164, %v3471
    %v3473 = vand.u32 %v3472, 4294901760
    %3474 = vmatpush1.msra.mxu0 %v3473
    %3475 = vmatprep.subr.mxu0 0.0
    %v3476 = vand.u32 %v165, 4294901760
    %v3477 = vsub.f32 %v165, %v3476
    %v3478 = vand.u32 %v3477, 4294901760
    %3479 = vmatpush1.msra.mxu0 %v3478
    %3480 = vmatprep.subr.mxu0 0.0
    %v3481 = vand.u32 %v166, 4294901760
    %v3482 = vsub.f32 %v166, %v3481
    %v3483 = vand.u32 %v3482, 4294901760
    %3484 = vmatpush1.msra.mxu0 %v3483
    %3485 = vmatprep.subr.mxu0 0.0
    %v3486 = vand.u32 %v167, 4294901760
    %v3487 = vsub.f32 %v167, %v3486
    %v3488 = vand.u32 %v3487, 4294901760
    %3489 = vmatpush1.msra.mxu0 %v3488
    %3490 = vmatprep.subr.mxu0 0.0
    %v3491 = vand.u32 %v168, 4294901760
    %v3492 = vsub.f32 %v168, %v3491
    %v3493 = vand.u32 %v3492, 4294901760
    %3494 = vmatpush1.msra.mxu0 %v3493
    %3495 = vmatprep.subr.mxu0 0.0
    %v3496 = vand.u32 %v169, 4294901760
    %v3497 = vsub.f32 %v169, %v3496
    %v3498 = vand.u32 %v3497, 4294901760
    %3499 = vmatpush1.msra.mxu0 %v3498
    %3500 = vmatprep.subr.mxu0 0.0
    %v3501 = vand.u32 %v170, 4294901760
    %v3502 = vsub.f32 %v170, %v3501
    %v3503 = vand.u32 %v3502, 4294901760
    %3504 = vmatpush1.msra.mxu0 %v3503
    %3505 = vmatprep.subr.mxu0 0.0
    %v3506 = vand.u32 %v171, 4294901760
    %v3507 = vsub.f32 %v171, %v3506
    %v3508 = vand.u32 %v3507, 4294901760
    %3509 = vmatpush1.msra.mxu0 %v3508
    %3510 = vmatprep.subr.mxu0 0.0
    %v3511 = vand.u32 %v172, 4294901760
    %v3512 = vsub.f32 %v172, %v3511
    %v3513 = vand.u32 %v3512, 4294901760
    %3514 = vmatpush1.msra.mxu0 %v3513
    %3515 = vmatprep.subr.mxu0 0.0
    %v3516 = vand.u32 %v173, 4294901760
    %v3517 = vsub.f32 %v173, %v3516
    %v3518 = vand.u32 %v3517, 4294901760
    %3519 = vmatpush1.msra.mxu0 %v3518
    %3520 = vmatprep.subr.mxu0 0.0
    %v3521 = vand.u32 %v174, 4294901760
    %v3522 = vsub.f32 %v174, %v3521
    %v3523 = vand.u32 %v3522, 4294901760
    %3524 = vmatpush1.msra.mxu0 %v3523
    %3525 = vmatprep.subr.mxu0 0.0
    %v3526 = vand.u32 %v175, 4294901760
    %v3527 = vsub.f32 %v175, %v3526
    %v3528 = vand.u32 %v3527, 4294901760
    %3529 = vmatpush1.msra.mxu0 %v3528
    %3530 = vmatprep.subr.mxu0 0.0
    %v3531 = vand.u32 %v176, 4294901760
    %v3532 = vsub.f32 %v176, %v3531
    %v3533 = vand.u32 %v3532, 4294901760
    %3534 = vmatpush1.msra.mxu0 %v3533
    %3535 = vmatprep.subr.mxu0 0.0
    %v3536 = vand.u32 %v177, 4294901760
    %v3537 = vsub.f32 %v177, %v3536
    %v3538 = vand.u32 %v3537, 4294901760
    %3539 = vmatpush1.msra.mxu0 %v3538
    %3540 = vmatprep.subr.mxu0 0.0
    %v3541 = vand.u32 %v178, 4294901760
    %v3542 = vsub.f32 %v178, %v3541
    %v3543 = vand.u32 %v3542, 4294901760
    %3544 = vmatpush1.msra.mxu0 %v3543
    %3545 = vmatprep.subr.mxu0 0.0
    %v3546 = vand.u32 %v179, 4294901760
    %v3547 = vsub.f32 %v179, %v3546
    %v3548 = vand.u32 %v3547, 4294901760
    %3549 = vmatpush1.msra.mxu0 %v3548
    %v3550 = vand.u32 %v49, 4294901760
    %3551 = vmatprep.mubr.f32.mxu0 %v3550
    %v3552 = vand.u32 %v48, 4294901760
    %3553 = vmatmul.mubr.f32.gmra.mrb[0].mxu0 %v3552
    %v3554 = vpop.f32.mrb[0].mxu0
    %v3555 = vadd.f32 %v3387, %v3554
    %v3556 = vpop.f32.mrb[0].mxu0
    %3557 = vdwg.mxu0
    %3558 = vmatprep.subr.mxu0 0.0
    %v3559 = vand.u32 %v148, 4294901760
    %3560 = vmatpush1.msra.mxu0 %v3559
    %3561 = vmatprep.subr.mxu0 0.0
    %v3562 = vand.u32 %v149, 4294901760
    %3563 = vmatpush1.msra.mxu0 %v3562
    %3564 = vmatprep.subr.mxu0 0.0
    %v3565 = vand.u32 %v150, 4294901760
    %3566 = vmatpush1.msra.mxu0 %v3565
    %3567 = vmatprep.subr.mxu0 0.0
    %v3568 = vand.u32 %v151, 4294901760
    %3569 = vmatpush1.msra.mxu0 %v3568
    %3570 = vmatprep.subr.mxu0 0.0
    %v3571 = vand.u32 %v152, 4294901760
    %3572 = vmatpush1.msra.mxu0 %v3571
    %3573 = vmatprep.subr.mxu0 0.0
    %v3574 = vand.u32 %v153, 4294901760
    %3575 = vmatpush1.msra.mxu0 %v3574
    %3576 = vmatprep.subr.mxu0 0.0
    %v3577 = vand.u32 %v154, 4294901760
    %3578 = vmatpush1.msra.mxu0 %v3577
    %3579 = vmatprep.subr.mxu0 0.0
    %v3580 = vand.u32 %v155, 4294901760
    %3581 = vmatpush1.msra.mxu0 %v3580
    %3582 = vmatprep.subr.mxu0 0.0
    %v3583 = vand.u32 %v156, 4294901760
    %3584 = vmatpush1.msra.mxu0 %v3583
    %3585 = vmatprep.subr.mxu0 0.0
    %v3586 = vand.u32 %v157, 4294901760
    %3587 = vmatpush1.msra.mxu0 %v3586
    %3588 = vmatprep.subr.mxu0 0.0
    %v3589 = vand.u32 %v158, 4294901760
    %3590 = vmatpush1.msra.mxu0 %v3589
    %3591 = vmatprep.subr.mxu0 0.0
    %v3592 = vand.u32 %v159, 4294901760
    %3593 = vmatpush1.msra.mxu0 %v3592
    %3594 = vmatprep.subr.mxu0 0.0
    %v3595 = vand.u32 %v160, 4294901760
    %3596 = vmatpush1.msra.mxu0 %v3595
    %3597 = vmatprep.subr.mxu0 0.0
    %v3598 = vand.u32 %v161, 4294901760
    %3599 = vmatpush1.msra.mxu0 %v3598
    %3600 = vmatprep.subr.mxu0 0.0
    %v3601 = vand.u32 %v162, 4294901760
    %3602 = vmatpush1.msra.mxu0 %v3601
    %3603 = vmatprep.subr.mxu0 0.0
    %v3604 = vand.u32 %v163, 4294901760
    %3605 = vmatpush1.msra.mxu0 %v3604
    %3606 = vmatprep.subr.mxu0 0.0
    %v3607 = vand.u32 %v164, 4294901760
    %3608 = vmatpush1.msra.mxu0 %v3607
    %3609 = vmatprep.subr.mxu0 0.0
    %v3610 = vand.u32 %v165, 4294901760
    %3611 = vmatpush1.msra.mxu0 %v3610
    %3612 = vmatprep.subr.mxu0 0.0
    %v3613 = vand.u32 %v166, 4294901760
    %3614 = vmatpush1.msra.mxu0 %v3613
    %3615 = vmatprep.subr.mxu0 0.0
    %v3616 = vand.u32 %v167, 4294901760
    %3617 = vmatpush1.msra.mxu0 %v3616
    %3618 = vmatprep.subr.mxu0 0.0
    %v3619 = vand.u32 %v168, 4294901760
    %3620 = vmatpush1.msra.mxu0 %v3619
    %3621 = vmatprep.subr.mxu0 0.0
    %v3622 = vand.u32 %v169, 4294901760
    %3623 = vmatpush1.msra.mxu0 %v3622
    %3624 = vmatprep.subr.mxu0 0.0
    %v3625 = vand.u32 %v170, 4294901760
    %3626 = vmatpush1.msra.mxu0 %v3625
    %3627 = vmatprep.subr.mxu0 0.0
    %v3628 = vand.u32 %v171, 4294901760
    %3629 = vmatpush1.msra.mxu0 %v3628
    %3630 = vmatprep.subr.mxu0 0.0
    %v3631 = vand.u32 %v172, 4294901760
    %3632 = vmatpush1.msra.mxu0 %v3631
    %3633 = vmatprep.subr.mxu0 0.0
    %v3634 = vand.u32 %v173, 4294901760
    %3635 = vmatpush1.msra.mxu0 %v3634
    %3636 = vmatprep.subr.mxu0 0.0
    %v3637 = vand.u32 %v174, 4294901760
    %3638 = vmatpush1.msra.mxu0 %v3637
    %3639 = vmatprep.subr.mxu0 0.0
    %v3640 = vand.u32 %v175, 4294901760
    %3641 = vmatpush1.msra.mxu0 %v3640
    %3642 = vmatprep.subr.mxu0 0.0
    %v3643 = vand.u32 %v176, 4294901760
    %3644 = vmatpush1.msra.mxu0 %v3643
    %3645 = vmatprep.subr.mxu0 0.0
    %v3646 = vand.u32 %v177, 4294901760
    %3647 = vmatpush1.msra.mxu0 %v3646
    %3648 = vmatprep.subr.mxu0 0.0
    %v3649 = vand.u32 %v178, 4294901760
    %3650 = vmatpush1.msra.mxu0 %v3649
    %3651 = vmatprep.subr.mxu0 0.0
    %v3652 = vand.u32 %v179, 4294901760
    %3653 = vmatpush1.msra.mxu0 %v3652
    %v3654 = vand.u32 %v49, 4294901760
    %3655 = vmatprep.mubr.f32.mxu0 %v3654
    %v3656 = vand.u32 %v48, 4294901760
    %3657 = vmatmul.mubr.f32.gmra.mrb[0].mxu0 %v3656
    %v3658 = vpop.f32.mrb[0].mxu0
    %v3659 = vadd.f32 %v3555, %v3658
    %v3660 = vpop.f32.mrb[0].mxu0
    %3661 = vdwg.mxu0
    %3662 = vmatprep.subr.mxu0 0.0
    %v3663 = vand.u32 %v180, 4294901760
    %3664 = vmatpush1.msra.mxu0 %v3663
    %3665 = vmatprep.subr.mxu0 0.0
    %v3666 = vand.u32 %v181, 4294901760
    %3667 = vmatpush1.msra.mxu0 %v3666
    %3668 = vmatprep.subr.mxu0 0.0
    %v3669 = vand.u32 %v182, 4294901760
    %3670 = vmatpush1.msra.mxu0 %v3669
    %3671 = vmatprep.subr.mxu0 0.0
    %v3672 = vand.u32 %v183, 4294901760
    %3673 = vmatpush1.msra.mxu0 %v3672
    %3674 = vmatprep.subr.mxu0 0.0
    %v3675 = vand.u32 %v184, 4294901760
    %3676 = vmatpush1.msra.mxu0 %v3675
    %3677 = vmatprep.subr.mxu0 0.0
    %v3678 = vand.u32 %v185, 4294901760
    %3679 = vmatpush1.msra.mxu0 %v3678
    %3680 = vmatprep.subr.mxu0 0.0
    %v3681 = vand.u32 %v186, 4294901760
    %3682 = vmatpush1.msra.mxu0 %v3681
    %3683 = vmatprep.subr.mxu0 0.0
    %v3684 = vand.u32 %v187, 4294901760
    %3685 = vmatpush1.msra.mxu0 %v3684
    %3686 = vmatprep.subr.mxu0 0.0
    %v3687 = vand.u32 %v188, 4294901760
    %3688 = vmatpush1.msra.mxu0 %v3687
    %3689 = vmatprep.subr.mxu0 0.0
    %v3690 = vand.u32 %v189, 4294901760
    %3691 = vmatpush1.msra.mxu0 %v3690
    %3692 = vmatprep.subr.mxu0 0.0
    %v3693 = vand.u32 %v190, 4294901760
    %3694 = vmatpush1.msra.mxu0 %v3693
    %3695 = vmatprep.subr.mxu0 0.0
    %v3696 = vand.u32 %v191, 4294901760
    %3697 = vmatpush1.msra.mxu0 %v3696
    %3698 = vmatprep.subr.mxu0 0.0
    %v3699 = vand.u32 %v192, 4294901760
    %3700 = vmatpush1.msra.mxu0 %v3699
    %3701 = vmatprep.subr.mxu0 0.0
    %v3702 = vand.u32 %v193, 4294901760
    %3703 = vmatpush1.msra.mxu0 %v3702
    %3704 = vmatprep.subr.mxu0 0.0
    %v3705 = vand.u32 %v194, 4294901760
    %3706 = vmatpush1.msra.mxu0 %v3705
    %3707 = vmatprep.subr.mxu0 0.0
    %v3708 = vand.u32 %v195, 4294901760
    %3709 = vmatpush1.msra.mxu0 %v3708
    %3710 = vmatprep.subr.mxu0 0.0
    %v3711 = vand.u32 %v196, 4294901760
    %3712 = vmatpush1.msra.mxu0 %v3711
    %3713 = vmatprep.subr.mxu0 0.0
    %v3714 = vand.u32 %v197, 4294901760
    %3715 = vmatpush1.msra.mxu0 %v3714
    %3716 = vmatprep.subr.mxu0 0.0
    %v3717 = vand.u32 %v198, 4294901760
    %3718 = vmatpush1.msra.mxu0 %v3717
    %3719 = vmatprep.subr.mxu0 0.0
    %v3720 = vand.u32 %v199, 4294901760
    %3721 = vmatpush1.msra.mxu0 %v3720
    %3722 = vmatprep.subr.mxu0 0.0
    %v3723 = vand.u32 %v200, 4294901760
    %3724 = vmatpush1.msra.mxu0 %v3723
    %3725 = vmatprep.subr.mxu0 0.0
    %v3726 = vand.u32 %v201, 4294901760
    %3727 = vmatpush1.msra.mxu0 %v3726
    %3728 = vmatprep.subr.mxu0 0.0
    %v3729 = vand.u32 %v202, 4294901760
    %3730 = vmatpush1.msra.mxu0 %v3729
    %3731 = vmatprep.subr.mxu0 0.0
    %v3732 = vand.u32 %v203, 4294901760
    %3733 = vmatpush1.msra.mxu0 %v3732
    %3734 = vmatprep.subr.mxu0 0.0
    %v3735 = vand.u32 %v204, 4294901760
    %3736 = vmatpush1.msra.mxu0 %v3735
    %3737 = vmatprep.subr.mxu0 0.0
    %v3738 = vand.u32 %v205, 4294901760
    %3739 = vmatpush1.msra.mxu0 %v3738
    %3740 = vmatprep.subr.mxu0 0.0
    %v3741 = vand.u32 %v206, 4294901760
    %3742 = vmatpush1.msra.mxu0 %v3741
    %3743 = vmatprep.subr.mxu0 0.0
    %v3744 = vand.u32 %v207, 4294901760
    %3745 = vmatpush1.msra.mxu0 %v3744
    %3746 = vmatprep.subr.mxu0 0.0
    %v3747 = vand.u32 %v208, 4294901760
    %3748 = vmatpush1.msra.mxu0 %v3747
    %3749 = vmatprep.subr.mxu0 0.0
    %v3750 = vand.u32 %v209, 4294901760
    %3751 = vmatpush1.msra.mxu0 %v3750
    %3752 = vmatprep.subr.mxu0 0.0
    %v3753 = vand.u32 %v210, 4294901760
    %3754 = vmatpush1.msra.mxu0 %v3753
    %3755 = vmatprep.subr.mxu0 0.0
    %v3756 = vand.u32 %v211, 4294901760
    %3757 = vmatpush1.msra.mxu0 %v3756
    %v3758 = vand.u32 %v51, 4294901760
    %v3759 = vsub.f32 %v51, %v3758
    %v3760 = vand.u32 %v3759, 4294901760
    %v3761 = vsub.f32 %v3759, %v3760
    %v3762 = vand.u32 %v3761, 4294901760
    %3763 = vmatprep.mubr.f32.mxu0 %v3762
    %v3764 = vand.u32 %v50, 4294901760
    %v3765 = vsub.f32 %v50, %v3764
    %v3766 = vand.u32 %v3765, 4294901760
    %v3767 = vsub.f32 %v3765, %v3766
    %v3768 = vand.u32 %v3767, 4294901760
    %3769 = vmatmul.mubr.f32.gmra.mrb[0].mxu0 %v3768
    %v3770 = vpop.f32.mrb[0].mxu0
    %v3771 = vadd.f32 %v3659, %v3770
    %v3772 = vpop.f32.mrb[0].mxu0
    %3773 = vdwg.mxu0
    %3774 = vmatprep.subr.mxu0 0.0
    %v3775 = vand.u32 %v180, 4294901760
    %v3776 = vsub.f32 %v180, %v3775
    %v3777 = vand.u32 %v3776, 4294901760
    %v3778 = vsub.f32 %v3776, %v3777
    %v3779 = vand.u32 %v3778, 4294901760
    %3780 = vmatpush1.msra.mxu0 %v3779
    %3781 = vmatprep.subr.mxu0 0.0
    %v3782 = vand.u32 %v181, 4294901760
    %v3783 = vsub.f32 %v181, %v3782
    %v3784 = vand.u32 %v3783, 4294901760
    %v3785 = vsub.f32 %v3783, %v3784
    %v3786 = vand.u32 %v3785, 4294901760
    %3787 = vmatpush1.msra.mxu0 %v3786
    %3788 = vmatprep.subr.mxu0 0.0
    %v3789 = vand.u32 %v182, 4294901760
    %v3790 = vsub.f32 %v182, %v3789
    %v3791 = vand.u32 %v3790, 4294901760
    %v3792 = vsub.f32 %v3790, %v3791
    %v3793 = vand.u32 %v3792, 4294901760
    %3794 = vmatpush1.msra.mxu0 %v3793
    %3795 = vmatprep.subr.mxu0 0.0
    %v3796 = vand.u32 %v183, 4294901760
    %v3797 = vsub.f32 %v183, %v3796
    %v3798 = vand.u32 %v3797, 4294901760
    %v3799 = vsub.f32 %v3797, %v3798
    %v3800 = vand.u32 %v3799, 4294901760
    %3801 = vmatpush1.msra.mxu0 %v3800
    %3802 = vmatprep.subr.mxu0 0.0
    %v3803 = vand.u32 %v184, 4294901760
    %v3804 = vsub.f32 %v184, %v3803
    %v3805 = vand.u32 %v3804, 4294901760
    %v3806 = vsub.f32 %v3804, %v3805
    %v3807 = vand.u32 %v3806, 4294901760
    %3808 = vmatpush1.msra.mxu0 %v3807
    %3809 = vmatprep.subr.mxu0 0.0
    %v3810 = vand.u32 %v185, 4294901760
    %v3811 = vsub.f32 %v185, %v3810
    %v3812 = vand.u32 %v3811, 4294901760
    %v3813 = vsub.f32 %v3811, %v3812
    %v3814 = vand.u32 %v3813, 4294901760
    %3815 = vmatpush1.msra.mxu0 %v3814
    %3816 = vmatprep.subr.mxu0 0.0
    %v3817 = vand.u32 %v186, 4294901760
    %v3818 = vsub.f32 %v186, %v3817
    %v3819 = vand.u32 %v3818, 4294901760
    %v3820 = vsub.f32 %v3818, %v3819
    %v3821 = vand.u32 %v3820, 4294901760
    %3822 = vmatpush1.msra.mxu0 %v3821
    %3823 = vmatprep.subr.mxu0 0.0
    %v3824 = vand.u32 %v187, 4294901760
    %v3825 = vsub.f32 %v187, %v3824
    %v3826 = vand.u32 %v3825, 4294901760
    %v3827 = vsub.f32 %v3825, %v3826
    %v3828 = vand.u32 %v3827, 4294901760
    %3829 = vmatpush1.msra.mxu0 %v3828
    %3830 = vmatprep.subr.mxu0 0.0
    %v3831 = vand.u32 %v188, 4294901760
    %v3832 = vsub.f32 %v188, %v3831
    %v3833 = vand.u32 %v3832, 4294901760
    %v3834 = vsub.f32 %v3832, %v3833
    %v3835 = vand.u32 %v3834, 4294901760
    %3836 = vmatpush1.msra.mxu0 %v3835
    %3837 = vmatprep.subr.mxu0 0.0
    %v3838 = vand.u32 %v189, 4294901760
    %v3839 = vsub.f32 %v189, %v3838
    %v3840 = vand.u32 %v3839, 4294901760
    %v3841 = vsub.f32 %v3839, %v3840
    %v3842 = vand.u32 %v3841, 4294901760
    %3843 = vmatpush1.msra.mxu0 %v3842
    %3844 = vmatprep.subr.mxu0 0.0
    %v3845 = vand.u32 %v190, 4294901760
    %v3846 = vsub.f32 %v190, %v3845
    %v3847 = vand.u32 %v3846, 4294901760
    %v3848 = vsub.f32 %v3846, %v3847
    %v3849 = vand.u32 %v3848, 4294901760
    %3850 = vmatpush1.msra.mxu0 %v3849
    %3851 = vmatprep.subr.mxu0 0.0
    %v3852 = vand.u32 %v191, 4294901760
    %v3853 = vsub.f32 %v191, %v3852
    %v3854 = vand.u32 %v3853, 4294901760
    %v3855 = vsub.f32 %v3853, %v3854
    %v3856 = vand.u32 %v3855, 4294901760
    %3857 = vmatpush1.msra.mxu0 %v3856
    %3858 = vmatprep.subr.mxu0 0.0
    %v3859 = vand.u32 %v192, 4294901760
    %v3860 = vsub.f32 %v192, %v3859
    %v3861 = vand.u32 %v3860, 4294901760
    %v3862 = vsub.f32 %v3860, %v3861
    %v3863 = vand.u32 %v3862, 4294901760
    %3864 = vmatpush1.msra.mxu0 %v3863
    %3865 = vmatprep.subr.mxu0 0.0
    %v3866 = vand.u32 %v193, 4294901760
    %v3867 = vsub.f32 %v193, %v3866
    %v3868 = vand.u32 %v3867, 4294901760
    %v3869 = vsub.f32 %v3867, %v3868
    %v3870 = vand.u32 %v3869, 4294901760
    %3871 = vmatpush1.msra.mxu0 %v3870
    %3872 = vmatprep.subr.mxu0 0.0
    %v3873 = vand.u32 %v194, 4294901760
    %v3874 = vsub.f32 %v194, %v3873
    %v3875 = vand.u32 %v3874, 4294901760
    %v3876 = vsub.f32 %v3874, %v3875
    %v3877 = vand.u32 %v3876, 4294901760
    %3878 = vmatpush1.msra.mxu0 %v3877
    %3879 = vmatprep.subr.mxu0 0.0
    %v3880 = vand.u32 %v195, 4294901760
    %v3881 = vsub.f32 %v195, %v3880
    %v3882 = vand.u32 %v3881, 4294901760
    %v3883 = vsub.f32 %v3881, %v3882
    %v3884 = vand.u32 %v3883, 4294901760
    %3885 = vmatpush1.msra.mxu0 %v3884
    %3886 = vmatprep.subr.mxu0 0.0
    %v3887 = vand.u32 %v196, 4294901760
    %v3888 = vsub.f32 %v196, %v3887
    %v3889 = vand.u32 %v3888, 4294901760
    %v3890 = vsub.f32 %v3888, %v3889
    %v3891 = vand.u32 %v3890, 4294901760
    %3892 = vmatpush1.msra.mxu0 %v3891
    %3893 = vmatprep.subr.mxu0 0.0
    %v3894 = vand.u32 %v197, 4294901760
    %v3895 = vsub.f32 %v197, %v3894
    %v3896 = vand.u32 %v3895, 4294901760
    %v3897 = vsub.f32 %v3895, %v3896
    %v3898 = vand.u32 %v3897, 4294901760
    %3899 = vmatpush1.msra.mxu0 %v3898
    %3900 = vmatprep.subr.mxu0 0.0
    %v3901 = vand.u32 %v198, 4294901760
    %v3902 = vsub.f32 %v198, %v3901
    %v3903 = vand.u32 %v3902, 4294901760
    %v3904 = vsub.f32 %v3902, %v3903
    %v3905 = vand.u32 %v3904, 4294901760
    %3906 = vmatpush1.msra.mxu0 %v3905
    %3907 = vmatprep.subr.mxu0 0.0
    %v3908 = vand.u32 %v199, 4294901760
    %v3909 = vsub.f32 %v199, %v3908
    %v3910 = vand.u32 %v3909, 4294901760
    %v3911 = vsub.f32 %v3909, %v3910
    %v3912 = vand.u32 %v3911, 4294901760
    %3913 = vmatpush1.msra.mxu0 %v3912
    %3914 = vmatprep.subr.mxu0 0.0
    %v3915 = vand.u32 %v200, 4294901760
    %v3916 = vsub.f32 %v200, %v3915
    %v3917 = vand.u32 %v3916, 4294901760
    %v3918 = vsub.f32 %v3916, %v3917
    %v3919 = vand.u32 %v3918, 4294901760
    %3920 = vmatpush1.msra.mxu0 %v3919
    %3921 = vmatprep.subr.mxu0 0.0
    %v3922 = vand.u32 %v201, 4294901760
    %v3923 = vsub.f32 %v201, %v3922
    %v3924 = vand.u32 %v3923, 4294901760
    %v3925 = vsub.f32 %v3923, %v3924
    %v3926 = vand.u32 %v3925, 4294901760
    %3927 = vmatpush1.msra.mxu0 %v3926
    %3928 = vmatprep.subr.mxu0 0.0
    %v3929 = vand.u32 %v202, 4294901760
    %v3930 = vsub.f32 %v202, %v3929
    %v3931 = vand.u32 %v3930, 4294901760
    %v3932 = vsub.f32 %v3930, %v3931
    %v3933 = vand.u32 %v3932, 4294901760
    %3934 = vmatpush1.msra.mxu0 %v3933
    %3935 = vmatprep.subr.mxu0 0.0
    %v3936 = vand.u32 %v203, 4294901760
    %v3937 = vsub.f32 %v203, %v3936
    %v3938 = vand.u32 %v3937, 4294901760
    %v3939 = vsub.f32 %v3937, %v3938
    %v3940 = vand.u32 %v3939, 4294901760
    %3941 = vmatpush1.msra.mxu0 %v3940
    %3942 = vmatprep.subr.mxu0 0.0
    %v3943 = vand.u32 %v204, 4294901760
    %v3944 = vsub.f32 %v204, %v3943
    %v3945 = vand.u32 %v3944, 4294901760
    %v3946 = vsub.f32 %v3944, %v3945
    %v3947 = vand.u32 %v3946, 4294901760
    %3948 = vmatpush1.msra.mxu0 %v3947
    %3949 = vmatprep.subr.mxu0 0.0
    %v3950 = vand.u32 %v205, 4294901760
    %v3951 = vsub.f32 %v205, %v3950
    %v3952 = vand.u32 %v3951, 4294901760
    %v3953 = vsub.f32 %v3951, %v3952
    %v3954 = vand.u32 %v3953, 4294901760
    %3955 = vmatpush1.msra.mxu0 %v3954
    %3956 = vmatprep.subr.mxu0 0.0
    %v3957 = vand.u32 %v206, 4294901760
    %v3958 = vsub.f32 %v206, %v3957
    %v3959 = vand.u32 %v3958, 4294901760
    %v3960 = vsub.f32 %v3958, %v3959
    %v3961 = vand.u32 %v3960, 4294901760
    %3962 = vmatpush1.msra.mxu0 %v3961
    %3963 = vmatprep.subr.mxu0 0.0
    %v3964 = vand.u32 %v207, 4294901760
    %v3965 = vsub.f32 %v207, %v3964
    %v3966 = vand.u32 %v3965, 4294901760
    %v3967 = vsub.f32 %v3965, %v3966
    %v3968 = vand.u32 %v3967, 4294901760
    %3969 = vmatpush1.msra.mxu0 %v3968
    %3970 = vmatprep.subr.mxu0 0.0
    %v3971 = vand.u32 %v208, 4294901760
    %v3972 = vsub.f32 %v208, %v3971
    %v3973 = vand.u32 %v3972, 4294901760
    %v3974 = vsub.f32 %v3972, %v3973
    %v3975 = vand.u32 %v3974, 4294901760
    %3976 = vmatpush1.msra.mxu0 %v3975
    %3977 = vmatprep.subr.mxu0 0.0
    %v3978 = vand.u32 %v209, 4294901760
    %v3979 = vsub.f32 %v209, %v3978
    %v3980 = vand.u32 %v3979, 4294901760
    %v3981 = vsub.f32 %v3979, %v3980
    %v3982 = vand.u32 %v3981, 4294901760
    %3983 = vmatpush1.msra.mxu0 %v3982
    %3984 = vmatprep.subr.mxu0 0.0
    %v3985 = vand.u32 %v210, 4294901760
    %v3986 = vsub.f32 %v210, %v3985
    %v3987 = vand.u32 %v3986, 4294901760
    %v3988 = vsub.f32 %v3986, %v3987
    %v3989 = vand.u32 %v3988, 4294901760
    %3990 = vmatpush1.msra.mxu0 %v3989
    %3991 = vmatprep.subr.mxu0 0.0
    %v3992 = vand.u32 %v211, 4294901760
    %v3993 = vsub.f32 %v211, %v3992
    %v3994 = vand.u32 %v3993, 4294901760
    %v3995 = vsub.f32 %v3993, %v3994
    %v3996 = vand.u32 %v3995, 4294901760
    %3997 = vmatpush1.msra.mxu0 %v3996
    %v3998 = vand.u32 %v51, 4294901760
    %3999 = vmatprep.mubr.f32.mxu0 %v3998
    %v4000 = vand.u32 %v50, 4294901760
    %4001 = vmatmul.mubr.f32.gmra.mrb[0].mxu0 %v4000
    %v4002 = vpop.f32.mrb[0].mxu0
    %v4003 = vadd.f32 %v3771, %v4002
    %v4004 = vpop.f32.mrb[0].mxu0
    %4005 = vdwg.mxu0
    %4006 = vmatprep.subr.mxu0 0.0
    %v4007 = vand.u32 %v180, 4294901760
    %v4008 = vsub.f32 %v180, %v4007
    %4009 = vmatpush1.msra.mxu0 %v4008
    %4010 = vmatprep.subr.mxu0 0.0
    %v4011 = vand.u32 %v181, 4294901760
    %v4012 = vsub.f32 %v181, %v4011
    %4013 = vmatpush1.msra.mxu0 %v4012
    %4014 = vmatprep.subr.mxu0 0.0
    %v4015 = vand.u32 %v182, 4294901760
    %v4016 = vsub.f32 %v182, %v4015
    %4017 = vmatpush1.msra.mxu0 %v4016
    %4018 = vmatprep.subr.mxu0 0.0
    %v4019 = vand.u32 %v183, 4294901760
    %v4020 = vsub.f32 %v183, %v4019
    %4021 = vmatpush1.msra.mxu0 %v4020
    %4022 = vmatprep.subr.mxu0 0.0
    %v4023 = vand.u32 %v184, 4294901760
    %v4024 = vsub.f32 %v184, %v4023
    %4025 = vmatpush1.msra.mxu0 %v4024
    %4026 = vmatprep.subr.mxu0 0.0
    %v4027 = vand.u32 %v185, 4294901760
    %v4028 = vsub.f32 %v185, %v4027
    %4029 = vmatpush1.msra.mxu0 %v4028
    %4030 = vmatprep.subr.mxu0 0.0
    %v4031 = vand.u32 %v186, 4294901760
    %v4032 = vsub.f32 %v186, %v4031
    %4033 = vmatpush1.msra.mxu0 %v4032
    %4034 = vmatprep.subr.mxu0 0.0
    %v4035 = vand.u32 %v187, 4294901760
    %v4036 = vsub.f32 %v187, %v4035
    %4037 = vmatpush1.msra.mxu0 %v4036
    %4038 = vmatprep.subr.mxu0 0.0
    %v4039 = vand.u32 %v188, 4294901760
    %v4040 = vsub.f32 %v188, %v4039
    %4041 = vmatpush1.msra.mxu0 %v4040
    %4042 = vmatprep.subr.mxu0 0.0
    %v4043 = vand.u32 %v189, 4294901760
    %v4044 = vsub.f32 %v189, %v4043
    %4045 = vmatpush1.msra.mxu0 %v4044
    %4046 = vmatprep.subr.mxu0 0.0
    %v4047 = vand.u32 %v190, 4294901760
    %v4048 = vsub.f32 %v190, %v4047
    %4049 = vmatpush1.msra.mxu0 %v4048
    %4050 = vmatprep.subr.mxu0 0.0
    %v4051 = vand.u32 %v191, 4294901760
    %v4052 = vsub.f32 %v191, %v4051
    %4053 = vmatpush1.msra.mxu0 %v4052
    %4054 = vmatprep.subr.mxu0 0.0
    %v4055 = vand.u32 %v192, 4294901760
    %v4056 = vsub.f32 %v192, %v4055
    %4057 = vmatpush1.msra.mxu0 %v4056
    %4058 = vmatprep.subr.mxu0 0.0
    %v4059 = vand.u32 %v193, 4294901760
    %v4060 = vsub.f32 %v193, %v4059
    %4061 = vmatpush1.msra.mxu0 %v4060
    %4062 = vmatprep.subr.mxu0 0.0
    %v4063 = vand.u32 %v194, 4294901760
    %v4064 = vsub.f32 %v194, %v4063
    %4065 = vmatpush1.msra.mxu0 %v4064
    %4066 = vmatprep.subr.mxu0 0.0
    %v4067 = vand.u32 %v195, 4294901760
    %v4068 = vsub.f32 %v195, %v4067
    %4069 = vmatpush1.msra.mxu0 %v4068
    %4070 = vmatprep.subr.mxu0 0.0
    %v4071 = vand.u32 %v196, 4294901760
    %v4072 = vsub.f32 %v196, %v4071
    %4073 = vmatpush1.msra.mxu0 %v4072
    %4074 = vmatprep.subr.mxu0 0.0
    %v4075 = vand.u32 %v197, 4294901760
    %v4076 = vsub.f32 %v197, %v4075
    %4077 = vmatpush1.msra.mxu0 %v4076
    %4078 = vmatprep.subr.mxu0 0.0
    %v4079 = vand.u32 %v198, 4294901760
    %v4080 = vsub.f32 %v198, %v4079
    %4081 = vmatpush1.msra.mxu0 %v4080
    %4082 = vmatprep.subr.mxu0 0.0
    %v4083 = vand.u32 %v199, 4294901760
    %v4084 = vsub.f32 %v199, %v4083
    %4085 = vmatpush1.msra.mxu0 %v4084
    %4086 = vmatprep.subr.mxu0 0.0
    %v4087 = vand.u32 %v200, 4294901760
    %v4088 = vsub.f32 %v200, %v4087
    %4089 = vmatpush1.msra.mxu0 %v4088
    %4090 = vmatprep.subr.mxu0 0.0
    %v4091 = vand.u32 %v201, 4294901760
    %v4092 = vsub.f32 %v201, %v4091
    %4093 = vmatpush1.msra.mxu0 %v4092
    %4094 = vmatprep.subr.mxu0 0.0
    %v4095 = vand.u32 %v202, 4294901760
    %v4096 = vsub.f32 %v202, %v4095
    %4097 = vmatpush1.msra.mxu0 %v4096
    %4098 = vmatprep.subr.mxu0 0.0
    %v4099 = vand.u32 %v203, 4294901760
    %v4100 = vsub.f32 %v203, %v4099
    %4101 = vmatpush1.msra.mxu0 %v4100
    %4102 = vmatprep.subr.mxu0 0.0
    %v4103 = vand.u32 %v204, 4294901760
    %v4104 = vsub.f32 %v204, %v4103
    %4105 = vmatpush1.msra.mxu0 %v4104
    %4106 = vmatprep.subr.mxu0 0.0
    %v4107 = vand.u32 %v205, 4294901760
    %v4108 = vsub.f32 %v205, %v4107
    %4109 = vmatpush1.msra.mxu0 %v4108
    %4110 = vmatprep.subr.mxu0 0.0
    %v4111 = vand.u32 %v206, 4294901760
    %v4112 = vsub.f32 %v206, %v4111
    %4113 = vmatpush1.msra.mxu0 %v4112
    %4114 = vmatprep.subr.mxu0 0.0
    %v4115 = vand.u32 %v207, 4294901760
    %v4116 = vsub.f32 %v207, %v4115
    %4117 = vmatpush1.msra.mxu0 %v4116
    %4118 = vmatprep.subr.mxu0 0.0
    %v4119 = vand.u32 %v208, 4294901760
    %v4120 = vsub.f32 %v208, %v4119
    %4121 = vmatpush1.msra.mxu0 %v4120
    %4122 = vmatprep.subr.mxu0 0.0
    %v4123 = vand.u32 %v209, 4294901760
    %v4124 = vsub.f32 %v209, %v4123
    %4125 = vmatpush1.msra.mxu0 %v4124
    %4126 = vmatprep.subr.mxu0 0.0
    %v4127 = vand.u32 %v210, 4294901760
    %v4128 = vsub.f32 %v210, %v4127
    %4129 = vmatpush1.msra.mxu0 %v4128
    %4130 = vmatprep.subr.mxu0 0.0
    %v4131 = vand.u32 %v211, 4294901760
    %v4132 = vsub.f32 %v211, %v4131
    %4133 = vmatpush1.msra.mxu0 %v4132
    %v4134 = vand.u32 %v51, 4294901760
    %v4135 = vsub.f32 %v51, %v4134
    %4136 = vmatprep.mubr.f32.mxu0 %v4135
    %v4137 = vand.u32 %v50, 4294901760
    %v4138 = vsub.f32 %v50, %v4137
    %4139 = vmatmul.mubr.f32.gmra.mrb[0].mxu0 %v4138
    %v4140 = vpop.f32.mrb[0].mxu0
    %v4141 = vadd.f32 %v4003, %v4140
    %v4142 = vpop.f32.mrb[0].mxu0
    %4143 = vdwg.mxu0
    %4144 = vmatprep.subr.mxu0 0.0
    %v4145 = vand.u32 %v180, 4294901760
    %4146 = vmatpush1.msra.mxu0 %v4145
    %4147 = vmatprep.subr.mxu0 0.0
    %v4148 = vand.u32 %v181, 4294901760
    %4149 = vmatpush1.msra.mxu0 %v4148
    %4150 = vmatprep.subr.mxu0 0.0
    %v4151 = vand.u32 %v182, 4294901760
    %4152 = vmatpush1.msra.mxu0 %v4151
    %4153 = vmatprep.subr.mxu0 0.0
    %v4154 = vand.u32 %v183, 4294901760
    %4155 = vmatpush1.msra.mxu0 %v4154
    %4156 = vmatprep.subr.mxu0 0.0
    %v4157 = vand.u32 %v184, 4294901760
    %4158 = vmatpush1.msra.mxu0 %v4157
    %4159 = vmatprep.subr.mxu0 0.0
    %v4160 = vand.u32 %v185, 4294901760
    %4161 = vmatpush1.msra.mxu0 %v4160
    %4162 = vmatprep.subr.mxu0 0.0
    %v4163 = vand.u32 %v186, 4294901760
    %4164 = vmatpush1.msra.mxu0 %v4163
    %4165 = vmatprep.subr.mxu0 0.0
    %v4166 = vand.u32 %v187, 4294901760
    %4167 = vmatpush1.msra.mxu0 %v4166
    %4168 = vmatprep.subr.mxu0 0.0
    %v4169 = vand.u32 %v188, 4294901760
    %4170 = vmatpush1.msra.mxu0 %v4169
    %4171 = vmatprep.subr.mxu0 0.0
    %v4172 = vand.u32 %v189, 4294901760
    %4173 = vmatpush1.msra.mxu0 %v4172
    %4174 = vmatprep.subr.mxu0 0.0
    %v4175 = vand.u32 %v190, 4294901760
    %4176 = vmatpush1.msra.mxu0 %v4175
    %4177 = vmatprep.subr.mxu0 0.0
    %v4178 = vand.u32 %v191, 4294901760
    %4179 = vmatpush1.msra.mxu0 %v4178
    %4180 = vmatprep.subr.mxu0 0.0
    %v4181 = vand.u32 %v192, 4294901760
    %4182 = vmatpush1.msra.mxu0 %v4181
    %4183 = vmatprep.subr.mxu0 0.0
    %v4184 = vand.u32 %v193, 4294901760
    %4185 = vmatpush1.msra.mxu0 %v4184
    %4186 = vmatprep.subr.mxu0 0.0
    %v4187 = vand.u32 %v194, 4294901760
    %4188 = vmatpush1.msra.mxu0 %v4187
    %4189 = vmatprep.subr.mxu0 0.0
    %v4190 = vand.u32 %v195, 4294901760
    %4191 = vmatpush1.msra.mxu0 %v4190
    %4192 = vmatprep.subr.mxu0 0.0
    %v4193 = vand.u32 %v196, 4294901760
    %4194 = vmatpush1.msra.mxu0 %v4193
    %4195 = vmatprep.subr.mxu0 0.0
    %v4196 = vand.u32 %v197, 4294901760
    %4197 = vmatpush1.msra.mxu0 %v4196
    %4198 = vmatprep.subr.mxu0 0.0
    %v4199 = vand.u32 %v198, 4294901760
    %4200 = vmatpush1.msra.mxu0 %v4199
    %4201 = vmatprep.subr.mxu0 0.0
    %v4202 = vand.u32 %v199, 4294901760
    %4203 = vmatpush1.msra.mxu0 %v4202
    %4204 = vmatprep.subr.mxu0 0.0
    %v4205 = vand.u32 %v200, 4294901760
    %4206 = vmatpush1.msra.mxu0 %v4205
    %4207 = vmatprep.subr.mxu0 0.0
    %v4208 = vand.u32 %v201, 4294901760
    %4209 = vmatpush1.msra.mxu0 %v4208
    %4210 = vmatprep.subr.mxu0 0.0
    %v4211 = vand.u32 %v202, 4294901760
    %4212 = vmatpush1.msra.mxu0 %v4211
    %4213 = vmatprep.subr.mxu0 0.0
    %v4214 = vand.u32 %v203, 4294901760
    %4215 = vmatpush1.msra.mxu0 %v4214
    %4216 = vmatprep.subr.mxu0 0.0
    %v4217 = vand.u32 %v204, 4294901760
    %4218 = vmatpush1.msra.mxu0 %v4217
    %4219 = vmatprep.subr.mxu0 0.0
    %v4220 = vand.u32 %v205, 4294901760
    %4221 = vmatpush1.msra.mxu0 %v4220
    %4222 = vmatprep.subr.mxu0 0.0
    %v4223 = vand.u32 %v206, 4294901760
    %4224 = vmatpush1.msra.mxu0 %v4223
    %4225 = vmatprep.subr.mxu0 0.0
    %v4226 = vand.u32 %v207, 4294901760
    %4227 = vmatpush1.msra.mxu0 %v4226
    %4228 = vmatprep.subr.mxu0 0.0
    %v4229 = vand.u32 %v208, 4294901760
    %4230 = vmatpush1.msra.mxu0 %v4229
    %4231 = vmatprep.subr.mxu0 0.0
    %v4232 = vand.u32 %v209, 4294901760
    %4233 = vmatpush1.msra.mxu0 %v4232
    %4234 = vmatprep.subr.mxu0 0.0
    %v4235 = vand.u32 %v210, 4294901760
    %4236 = vmatpush1.msra.mxu0 %v4235
    %4237 = vmatprep.subr.mxu0 0.0
    %v4238 = vand.u32 %v211, 4294901760
    %4239 = vmatpush1.msra.mxu0 %v4238
    %v4240 = vand.u32 %v51, 4294901760
    %v4241 = vsub.f32 %v51, %v4240
    %v4242 = vand.u32 %v4241, 4294901760
    %4243 = vmatprep.mubr.f32.mxu0 %v4242
    %v4244 = vand.u32 %v50, 4294901760
    %v4245 = vsub.f32 %v50, %v4244
    %v4246 = vand.u32 %v4245, 4294901760
    %4247 = vmatmul.mubr.f32.gmra.mrb[0].mxu0 %v4246
    %v4248 = vpop.f32.mrb[0].mxu0
    %v4249 = vadd.f32 %v4141, %v4248
    %v4250 = vpop.f32.mrb[0].mxu0
    %4251 = vdwg.mxu0
    %4252 = vmatprep.subr.mxu0 0.0
    %v4253 = vand.u32 %v180, 4294901760
    %v4254 = vsub.f32 %v180, %v4253
    %v4255 = vand.u32 %v4254, 4294901760
    %4256 = vmatpush1.msra.mxu0 %v4255
    %4257 = vmatprep.subr.mxu0 0.0
    %v4258 = vand.u32 %v181, 4294901760
    %v4259 = vsub.f32 %v181, %v4258
    %v4260 = vand.u32 %v4259, 4294901760
    %4261 = vmatpush1.msra.mxu0 %v4260
    %4262 = vmatprep.subr.mxu0 0.0
    %v4263 = vand.u32 %v182, 4294901760
    %v4264 = vsub.f32 %v182, %v4263
    %v4265 = vand.u32 %v4264, 4294901760
    %4266 = vmatpush1.msra.mxu0 %v4265
    %4267 = vmatprep.subr.mxu0 0.0
    %v4268 = vand.u32 %v183, 4294901760
    %v4269 = vsub.f32 %v183, %v4268
    %v4270 = vand.u32 %v4269, 4294901760
    %4271 = vmatpush1.msra.mxu0 %v4270
    %4272 = vmatprep.subr.mxu0 0.0
    %v4273 = vand.u32 %v184, 4294901760
    %v4274 = vsub.f32 %v184, %v4273
    %v4275 = vand.u32 %v4274, 4294901760
    %4276 = vmatpush1.msra.mxu0 %v4275
    %4277 = vmatprep.subr.mxu0 0.0
    %v4278 = vand.u32 %v185, 4294901760
    %v4279 = vsub.f32 %v185, %v4278
    %v4280 = vand.u32 %v4279, 4294901760
    %4281 = vmatpush1.msra.mxu0 %v4280
    %4282 = vmatprep.subr.mxu0 0.0
    %v4283 = vand.u32 %v186, 4294901760
    %v4284 = vsub.f32 %v186, %v4283
    %v4285 = vand.u32 %v4284, 4294901760
    %4286 = vmatpush1.msra.mxu0 %v4285
    %4287 = vmatprep.subr.mxu0 0.0
    %v4288 = vand.u32 %v187, 4294901760
    %v4289 = vsub.f32 %v187, %v4288
    %v4290 = vand.u32 %v4289, 4294901760
    %4291 = vmatpush1.msra.mxu0 %v4290
    %4292 = vmatprep.subr.mxu0 0.0
    %v4293 = vand.u32 %v188, 4294901760
    %v4294 = vsub.f32 %v188, %v4293
    %v4295 = vand.u32 %v4294, 4294901760
    %4296 = vmatpush1.msra.mxu0 %v4295
    %4297 = vmatprep.subr.mxu0 0.0
    %v4298 = vand.u32 %v189, 4294901760
    %v4299 = vsub.f32 %v189, %v4298
    %v4300 = vand.u32 %v4299, 4294901760
    %4301 = vmatpush1.msra.mxu0 %v4300
    %4302 = vmatprep.subr.mxu0 0.0
    %v4303 = vand.u32 %v190, 4294901760
    %v4304 = vsub.f32 %v190, %v4303
    %v4305 = vand.u32 %v4304, 4294901760
    %4306 = vmatpush1.msra.mxu0 %v4305
    %4307 = vmatprep.subr.mxu0 0.0
    %v4308 = vand.u32 %v191, 4294901760
    %v4309 = vsub.f32 %v191, %v4308
    %v4310 = vand.u32 %v4309, 4294901760
    %4311 = vmatpush1.msra.mxu0 %v4310
    %4312 = vmatprep.subr.mxu0 0.0
    %v4313 = vand.u32 %v192, 4294901760
    %v4314 = vsub.f32 %v192, %v4313
    %v4315 = vand.u32 %v4314, 4294901760
    %4316 = vmatpush1.msra.mxu0 %v4315
    %4317 = vmatprep.subr.mxu0 0.0
    %v4318 = vand.u32 %v193, 4294901760
    %v4319 = vsub.f32 %v193, %v4318
    %v4320 = vand.u32 %v4319, 4294901760
    %4321 = vmatpush1.msra.mxu0 %v4320
    %4322 = vmatprep.subr.mxu0 0.0
    %v4323 = vand.u32 %v194, 4294901760
    %v4324 = vsub.f32 %v194, %v4323
    %v4325 = vand.u32 %v4324, 4294901760
    %4326 = vmatpush1.msra.mxu0 %v4325
    %4327 = vmatprep.subr.mxu0 0.0
    %v4328 = vand.u32 %v195, 4294901760
    %v4329 = vsub.f32 %v195, %v4328
    %v4330 = vand.u32 %v4329, 4294901760
    %4331 = vmatpush1.msra.mxu0 %v4330
    %4332 = vmatprep.subr.mxu0 0.0
    %v4333 = vand.u32 %v196, 4294901760
    %v4334 = vsub.f32 %v196, %v4333
    %v4335 = vand.u32 %v4334, 4294901760
    %4336 = vmatpush1.msra.mxu0 %v4335
    %4337 = vmatprep.subr.mxu0 0.0
    %v4338 = vand.u32 %v197, 4294901760
    %v4339 = vsub.f32 %v197, %v4338
    %v4340 = vand.u32 %v4339, 4294901760
    %4341 = vmatpush1.msra.mxu0 %v4340
    %4342 = vmatprep.subr.mxu0 0.0
    %v4343 = vand.u32 %v198, 4294901760
    %v4344 = vsub.f32 %v198, %v4343
    %v4345 = vand.u32 %v4344, 4294901760
    %4346 = vmatpush1.msra.mxu0 %v4345
    %4347 = vmatprep.subr.mxu0 0.0
    %v4348 = vand.u32 %v199, 4294901760
    %v4349 = vsub.f32 %v199, %v4348
    %v4350 = vand.u32 %v4349, 4294901760
    %4351 = vmatpush1.msra.mxu0 %v4350
    %4352 = vmatprep.subr.mxu0 0.0
    %v4353 = vand.u32 %v200, 4294901760
    %v4354 = vsub.f32 %v200, %v4353
    %v4355 = vand.u32 %v4354, 4294901760
    %4356 = vmatpush1.msra.mxu0 %v4355
    %4357 = vmatprep.subr.mxu0 0.0
    %v4358 = vand.u32 %v201, 4294901760
    %v4359 = vsub.f32 %v201, %v4358
    %v4360 = vand.u32 %v4359, 4294901760
    %4361 = vmatpush1.msra.mxu0 %v4360
    %4362 = vmatprep.subr.mxu0 0.0
    %v4363 = vand.u32 %v202, 4294901760
    %v4364 = vsub.f32 %v202, %v4363
    %v4365 = vand.u32 %v4364, 4294901760
    %4366 = vmatpush1.msra.mxu0 %v4365
    %4367 = vmatprep.subr.mxu0 0.0
    %v4368 = vand.u32 %v203, 4294901760
    %v4369 = vsub.f32 %v203, %v4368
    %v4370 = vand.u32 %v4369, 4294901760
    %4371 = vmatpush1.msra.mxu0 %v4370
    %4372 = vmatprep.subr.mxu0 0.0
    %v4373 = vand.u32 %v204, 4294901760
    %v4374 = vsub.f32 %v204, %v4373
    %v4375 = vand.u32 %v4374, 4294901760
    %4376 = vmatpush1.msra.mxu0 %v4375
    %4377 = vmatprep.subr.mxu0 0.0
    %v4378 = vand.u32 %v205, 4294901760
    %v4379 = vsub.f32 %v205, %v4378
    %v4380 = vand.u32 %v4379, 4294901760
    %4381 = vmatpush1.msra.mxu0 %v4380
    %4382 = vmatprep.subr.mxu0 0.0
    %v4383 = vand.u32 %v206, 4294901760
    %v4384 = vsub.f32 %v206, %v4383
    %v4385 = vand.u32 %v4384, 4294901760
    %4386 = vmatpush1.msra.mxu0 %v4385
    %4387 = vmatprep.subr.mxu0 0.0
    %v4388 = vand.u32 %v207, 4294901760
    %v4389 = vsub.f32 %v207, %v4388
    %v4390 = vand.u32 %v4389, 4294901760
    %4391 = vmatpush1.msra.mxu0 %v4390
    %4392 = vmatprep.subr.mxu0 0.0
    %v4393 = vand.u32 %v208, 4294901760
    %v4394 = vsub.f32 %v208, %v4393
    %v4395 = vand.u32 %v4394, 4294901760
    %4396 = vmatpush1.msra.mxu0 %v4395
    %4397 = vmatprep.subr.mxu0 0.0
    %v4398 = vand.u32 %v209, 4294901760
    %v4399 = vsub.f32 %v209, %v4398
    %v4400 = vand.u32 %v4399, 4294901760
    %4401 = vmatpush1.msra.mxu0 %v4400
    %4402 = vmatprep.subr.mxu0 0.0
    %v4403 = vand.u32 %v210, 4294901760
    %v4404 = vsub.f32 %v210, %v4403
    %v4405 = vand.u32 %v4404, 4294901760
    %4406 = vmatpush1.msra.mxu0 %v4405
    %4407 = vmatprep.subr.mxu0 0.0
    %v4408 = vand.u32 %v211, 4294901760
    %v4409 = vsub.f32 %v211, %v4408
    %v4410 = vand.u32 %v4409, 4294901760
    %4411 = vmatpush1.msra.mxu0 %v4410
    %v4412 = vand.u32 %v51, 4294901760
    %4413 = vmatprep.mubr.f32.mxu0 %v4412
    %v4414 = vand.u32 %v50, 4294901760
    %4415 = vmatmul.mubr.f32.gmra.mrb[0].mxu0 %v4414
    %v4416 = vpop.f32.mrb[0].mxu0
    %v4417 = vadd.f32 %v4249, %v4416
    %v4418 = vpop.f32.mrb[0].mxu0
    %4419 = vdwg.mxu0
    %4420 = vmatprep.subr.mxu0 0.0
    %v4421 = vand.u32 %v180, 4294901760
    %4422 = vmatpush1.msra.mxu0 %v4421
    %4423 = vmatprep.subr.mxu0 0.0
    %v4424 = vand.u32 %v181, 4294901760
    %4425 = vmatpush1.msra.mxu0 %v4424
    %4426 = vmatprep.subr.mxu0 0.0
    %v4427 = vand.u32 %v182, 4294901760
    %4428 = vmatpush1.msra.mxu0 %v4427
    %4429 = vmatprep.subr.mxu0 0.0
    %v4430 = vand.u32 %v183, 4294901760
    %4431 = vmatpush1.msra.mxu0 %v4430
    %4432 = vmatprep.subr.mxu0 0.0
    %v4433 = vand.u32 %v184, 4294901760
    %4434 = vmatpush1.msra.mxu0 %v4433
    %4435 = vmatprep.subr.mxu0 0.0
    %v4436 = vand.u32 %v185, 4294901760
    %4437 = vmatpush1.msra.mxu0 %v4436
    %4438 = vmatprep.subr.mxu0 0.0
    %v4439 = vand.u32 %v186, 4294901760
    %4440 = vmatpush1.msra.mxu0 %v4439
    %4441 = vmatprep.subr.mxu0 0.0
    %v4442 = vand.u32 %v187, 4294901760
    %4443 = vmatpush1.msra.mxu0 %v4442
    %4444 = vmatprep.subr.mxu0 0.0
    %v4445 = vand.u32 %v188, 4294901760
    %4446 = vmatpush1.msra.mxu0 %v4445
    %4447 = vmatprep.subr.mxu0 0.0
    %v4448 = vand.u32 %v189, 4294901760
    %4449 = vmatpush1.msra.mxu0 %v4448
    %4450 = vmatprep.subr.mxu0 0.0
    %v4451 = vand.u32 %v190, 4294901760
    %4452 = vmatpush1.msra.mxu0 %v4451
    %4453 = vmatprep.subr.mxu0 0.0
    %v4454 = vand.u32 %v191, 4294901760
    %4455 = vmatpush1.msra.mxu0 %v4454
    %4456 = vmatprep.subr.mxu0 0.0
    %v4457 = vand.u32 %v192, 4294901760
    %4458 = vmatpush1.msra.mxu0 %v4457
    %4459 = vmatprep.subr.mxu0 0.0
    %v4460 = vand.u32 %v193, 4294901760
    %4461 = vmatpush1.msra.mxu0 %v4460
    %4462 = vmatprep.subr.mxu0 0.0
    %v4463 = vand.u32 %v194, 4294901760
    %4464 = vmatpush1.msra.mxu0 %v4463
    %4465 = vmatprep.subr.mxu0 0.0
    %v4466 = vand.u32 %v195, 4294901760
    %4467 = vmatpush1.msra.mxu0 %v4466
    %4468 = vmatprep.subr.mxu0 0.0
    %v4469 = vand.u32 %v196, 4294901760
    %4470 = vmatpush1.msra.mxu0 %v4469
    %4471 = vmatprep.subr.mxu0 0.0
    %v4472 = vand.u32 %v197, 4294901760
    %4473 = vmatpush1.msra.mxu0 %v4472
    %4474 = vmatprep.subr.mxu0 0.0
    %v4475 = vand.u32 %v198, 4294901760
    %4476 = vmatpush1.msra.mxu0 %v4475
    %4477 = vmatprep.subr.mxu0 0.0
    %v4478 = vand.u32 %v199, 4294901760
    %4479 = vmatpush1.msra.mxu0 %v4478
    %4480 = vmatprep.subr.mxu0 0.0
    %v4481 = vand.u32 %v200, 4294901760
    %4482 = vmatpush1.msra.mxu0 %v4481
    %4483 = vmatprep.subr.mxu0 0.0
    %v4484 = vand.u32 %v201, 4294901760
    %4485 = vmatpush1.msra.mxu0 %v4484
    %4486 = vmatprep.subr.mxu0 0.0
    %v4487 = vand.u32 %v202, 4294901760
    %4488 = vmatpush1.msra.mxu0 %v4487
    %4489 = vmatprep.subr.mxu0 0.0
    %v4490 = vand.u32 %v203, 4294901760
    %4491 = vmatpush1.msra.mxu0 %v4490
    %4492 = vmatprep.subr.mxu0 0.0
    %v4493 = vand.u32 %v204, 4294901760
    %4494 = vmatpush1.msra.mxu0 %v4493
    %4495 = vmatprep.subr.mxu0 0.0
    %v4496 = vand.u32 %v205, 4294901760
    %4497 = vmatpush1.msra.mxu0 %v4496
    %4498 = vmatprep.subr.mxu0 0.0
    %v4499 = vand.u32 %v206, 4294901760
    %4500 = vmatpush1.msra.mxu0 %v4499
    %4501 = vmatprep.subr.mxu0 0.0
    %v4502 = vand.u32 %v207, 4294901760
    %4503 = vmatpush1.msra.mxu0 %v4502
    %4504 = vmatprep.subr.mxu0 0.0
    %v4505 = vand.u32 %v208, 4294901760
    %4506 = vmatpush1.msra.mxu0 %v4505
    %4507 = vmatprep.subr.mxu0 0.0
    %v4508 = vand.u32 %v209, 4294901760
    %4509 = vmatpush1.msra.mxu0 %v4508
    %4510 = vmatprep.subr.mxu0 0.0
    %v4511 = vand.u32 %v210, 4294901760
    %4512 = vmatpush1.msra.mxu0 %v4511
    %4513 = vmatprep.subr.mxu0 0.0
    %v4514 = vand.u32 %v211, 4294901760
    %4515 = vmatpush1.msra.mxu0 %v4514
    %v4516 = vand.u32 %v51, 4294901760
    %4517 = vmatprep.mubr.f32.mxu0 %v4516
    %v4518 = vand.u32 %v50, 4294901760
    %4519 = vmatmul.mubr.f32.gmra.mrb[0].mxu0 %v4518
    %v4520 = vpop.f32.mrb[0].mxu0
    %v4521 = vadd.f32 %v4417, %v4520
    %v4522 = vpop.f32.mrb[0].mxu0
    %4523 = vdwg.mxu0
    %4524 = vst [vmem:[#allocation8] sm:$0xff] %v4521
    // Predicated region
    $region22: #{tpu_custom_call.1} parent=1 // pred_check
      _
    $region23: #{tpu_custom_call.1} parent=1 // pred_check_branch
      %4526 = sbr.rel (0) target = $region25
    $region24: #{tpu_custom_call.1} parent=1 // pred_region
      %s4528 = ssub.s32 128, 128
      %4529 = vsyncadd [#allocation5], %s4528
      %s4531 = sshll.u32 [#allocation8], 4
      %s4532 = int_to_ptr.vmem [resolvable:$true] %s4531
      %4534 = dma.vmem_to_hbm [thread:$0]  %s4532, 128, %s3, [#allocation5]
    $region25: #{tpu_custom_call.1} parent=1 // pred_fallthru
      _
    // Predicated region
    $region26: #{tpu_custom_call.1} parent=1 // pred_check
      _
    $region27: #{tpu_custom_call.1} parent=1 // pred_check_branch
      %4536 = sbr.rel (0) target = $region29
    $region28: #{tpu_custom_call.1} parent=1 // pred_region
      %4537 = dma.done [#allocation5], 128
    $region29: #{tpu_custom_call.1} parent=1 // pred_fallthru
      _
    %4538 = vsyncpa [#allocation4], 1
    %4539 = vsyncpa [#allocation7], 1
    %4540 = vsyncpa [#allocation5], 1

</llo_original>
